<compile_context>
chip_gen: v5e
topology: v5e:2x2
jax: 0.10.0
libtpu: 0.0.40
codegen_flags: <defaults>
</compile_context>

<pallas_src>
import jax
import jax.numpy as jnp
from jax.experimental import pallas as pl
from jax.experimental.pallas import tpu as pltpu

LN_EPS = 1e-5  # torch.nn.LayerNorm default


def _gelu(x):
    # tanh-form GELU: runs on the EUP (own VLIW slot), overlaps with MXU/VPU.
    return jax.nn.gelu(x, approximate=True)


def _layernorm(x, gamma, beta):
    # Single pass over x: var = E[x^2] - mu^2 (biased, like torch).
    mu = jnp.mean(x, axis=-1, keepdims=True)
    ms = jnp.mean(x * x, axis=-1, keepdims=True)
    var = ms - mu * mu
    return (x - mu) * jax.lax.rsqrt(var + LN_EPS) * gamma + beta


def mixer_block_kernel(x_ref, gamma_ref, beta_ref,
                       w1bd_ref, b1_ref, w2bd_ref, b2_ref,
                       cw1_ref, cb1_ref, cw2_ref, cb2_ref,
                       out_ref, out1_scr):
    Bb, T, C = x_ref.shape                  # (block_bs, tokens, channels)
    rows = w2bd_ref.shape[0]                # chunk * T
    chunk = rows // T
    n_chunks = Bb // chunk

    gamma = gamma_ref[...]                  # (1, C) f32
    beta = beta_ref[...]                    # (1, C) f32
    w1 = w1bd_ref[...]                      # (chunk*Ht, chunk*T) bf16, block-diag
    b1 = b1_ref[...]                        # (chunk*Ht, C) f32, lane-dense
    w2 = w2bd_ref[...]                      # (chunk*T, chunk*Ht) bf16, block-diag
    b2 = b2_ref[...]                        # (chunk*T, C) f32, lane-dense

    # ---------------- LayerNorm 1 + token mixing (per 16-batch chunk) -------
    # Natural layout throughout: rows are (b_local, t), lanes are channels.
    for ci in range(n_chunks):
        x_c = x_ref[pl.ds(ci * chunk, chunk), :, :].astype(jnp.float32)
        x_c = x_c.reshape(rows, C)                              # rows = (b, t)
        y_c = _layernorm(x_c, gamma, beta).astype(jnp.bfloat16)
        # h[(b,ht), c] = sum_t tw1[t,ht] * LN(x)[(b,t), c]  -- one MXU matmul.
        h = jnp.dot(w1, y_c, preferred_element_type=jnp.float32)   # (chunk*Ht, C)
        g = _gelu(h + b1).astype(jnp.bfloat16)
        # y_tok[(b,t), c] = sum_ht tw2[ht,t] * g[(b,ht), c]
        y_tok = jnp.dot(w2, g, preferred_element_type=jnp.float32) + b2
        out1_scr[pl.ds(ci * rows, rows), :] = x_c + y_tok       # first residual

    # ---------------- LayerNorm 2 + channel mixing (M = Bb*T rows) ----------
    out1 = out1_scr[...]                                        # (Bb*T, C) f32
    z = _layernorm(out1, gamma, beta).astype(jnp.bfloat16)
    h2 = jnp.dot(z, cw1_ref[...], preferred_element_type=jnp.float32)   # (Bb*T, Hc)
    h2 = _gelu(h2 + cb1_ref[...]).astype(jnp.bfloat16)
    y_ch = jnp.dot(h2, cw2_ref[...], preferred_element_type=jnp.float32)
    y_ch = y_ch + cb2_ref[...]                                  # (Bb*T, C)

    out_ref[...] = (out1 + y_ch).reshape(Bb, T, C).astype(out_ref.dtype)


def mixer_block(x, params, *, block_bs=256, out_dtype=jnp.float32):
    """MixerBlock forward.

    params (math / (in,out) orientation): gamma/beta (C,), tw1 (T,Ht), tb1 (Ht,),
    tw2 (Ht,T), tb2 (T,), cw1 (C,Hc), cb1 (Hc,), cw2 (Hc,C), cb2 (C,).

    Tiling notes: keep block_bs large enough that M = block_bs*T >= 256 so the
    channel-mix weight pushes are amortized; on v7x pick block_bs <= bs/2 so
    the 'parallel' grid has >= 2 (ideally even) steps for both TensorCores.
    """
    bs, T, C = x.shape
    gamma, beta, tw1, tb1, tw2, tb2, cw1, cb1, cw2, cb2 = params
    Ht = tw1.shape[1]
    Hc = cw1.shape[1]

    # ---------------- generation-aware tiling ----------------
    block_bs = max(1, min(block_bs, bs))

    def vmem_est(bb):
        blk = bb * T * C * 4                       # one f32 in/out block
        interm = bb * T * max(C, Hc) * 4           # f32 intermediates
        wts = 4 * C * Hc * 2 + 2 * 128 * max(Ht, T) * 128 * 2
        return 5 * blk + 6 * interm + wts + (1 << 20)

    # Keep the working set well under v7x's 64 MiB physical VMEM.
    while block_bs > 8 and vmem_est(block_bs) > (40 << 20):
        block_bs //= 2
    while bs % block_bs:                           # exact divisor of bs
        block_bs -= 1

    # Token-mix chunk: fold ~16 batches into one block-diagonal matmul so the
    # MXU contraction is K = chunk*T ~ 128 instead of K = T.
    chunk = max(1, min(block_bs, max(1, 128 // T)))
    while block_bs % chunk:
        chunk -= 1

    vmem_limit = int(min(max(vmem_est(block_bs) * 3 // 2, 32 << 20), 48 << 20))
    grid = (bs // block_bs,)

    # ---------------- kernel-friendly layouts / dtypes ----------------
    f32, bf16 = jnp.float32, jnp.bfloat16
    gamma2 = gamma.reshape(1, C).astype(f32)
    beta2 = beta.reshape(1, C).astype(f32)

    eye = jnp.eye(chunk, dtype=f32)
    # Block-diagonal token-mix weights: rows/cols ordered (b_local, ht)/(b_local, t).
    w1bd = jnp.kron(eye, tw1.astype(f32).T).astype(bf16)     # (chunk*Ht, chunk*T)
    w2bd = jnp.kron(eye, tw2.astype(f32).T).astype(bf16)     # (chunk*T, chunk*Ht)
    # Lane-dense token-mix biases.
    b1t = jnp.broadcast_to(tb1.astype(f32).reshape(1, Ht, 1),
                           (chunk, Ht, C)).reshape(chunk * Ht, C)
    b2t = jnp.broadcast_to(tb2.astype(f32).reshape(1, T, 1),
                           (chunk, T, C)).reshape(chunk * T, C)

    cw1b = cw1.astype(bf16)                  # (C, Hc)
    cw2b = cw2.astype(bf16)                  # (Hc, C)
    cb1r = cb1.reshape(1, Hc).astype(f32)
    cb2r = cb2.reshape(1, C).astype(f32)

    def rep(a):                              # whole array, same block every step
        zeros = (0,) * a.ndim
        return pl.BlockSpec(a.shape, lambda b, _z=zeros: _z)

    return pl.pallas_call(
        mixer_block_kernel,
        out_shape=jax.ShapeDtypeStruct((bs, T, C), out_dtype),
        grid_spec=pltpu.PrefetchScalarGridSpec(
            num_scalar_prefetch=0,
            grid=grid,
            in_specs=[
                pl.BlockSpec((block_bs, T, C), lambda b: (b, 0, 0)),
                rep(gamma2), rep(beta2),
                rep(w1bd), rep(b1t),
                rep(w2bd), rep(b2t),
                rep(cw1b), rep(cb1r),
                rep(cw2b), rep(cb2r),
            ],
            out_specs=pl.BlockSpec((block_bs, T, C), lambda b: (b, 0, 0)),
            scratch_shapes=[pltpu.VMEM((block_bs * T, C), jnp.float32)],
        ),
        compiler_params=pltpu.CompilerParams(
            dimension_semantics=("parallel",),
            vmem_limit_bytes=vmem_limit),
    )(x, gamma2, beta2, w1bd, b1t, w2bd, b2t, cw1b, cb1r, cw2b, cb2r)


if __name__ == "__main__":
    # Shapes consistent with
    # MixerBlock(tokens_mlp_dim=8, max_len=128, tokens_hidden_dim=16,
    #            channels_hidden_dim=256): tokens=8, channels=128.
    bs, T, C = 64, 8, 128
    Ht, Hc = 16, 256

    key = jax.random.PRNGKey(0)
    ks = jax.random.split(key, 11)
    x = jax.random.normal(ks[0], (bs, T, C), dtype=jnp.float32)

    gamma = 1.0 + 0.1 * jax.random.normal(ks[1], (C,), jnp.float32)
    beta = 0.1 * jax.random.normal(ks[2], (C,), jnp.float32)
    tw1 = 0.1 * jax.random.normal(ks[3], (T, Ht), jnp.float32)    # (in, out)
    tb1 = 0.1 * jax.random.normal(ks[4], (Ht,), jnp.float32)
    tw2 = 0.1 * jax.random.normal(ks[5], (Ht, T), jnp.float32)
    tb2 = 0.1 * jax.random.normal(ks[6], (T,), jnp.float32)
    cw1 = 0.05 * jax.random.normal(ks[7], (C, Hc), jnp.float32)
    cb1 = 0.05 * jax.random.normal(ks[8], (Hc,), jnp.float32)
    cw2 = 0.05 * jax.random.normal(ks[9], (Hc, C), jnp.float32)
    cb2 = 0.05 * jax.random.normal(ks[10], (C,), jnp.float32)
    params = (gamma, beta, tw1, tb1, tw2, tb2, cw1, cb1, cw2, cb2)

    # block_bs=32 -> grid of 2 "parallel" steps (both v7x TCs busy), and two
    # 16-batch token-mix chunks per step; M = block_bs*T = 256 rows.
    out = mixer_block(x, params, block_bs=32)
    jax.block_until_ready(out)

    # Pure-JAX reference mirroring the PyTorch forward (f32, exact-erf GELU).
    def ref(xv):
        def ln(v):
            mu = v.mean(-1, keepdims=True)
            var = ((v - mu) ** 2).mean(-1, keepdims=True)
            return (v - mu) / jnp.sqrt(var + LN_EPS) * gamma + beta
        y = ln(xv)
        y = jnp.swapaxes(y, 1, 2)                                   # (bs, C, T)
        y = jax.nn.gelu(y @ tw1 + tb1, approximate=False) @ tw2 + tb2
        y = jnp.swapaxes(y, 1, 2)                                   # (bs, T, C)
        out1 = xv + y
        y2 = ln(out1)
        y2 = jax.nn.gelu(y2 @ cw1 + cb1, approximate=False) @ cw2 + cb2
        return out1 + y2

    r = ref(x)
    err = float(jnp.max(jnp.abs(out - r)))
    assert out.shape == (bs, T, C)
    assert jnp.allclose(out, r, atol=2e-2, rtol=2e-2), err
    print("KERNEL_OK")
</pallas_src>

<mosaic_0001>
module attributes {stable_mosaic.version = 11 : i64} {
  func.func @mixer_block_kernel(%arg0: i32, %arg1: memref<32x8x128xf32, #tpu.memory_space<vmem>>, %arg2: memref<1x128xf32, #tpu.memory_space<vmem>>, %arg3: memref<1x128xf32, #tpu.memory_space<vmem>>, %arg4: memref<256x128xbf16, #tpu.memory_space<vmem>>, %arg5: memref<256x128xf32, #tpu.memory_space<vmem>>, %arg6: memref<128x256xbf16, #tpu.memory_space<vmem>>, %arg7: memref<128x128xf32, #tpu.memory_space<vmem>>, %arg8: memref<128x256xbf16, #tpu.memory_space<vmem>>, %arg9: memref<1x256xf32, #tpu.memory_space<vmem>>, %arg10: memref<256x128xbf16, #tpu.memory_space<vmem>>, %arg11: memref<1x128xf32, #tpu.memory_space<vmem>>, %arg12: memref<32x8x128xf32, #tpu.memory_space<vmem>>, %arg13: memref<256x128xf32, #tpu.memory_space<vmem>>) attributes {dimension_semantics = [#tpu.dimension_semantics<parallel>], iteration_bounds = array<i64: 2>, scalar_prefetch = 0 : i64, scratch_operands = 1 : i64, tpu.core_type = #tpu.core_type<tc>, window_params = [{transform_indices = @transform_0, window_bounds = array<i64: 32, 8, 128>}, {pipeline_mode = #tpu.pipeline_mode<synchronous>, transform_indices = @transform_1, window_bounds = array<i64: 1, 128>}, {pipeline_mode = #tpu.pipeline_mode<synchronous>, transform_indices = @transform_2, window_bounds = array<i64: 1, 128>}, {pipeline_mode = #tpu.pipeline_mode<synchronous>, transform_indices = @transform_3, window_bounds = array<i64: 256, 128>}, {pipeline_mode = #tpu.pipeline_mode<synchronous>, transform_indices = @transform_4, window_bounds = array<i64: 256, 128>}, {pipeline_mode = #tpu.pipeline_mode<synchronous>, transform_indices = @transform_5, window_bounds = array<i64: 128, 256>}, {pipeline_mode = #tpu.pipeline_mode<synchronous>, transform_indices = @transform_6, window_bounds = array<i64: 128, 128>}, {pipeline_mode = #tpu.pipeline_mode<synchronous>, transform_indices = @transform_7, window_bounds = array<i64: 128, 256>}, {pipeline_mode = #tpu.pipeline_mode<synchronous>, transform_indices = @transform_8, window_bounds = array<i64: 1, 256>}, {pipeline_mode = #tpu.pipeline_mode<synchronous>, transform_indices = @transform_9, window_bounds = array<i64: 256, 128>}, {pipeline_mode = #tpu.pipeline_mode<synchronous>, transform_indices = @transform_10, window_bounds = array<i64: 1, 128>}, {transform_indices = @transform_11, window_bounds = array<i64: 32, 8, 128>}]} {
    %c0 = arith.constant 0 : index
    %c0_0 = arith.constant 0 : index
    %0 = vector.load %arg2[%c0, %c0_0] : memref<1x128xf32, #tpu.memory_space<vmem>>, vector<1x128xf32>
    %c0_1 = arith.constant 0 : index
    %c0_2 = arith.constant 0 : index
    %1 = vector.load %arg3[%c0_1, %c0_2] : memref<1x128xf32, #tpu.memory_space<vmem>>, vector<1x128xf32>
    %c0_3 = arith.constant 0 : index
    %c0_4 = arith.constant 0 : index
    %2 = vector.load %arg4[%c0_3, %c0_4] : memref<256x128xbf16, #tpu.memory_space<vmem>>, vector<256x128xbf16>
    %c0_5 = arith.constant 0 : index
    %c0_6 = arith.constant 0 : index
    %3 = vector.load %arg5[%c0_5, %c0_6] : memref<256x128xf32, #tpu.memory_space<vmem>>, vector<256x128xf32>
    %c0_7 = arith.constant 0 : index
    %c0_8 = arith.constant 0 : index
    %4 = vector.load %arg6[%c0_7, %c0_8] : memref<128x256xbf16, #tpu.memory_space<vmem>>, vector<128x256xbf16>
    %c0_9 = arith.constant 0 : index
    %c0_10 = arith.constant 0 : index
    %5 = vector.load %arg7[%c0_9, %c0_10] : memref<128x128xf32, #tpu.memory_space<vmem>>, vector<128x128xf32>
    %c0_11 = arith.constant 0 : index
    %c0_12 = arith.constant 0 : index
    %c0_13 = arith.constant 0 : index
    %6 = vector.load %arg1[%c0_11, %c0_12, %c0_13] : memref<32x8x128xf32, #tpu.memory_space<vmem>>, vector<16x8x128xf32>
    %7 = vector.shape_cast %6 : vector<16x8x128xf32> to vector<128x128xf32>
    %cst = arith.constant dense<0.000000e+00> : vector<128xf32>
    %8 = vector.multi_reduction <add>, %7, %cst [1] : vector<128x128xf32> to vector<128xf32>
    %9 = vector.shape_cast %8 : vector<128xf32> to vector<128x1xf32>
    %cst_14 = arith.constant 1.280000e+02 : f32
    %10 = vector.broadcast %cst_14 : f32 to vector<128x1xf32>
    %11 = arith.divf %9, %10 : vector<128x1xf32>
    %12 = arith.mulf %7, %7 : vector<128x128xf32>
    %cst_15 = arith.constant dense<0.000000e+00> : vector<128xf32>
    %13 = vector.multi_reduction <add>, %12, %cst_15 [1] : vector<128x128xf32> to vector<128xf32>
    %14 = vector.shape_cast %13 : vector<128xf32> to vector<128x1xf32>
    %cst_16 = arith.constant 1.280000e+02 : f32
    %15 = vector.broadcast %cst_16 : f32 to vector<128x1xf32>
    %16 = arith.divf %14, %15 : vector<128x1xf32>
    %17 = arith.mulf %11, %11 : vector<128x1xf32>
    %18 = arith.subf %16, %17 : vector<128x1xf32>
    %19 = vector.broadcast %11 : vector<128x1xf32> to vector<128x128xf32>
    %20 = arith.subf %7, %19 : vector<128x128xf32>
    %cst_17 = arith.constant 9.99999974E-6 : f32
    %21 = vector.broadcast %cst_17 : f32 to vector<128x1xf32>
    %22 = arith.addf %18, %21 : vector<128x1xf32>
    %23 = math.rsqrt %22 : vector<128x1xf32>
    %24 = vector.broadcast %23 : vector<128x1xf32> to vector<128x128xf32>
    %25 = arith.mulf %20, %24 : vector<128x128xf32>
    %26 = vector.broadcast %0 : vector<1x128xf32> to vector<128x128xf32>
    %27 = arith.mulf %25, %26 : vector<128x128xf32>
    %28 = vector.broadcast %1 : vector<1x128xf32> to vector<128x128xf32>
    %29 = arith.addf %27, %28 : vector<128x128xf32>
    %30 = arith.truncf %29 : vector<128x128xf32> to vector<128x128xbf16>
    %cst_18 = arith.constant dense<0.000000e+00> : vector<256x128xf32>
    %31 = tpu.matmul %2, %30, %cst_18 {dimension_numbers = #tpu.dot_dimension_numbers<[1], [0], [0], [1], [0, 0, 1, 1], [], []>} : vector<256x128xbf16>, vector<128x128xbf16>, vector<256x128xf32> -> vector<256x128xf32>
    %32 = arith.addf %31, %3 : vector<256x128xf32>
    %33 = arith.mulf %32, %32 : vector<256x128xf32>
    %34 = arith.mulf %32, %33 : vector<256x128xf32>
    %cst_19 = arith.constant 4.471500e-02 : f32
    %35 = vector.broadcast %cst_19 : f32 to vector<256x128xf32>
    %36 = arith.mulf %35, %34 : vector<256x128xf32>
    %37 = arith.addf %32, %36 : vector<256x128xf32>
    %cst_20 = arith.constant 0.797884583 : f32
    %38 = vector.broadcast %cst_20 : f32 to vector<256x128xf32>
    %39 = arith.mulf %38, %37 : vector<256x128xf32>
    %40 = math.tanh %39 : vector<256x128xf32>
    %cst_21 = arith.constant 1.000000e+00 : f32
    %41 = vector.broadcast %cst_21 : f32 to vector<256x128xf32>
    %42 = arith.addf %41, %40 : vector<256x128xf32>
    %cst_22 = arith.constant 5.000000e-01 : f32
    %43 = vector.broadcast %cst_22 : f32 to vector<256x128xf32>
    %44 = arith.mulf %43, %42 : vector<256x128xf32>
    %45 = arith.mulf %32, %44 : vector<256x128xf32>
    %46 = arith.truncf %45 : vector<256x128xf32> to vector<256x128xbf16>
    %cst_23 = arith.constant dense<0.000000e+00> : vector<128x128xf32>
    %47 = tpu.matmul %4, %46, %cst_23 {dimension_numbers = #tpu.dot_dimension_numbers<[1], [0], [0], [1], [0, 0, 1, 1], [], []>} : vector<128x256xbf16>, vector<256x128xbf16>, vector<128x128xf32> -> vector<128x128xf32>
    %48 = arith.addf %47, %5 : vector<128x128xf32>
    %49 = arith.addf %7, %48 : vector<128x128xf32>
    %c0_24 = arith.constant 0 : index
    %c0_25 = arith.constant 0 : index
    %50 = vector.load %arg13[%c0_24, %c0_25] : memref<256x128xf32, #tpu.memory_space<vmem>>, vector<128x128xf32>
    tpu.vector_store %arg13[%c0_24, %c0_25], %49 {strides = array<i32>} : memref<256x128xf32, #tpu.memory_space<vmem>>, vector<128x128xf32>,
    %c16 = arith.constant 16 : index
    %c0_26 = arith.constant 0 : index
    %c0_27 = arith.constant 0 : index
    %51 = vector.load %arg1[%c16, %c0_26, %c0_27] : memref<32x8x128xf32, #tpu.memory_space<vmem>>, vector<16x8x128xf32>
    %52 = vector.shape_cast %51 : vector<16x8x128xf32> to vector<128x128xf32>
    %cst_28 = arith.constant dense<0.000000e+00> : vector<128xf32>
    %53 = vector.multi_reduction <add>, %52, %cst_28 [1] : vector<128x128xf32> to vector<128xf32>
    %54 = vector.shape_cast %53 : vector<128xf32> to vector<128x1xf32>
    %cst_29 = arith.constant 1.280000e+02 : f32
    %55 = vector.broadcast %cst_29 : f32 to vector<128x1xf32>
    %56 = arith.divf %54, %55 : vector<128x1xf32>
    %57 = arith.mulf %52, %52 : vector<128x128xf32>
    %cst_30 = arith.constant dense<0.000000e+00> : vector<128xf32>
    %58 = vector.multi_reduction <add>, %57, %cst_30 [1] : vector<128x128xf32> to vector<128xf32>
    %59 = vector.shape_cast %58 : vector<128xf32> to vector<128x1xf32>
    %cst_31 = arith.constant 1.280000e+02 : f32
    %60 = vector.broadcast %cst_31 : f32 to vector<128x1xf32>
    %61 = arith.divf %59, %60 : vector<128x1xf32>
    %62 = arith.mulf %56, %56 : vector<128x1xf32>
    %63 = arith.subf %61, %62 : vector<128x1xf32>
    %64 = vector.broadcast %56 : vector<128x1xf32> to vector<128x128xf32>
    %65 = arith.subf %52, %64 : vector<128x128xf32>
    %cst_32 = arith.constant 9.99999974E-6 : f32
    %66 = vector.broadcast %cst_32 : f32 to vector<128x1xf32>
    %67 = arith.addf %63, %66 : vector<128x1xf32>
    %68 = math.rsqrt %67 : vector<128x1xf32>
    %69 = vector.broadcast %68 : vector<128x1xf32> to vector<128x128xf32>
    %70 = arith.mulf %65, %69 : vector<128x128xf32>
    %71 = vector.broadcast %0 : vector<1x128xf32> to vector<128x128xf32>
    %72 = arith.mulf %70, %71 : vector<128x128xf32>
    %73 = vector.broadcast %1 : vector<1x128xf32> to vector<128x128xf32>
    %74 = arith.addf %72, %73 : vector<128x128xf32>
    %75 = arith.truncf %74 : vector<128x128xf32> to vector<128x128xbf16>
    %cst_33 = arith.constant dense<0.000000e+00> : vector<256x128xf32>
    %76 = tpu.matmul %2, %75, %cst_33 {dimension_numbers = #tpu.dot_dimension_numbers<[1], [0], [0], [1], [0, 0, 1, 1], [], []>} : vector<256x128xbf16>, vector<128x128xbf16>, vector<256x128xf32> -> vector<256x128xf32>
    %77 = arith.addf %76, %3 : vector<256x128xf32>
    %78 = arith.mulf %77, %77 : vector<256x128xf32>
    %79 = arith.mulf %77, %78 : vector<256x128xf32>
    %cst_34 = arith.constant 4.471500e-02 : f32
    %80 = vector.broadcast %cst_34 : f32 to vector<256x128xf32>
    %81 = arith.mulf %80, %79 : vector<256x128xf32>
    %82 = arith.addf %77, %81 : vector<256x128xf32>
    %cst_35 = arith.constant 0.797884583 : f32
    %83 = vector.broadcast %cst_35 : f32 to vector<256x128xf32>
    %84 = arith.mulf %83, %82 : vector<256x128xf32>
    %85 = math.tanh %84 : vector<256x128xf32>
    %cst_36 = arith.constant 1.000000e+00 : f32
    %86 = vector.broadcast %cst_36 : f32 to vector<256x128xf32>
    %87 = arith.addf %86, %85 : vector<256x128xf32>
    %cst_37 = arith.constant 5.000000e-01 : f32
    %88 = vector.broadcast %cst_37 : f32 to vector<256x128xf32>
    %89 = arith.mulf %88, %87 : vector<256x128xf32>
    %90 = arith.mulf %77, %89 : vector<256x128xf32>
    %91 = arith.truncf %90 : vector<256x128xf32> to vector<256x128xbf16>
    %cst_38 = arith.constant dense<0.000000e+00> : vector<128x128xf32>
    %92 = tpu.matmul %4, %91, %cst_38 {dimension_numbers = #tpu.dot_dimension_numbers<[1], [0], [0], [1], [0, 0, 1, 1], [], []>} : vector<128x256xbf16>, vector<256x128xbf16>, vector<128x128xf32> -> vector<128x128xf32>
    %93 = arith.addf %92, %5 : vector<128x128xf32>
    %94 = arith.addf %52, %93 : vector<128x128xf32>
    %c128 = arith.constant 128 : index
    %c0_39 = arith.constant 0 : index
    %95 = vector.load %arg13[%c128, %c0_39] : memref<256x128xf32, #tpu.memory_space<vmem>>, vector<128x128xf32>
    tpu.vector_store %arg13[%c128, %c0_39], %94 {strides = array<i32>} : memref<256x128xf32, #tpu.memory_space<vmem>>, vector<128x128xf32>,
    %c0_40 = arith.constant 0 : index
    %c0_41 = arith.constant 0 : index
    %96 = vector.load %arg13[%c0_40, %c0_41] : memref<256x128xf32, #tpu.memory_space<vmem>>, vector<256x128xf32>
    %cst_42 = arith.constant dense<0.000000e+00> : vector<256xf32>
    %97 = vector.multi_reduction <add>, %96, %cst_42 [1] : vector<256x128xf32> to vector<256xf32>
    %98 = vector.shape_cast %97 : vector<256xf32> to vector<256x1xf32>
    %cst_43 = arith.constant 1.280000e+02 : f32
    %99 = vector.broadcast %cst_43 : f32 to vector<256x1xf32>
    %100 = arith.divf %98, %99 : vector<256x1xf32>
    %101 = arith.mulf %96, %96 : vector<256x128xf32>
    %cst_44 = arith.constant dense<0.000000e+00> : vector<256xf32>
    %102 = vector.multi_reduction <add>, %101, %cst_44 [1] : vector<256x128xf32> to vector<256xf32>
    %103 = vector.shape_cast %102 : vector<256xf32> to vector<256x1xf32>
    %cst_45 = arith.constant 1.280000e+02 : f32
    %104 = vector.broadcast %cst_45 : f32 to vector<256x1xf32>
    %105 = arith.divf %103, %104 : vector<256x1xf32>
    %106 = arith.mulf %100, %100 : vector<256x1xf32>
    %107 = arith.subf %105, %106 : vector<256x1xf32>
    %108 = vector.broadcast %100 : vector<256x1xf32> to vector<256x128xf32>
    %109 = arith.subf %96, %108 : vector<256x128xf32>
    %cst_46 = arith.constant 9.99999974E-6 : f32
    %110 = vector.broadcast %cst_46 : f32 to vector<256x1xf32>
    %111 = arith.addf %107, %110 : vector<256x1xf32>
    %112 = math.rsqrt %111 : vector<256x1xf32>
    %113 = vector.broadcast %112 : vector<256x1xf32> to vector<256x128xf32>
    %114 = arith.mulf %109, %113 : vector<256x128xf32>
    %115 = vector.broadcast %0 : vector<1x128xf32> to vector<256x128xf32>
    %116 = arith.mulf %114, %115 : vector<256x128xf32>
    %117 = vector.broadcast %1 : vector<1x128xf32> to vector<256x128xf32>
    %118 = arith.addf %116, %117 : vector<256x128xf32>
    %119 = arith.truncf %118 : vector<256x128xf32> to vector<256x128xbf16>
    %c0_47 = arith.constant 0 : index
    %c0_48 = arith.constant 0 : index
    %120 = vector.load %arg8[%c0_47, %c0_48] : memref<128x256xbf16, #tpu.memory_space<vmem>>, vector<128x256xbf16>
    %cst_49 = arith.constant dense<0.000000e+00> : vector<256x256xf32>
    %121 = tpu.matmul %119, %120, %cst_49 {dimension_numbers = #tpu.dot_dimension_numbers<[1], [0], [0], [1], [0, 0, 1, 1], [], []>} : vector<256x128xbf16>, vector<128x256xbf16>, vector<256x256xf32> -> vector<256x256xf32>
    %c0_50 = arith.constant 0 : index
    %c0_51 = arith.constant 0 : index
    %122 = vector.load %arg9[%c0_50, %c0_51] : memref<1x256xf32, #tpu.memory_space<vmem>>, vector<1x256xf32>
    %123 = vector.broadcast %122 : vector<1x256xf32> to vector<256x256xf32>
    %124 = arith.addf %121, %123 : vector<256x256xf32>
    %125 = arith.mulf %124, %124 : vector<256x256xf32>
    %126 = arith.mulf %124, %125 : vector<256x256xf32>
    %cst_52 = arith.constant 4.471500e-02 : f32
    %127 = vector.broadcast %cst_52 : f32 to vector<256x256xf32>
    %128 = arith.mulf %127, %126 : vector<256x256xf32>
    %129 = arith.addf %124, %128 : vector<256x256xf32>
    %cst_53 = arith.constant 0.797884583 : f32
    %130 = vector.broadcast %cst_53 : f32 to vector<256x256xf32>
    %131 = arith.mulf %130, %129 : vector<256x256xf32>
    %132 = math.tanh %131 : vector<256x256xf32>
    %cst_54 = arith.constant 1.000000e+00 : f32
    %133 = vector.broadcast %cst_54 : f32 to vector<256x256xf32>
    %134 = arith.addf %133, %132 : vector<256x256xf32>
    %cst_55 = arith.constant 5.000000e-01 : f32
    %135 = vector.broadcast %cst_55 : f32 to vector<256x256xf32>
    %136 = arith.mulf %135, %134 : vector<256x256xf32>
    %137 = arith.mulf %124, %136 : vector<256x256xf32>
    %138 = arith.truncf %137 : vector<256x256xf32> to vector<256x256xbf16>
    %c0_56 = arith.constant 0 : index
    %c0_57 = arith.constant 0 : index
    %139 = vector.load %arg10[%c0_56, %c0_57] : memref<256x128xbf16, #tpu.memory_space<vmem>>, vector<256x128xbf16>
    %cst_58 = arith.constant dense<0.000000e+00> : vector<256x128xf32>
    %140 = tpu.matmul %138, %139, %cst_58 {dimension_numbers = #tpu.dot_dimension_numbers<[1], [0], [0], [1], [0, 0, 1, 1], [], []>} : vector<256x256xbf16>, vector<256x128xbf16>, vector<256x128xf32> -> vector<256x128xf32>
    %c0_59 = arith.constant 0 : index
    %c0_60 = arith.constant 0 : index
    %141 = vector.load %arg11[%c0_59, %c0_60] : memref<1x128xf32, #tpu.memory_space<vmem>>, vector<1x128xf32>
    %142 = vector.broadcast %141 : vector<1x128xf32> to vector<256x128xf32>
    %143 = arith.addf %140, %142 : vector<256x128xf32>
    %144 = arith.addf %96, %143 : vector<256x128xf32>
    %145 = vector.shape_cast %144 : vector<256x128xf32> to vector<32x8x128xf32>
    %c0_61 = arith.constant 0 : index
    %c0_62 = arith.constant 0 : index
    %c0_63 = arith.constant 0 : index
    %146 = vector.load %arg12[%c0_61, %c0_62, %c0_63] : memref<32x8x128xf32, #tpu.memory_space<vmem>>, vector<32x8x128xf32>
    tpu.vector_store %arg12[%c0_61, %c0_62, %c0_63], %145 {strides = array<i32>} : memref<32x8x128xf32, #tpu.memory_space<vmem>>, vector<32x8x128xf32>,
    return
  }
  func.func @transform_0(%arg0: i32) -> (i32, i32, i32) {
    %c0_i32 = arith.constant 0 : i32
    %c0_i32_0 = arith.constant 0 : i32
    %c0_i32_1 = arith.constant 0 : i32
    return %arg0, %c0_i32, %c0_i32_0 : i32, i32, i32
  }
  func.func @transform_1(%arg0: i32) -> (i32, i32) {
    %c0_i32 = arith.constant 0 : i32
    %c0_i32_0 = arith.constant 0 : i32
    %c0_i32_1 = arith.constant 0 : i32
    return %c0_i32, %c0_i32_0 : i32, i32
  }
  func.func @transform_2(%arg0: i32) -> (i32, i32) {
    %c0_i32 = arith.constant 0 : i32
    %c0_i32_0 = arith.constant 0 : i32
    %c0_i32_1 = arith.constant 0 : i32
    return %c0_i32, %c0_i32_0 : i32, i32
  }
  func.func @transform_3(%arg0: i32) -> (i32, i32) {
    %c0_i32 = arith.constant 0 : i32
    %c0_i32_0 = arith.constant 0 : i32
    %c0_i32_1 = arith.constant 0 : i32
    return %c0_i32, %c0_i32_0 : i32, i32
  }
  func.func @transform_4(%arg0: i32) -> (i32, i32) {
    %c0_i32 = arith.constant 0 : i32
    %c0_i32_0 = arith.constant 0 : i32
    %c0_i32_1 = arith.constant 0 : i32
    return %c0_i32, %c0_i32_0 : i32, i32
  }
  func.func @transform_5(%arg0: i32) -> (i32, i32) {
    %c0_i32 = arith.constant 0 : i32
    %c0_i32_0 = arith.constant 0 : i32
    %c0_i32_1 = arith.constant 0 : i32
    return %c0_i32, %c0_i32_0 : i32, i32
  }
  func.func @transform_6(%arg0: i32) -> (i32, i32) {
    %c0_i32 = arith.constant 0 : i32
    %c0_i32_0 = arith.constant 0 : i32
    %c0_i32_1 = arith.constant 0 : i32
    return %c0_i32, %c0_i32_0 : i32, i32
  }
  func.func @transform_7(%arg0: i32) -> (i32, i32) {
    %c0_i32 = arith.constant 0 : i32
    %c0_i32_0 = arith.constant 0 : i32
    %c0_i32_1 = arith.constant 0 : i32
    return %c0_i32, %c0_i32_0 : i32, i32
  }
  func.func @transform_8(%arg0: i32) -> (i32, i32) {
    %c0_i32 = arith.constant 0 : i32
    %c0_i32_0 = arith.constant 0 : i32
    %c0_i32_1 = arith.constant 0 : i32
    return %c0_i32, %c0_i32_0 : i32, i32
  }
  func.func @transform_9(%arg0: i32) -> (i32, i32) {
    %c0_i32 = arith.constant 0 : i32
    %c0_i32_0 = arith.constant 0 : i32
    %c0_i32_1 = arith.constant 0 : i32
    return %c0_i32, %c0_i32_0 : i32, i32
  }
  func.func @transform_10(%arg0: i32) -> (i32, i32) {
    %c0_i32 = arith.constant 0 : i32
    %c0_i32_0 = arith.constant 0 : i32
    %c0_i32_1 = arith.constant 0 : i32
    return %c0_i32, %c0_i32_0 : i32, i32
  }
  func.func @transform_11(%arg0: i32) -> (i32, i32, i32) {
    %c0_i32 = arith.constant 0 : i32
    %c0_i32_0 = arith.constant 0 : i32
    %c0_i32_1 = arith.constant 0 : i32
    return %arg0, %c0_i32, %c0_i32_0 : i32, i32, i32
  }
}

</mosaic_0001>

<llo_original>
// kernel: tpu_custom_call.1
$region0: #{tpu_custom_call.1}
  #allocation0 [shape = 'u32[]', space=smem, size = 0x4, offset = 0x4, fixed_abs, tag = 'smem constant byte address 0x4 - core index']
  #allocation1 [shape = 'u32[72,128]{1,0:T(1,128)}', space=vmem, size = 0x9000, scoped, tag = 'internal scratch']
  #allocation2 [shape = 'f32[256,128]{1,0:T(8,128)}', space=vmem, size = 0x20000, scoped, tag = 'scratch operand']
  %s0 = inlined_call_operand.hbm [shape: f32[64,8,128], index: 0, kind: input, shape index: {}]
  %s1 = inlined_call_operand.hbm [shape: f32[1,128], index: 1, kind: input, shape index: {}]
  %s2 = inlined_call_operand.vmem [shape: f32[1,128], index: 2, kind: input, shape index: {}]
  %s3 = inlined_call_operand.hbm [shape: bf16[256,128], index: 3, kind: input, shape index: {}]
  %s4 = inlined_call_operand.hbm [shape: f32[256,128], index: 4, kind: input, shape index: {}]
  %s5 = inlined_call_operand.hbm [shape: bf16[128,256], index: 5, kind: input, shape index: {}]
  %s6 = inlined_call_operand.hbm [shape: f32[128,128], index: 6, kind: input, shape index: {}]
  %s7 = inlined_call_operand.hbm [shape: bf16[128,256], index: 7, kind: input, shape index: {}]
  %s8 = inlined_call_operand.vmem [shape: f32[1,256], index: 8, kind: input, shape index: {}]
  %s9 = inlined_call_operand.hbm [shape: bf16[256,128], index: 9, kind: input, shape index: {}]
  %s10 = inlined_call_operand.vmem [shape: f32[1,128], index: 10, kind: input, shape index: {}]
  %s11 = inlined_call_operand.hbm [shape: f32[64,8,128], index: 11, kind: output, shape index: {}]
  %s12 = sld [smem:[#allocation0]]
  $region109: #{tpu_custom_call.1} parent=0
    _
  %s14 = ssub.s32 1, %s12
  %s15 = scalar_select 0, %s14, %s12
  $region1: #{tpu_custom_call.1} parent=0
    #allocation3 [shape = 'u8[262144]{0}', space=vmem, size = 0x40000, scoped, tag = 'input window, operand 0']
    #allocation4 [shape = 's32[2]{0}', space=sflag, size = 0x8, scoped, tag = 'scoped memory for tpu_custom_call.1']
    #allocation5 [shape = 's32[2]{0}', space=sflag, size = 0x8, scoped, tag = 'scoped memory for tpu_custom_call.1']
    #allocation6 [shape = 'u8[512]{0}', space=vmem, size = 0x400, scoped, tag = 'input window, operand 1, single buffered']
    #allocation7 [shape = 's32[1]{0}', space=sflag, size = 0x4, scoped, tag = 'scoped memory for tpu_custom_call.1']
    #allocation8 [shape = 'u8[65536]{0}', space=vmem, size = 0x10000, scoped, tag = 'input window, operand 3, single buffered']
    #allocation9 [shape = 'u8[131072]{0}', space=vmem, size = 0x20000, scoped, tag = 'input window, operand 4, single buffered']
    #allocation10 [shape = 's32[1]{0}', space=sflag, size = 0x4, scoped, tag = 'scoped memory for tpu_custom_call.1']
    #allocation11 [shape = 'u8[65536]{0}', space=vmem, size = 0x10000, scoped, tag = 'input window, operand 5, single buffered']
    #allocation12 [shape = 'u8[65536]{0}', space=vmem, size = 0x10000, scoped, tag = 'input window, operand 6, single buffered']
    #allocation13 [shape = 's32[1]{0}', space=sflag, size = 0x4, scoped, tag = 'scoped memory for tpu_custom_call.1']
    #allocation14 [shape = 'u8[65536]{0}', space=vmem, size = 0x10000, scoped, tag = 'input window, operand 7, single buffered']
    #allocation15 [shape = 'u8[65536]{0}', space=vmem, size = 0x10000, scoped, tag = 'input window, operand 9, single buffered']
    #allocation16 [shape = 's32[1]{0}', space=sflag, size = 0x4, scoped, tag = 'scoped memory for tpu_custom_call.1']
    #allocation17 [shape = 'u8[262144]{0}', space=vmem, size = 0x40000, scoped, tag = 'output window, operand 0']
    %16 = vsyncpa [#allocation4], 0
    %s17 = scalar_lea.sflag [#allocation4], 1
    %18 = vsyncpa %s17, 0
    %19 = vsyncpa [#allocation7], 0
    %20 = vsyncpa [#allocation10], 0
    %21 = vsyncpa [#allocation13], 0
    %22 = vsyncpa [#allocation16], 0
    %23 = vsyncpa [#allocation5], 0
    %s24 = scalar_lea.sflag [#allocation5], 1
    %25 = vsyncpa %s24, 0
    loop: start=0, step=1, limit=4
    $region2: #{tpu_custom_call.1} parent=1 // loop_pre_header
      _
    $region3: #{tpu_custom_call.1} parent=1 // loop_header
      %s27 = sphi 0, %s31
      %p28 = scmp.ge.s32.totalorder %s27, 4
      %s37 = sphi 0, %s39
      %s40 = sphi 0, %s37
      %s41 = sphi 0, %s40
      %s57 = sphi 0, %s41
      %s61 = sphi 0, %s61
      %s63 = sphi 0, %s61
      %s64 = sphi 0, %s63
      %s78 = sphi 0, %s64
      %s82 = sphi 0, %s82
      %s84 = sphi 0, %s82
      %s85 = sphi 0, %s84
      %s99 = sphi 0, %s85
      %s103 = sphi 0, %s103
      %s105 = sphi 0, %s103
      %s106 = sphi 0, %s105
      %s120 = sphi 0, %s106
      %s124 = sphi 0, %s124
      %s126 = sphi 0, %s124
      %s127 = sphi 0, %s126
      %s141 = sphi 0, %s127
      %s145 = sphi 0, %s145
      %s147 = sphi 0, %s145
      %s148 = sphi 0, %s147
      %s162 = sphi 0, %s148
      %s166 = sphi 0, %s166
      %s168 = sphi 0, %s166
      %s169 = sphi 0, %s168
      %s183 = sphi 0, %s169
      %s187 = sphi 0, %s187
      %s189 = sphi 0, %s187
      %s190 = sphi 0, %s189
      %s204 = sphi 0, %s190
      %s208 = sphi 0, %s208
      %s210 = sphi 0, %s208
      %s211 = sphi 0, %s210
      %s225 = sphi 0, %s211
      %s229 = sphi 0, %s229
      %s231 = sphi 0, %s229
      %s232 = sphi 0, %s231
      %s246 = sphi 0, %s232
      %s250 = sphi 0, %s250
      %s252 = sphi 0, %s250
      %s253 = sphi 0, %s252
      %s267 = sphi 0, %s253
      %s273 = sphi 0, %s275
      %s276 = sphi 0, %s273
      %s277 = sphi 0, %s276
      %s293 = sphi 0, %s277
    $region4: #{tpu_custom_call.1} parent=1 // loop_header_branch
      %30 = sbr.rel (%p28) target = $region8
    $region5: #{tpu_custom_call.1} parent=1 // loop_body
      %s32 = ssub.s32 %s27, 1
      %s33 = ssub.s32 %s27, 2
      %s34 = sadd.s32 %s27, 1
      %s35 = ssub.s32 %s27, %s34
      %p36 = scmp.eq.s32.totalorder %s35, 0
      %s38 = sadd.s32 %s37, 1
      %s39 = scalar_select %p36, %s37, %s38
      %p42 = pneg %p36
      %p43 = scmp.eq.s32.totalorder %s27, 1
      %p44 = por %p42, %p43
      %p45 = scmp.ne.s32.totalorder %s37, %s40
      %p46 = scmp.eq.s32.totalorder %s27, 0
      %p47 = por %p45, %p46
      %p48 = scmp.ne.s32.totalorder %s37, %s40
      %p49 = scmp.eq.s32.totalorder %s32, 1
      %p50 = por %p48, %p49
      %p51 = scmp.ne.s32.totalorder %s40, %s41
      %p52 = scmp.eq.s32.totalorder %s32, 0
      %p53 = por %p51, %p52
      %p54 = scmp.ne.s32.totalorder %s40, %s41
      %p55 = scmp.eq.s32.totalorder %s33, 1
      %p56 = por %p54, %p55
      %p58 = scmp.ne.s32.totalorder %s41, %s57
      %p59 = scmp.eq.s32.totalorder %s33, 0
      %p60 = por %p58, %p59
      %s62 = sadd.s32 %s61, 1
      %p65 = scmp.eq.s32.totalorder %s27, 1
      %p66 = scmp.ne.s32.totalorder %s61, %s63
      %p67 = scmp.eq.s32.totalorder %s27, 0
      %p68 = por %p66, %p67
      %p69 = scmp.ne.s32.totalorder %s61, %s63
      %p70 = scmp.eq.s32.totalorder %s32, 1
      %p71 = por %p69, %p70
      %p72 = scmp.ne.s32.totalorder %s63, %s64
      %p73 = scmp.eq.s32.totalorder %s32, 0
      %p74 = por %p72, %p73
      %p75 = scmp.ne.s32.totalorder %s63, %s64
      %p76 = scmp.eq.s32.totalorder %s33, 1
      %p77 = por %p75, %p76
      %p79 = scmp.ne.s32.totalorder %s64, %s78
      %p80 = scmp.eq.s32.totalorder %s33, 0
      %p81 = por %p79, %p80
      %s83 = sadd.s32 %s82, 1
      %p86 = scmp.eq.s32.totalorder %s27, 1
      %p87 = scmp.ne.s32.totalorder %s82, %s84
      %p88 = scmp.eq.s32.totalorder %s27, 0
      %p89 = por %p87, %p88
      %p90 = scmp.ne.s32.totalorder %s82, %s84
      %p91 = scmp.eq.s32.totalorder %s32, 1
      %p92 = por %p90, %p91
      %p93 = scmp.ne.s32.totalorder %s84, %s85
      %p94 = scmp.eq.s32.totalorder %s32, 0
      %p95 = por %p93, %p94
      %p96 = scmp.ne.s32.totalorder %s84, %s85
      %p97 = scmp.eq.s32.totalorder %s33, 1
      %p98 = por %p96, %p97
      %p100 = scmp.ne.s32.totalorder %s85, %s99
      %p101 = scmp.eq.s32.totalorder %s33, 0
      %p102 = por %p100, %p101
      %s104 = sadd.s32 %s103, 1
      %p107 = scmp.eq.s32.totalorder %s27, 1
      %p108 = scmp.ne.s32.totalorder %s103, %s105
      %p109 = scmp.eq.s32.totalorder %s27, 0
      %p110 = por %p108, %p109
      %p111 = scmp.ne.s32.totalorder %s103, %s105
      %p112 = scmp.eq.s32.totalorder %s32, 1
      %p113 = por %p111, %p112
      %p114 = scmp.ne.s32.totalorder %s105, %s106
      %p115 = scmp.eq.s32.totalorder %s32, 0
      %p116 = por %p114, %p115
      %p117 = scmp.ne.s32.totalorder %s105, %s106
      %p118 = scmp.eq.s32.totalorder %s33, 1
      %p119 = por %p117, %p118
      %p121 = scmp.ne.s32.totalorder %s106, %s120
      %p122 = scmp.eq.s32.totalorder %s33, 0
      %p123 = por %p121, %p122
      %s125 = sadd.s32 %s124, 1
      %p128 = scmp.eq.s32.totalorder %s27, 1
      %p129 = scmp.ne.s32.totalorder %s124, %s126
      %p130 = scmp.eq.s32.totalorder %s27, 0
      %p131 = por %p129, %p130
      %p132 = scmp.ne.s32.totalorder %s124, %s126
      %p133 = scmp.eq.s32.totalorder %s32, 1
      %p134 = por %p132, %p133
      %p135 = scmp.ne.s32.totalorder %s126, %s127
      %p136 = scmp.eq.s32.totalorder %s32, 0
      %p137 = por %p135, %p136
      %p138 = scmp.ne.s32.totalorder %s126, %s127
      %p139 = scmp.eq.s32.totalorder %s33, 1
      %p140 = por %p138, %p139
      %p142 = scmp.ne.s32.totalorder %s127, %s141
      %p143 = scmp.eq.s32.totalorder %s33, 0
      %p144 = por %p142, %p143
      %s146 = sadd.s32 %s145, 1
      %p149 = scmp.eq.s32.totalorder %s27, 1
      %p150 = scmp.ne.s32.totalorder %s145, %s147
      %p151 = scmp.eq.s32.totalorder %s27, 0
      %p152 = por %p150, %p151
      %p153 = scmp.ne.s32.totalorder %s145, %s147
      %p154 = scmp.eq.s32.totalorder %s32, 1
      %p155 = por %p153, %p154
      %p156 = scmp.ne.s32.totalorder %s147, %s148
      %p157 = scmp.eq.s32.totalorder %s32, 0
      %p158 = por %p156, %p157
      %p159 = scmp.ne.s32.totalorder %s147, %s148
      %p160 = scmp.eq.s32.totalorder %s33, 1
      %p161 = por %p159, %p160
      %p163 = scmp.ne.s32.totalorder %s148, %s162
      %p164 = scmp.eq.s32.totalorder %s33, 0
      %p165 = por %p163, %p164
      %s167 = sadd.s32 %s166, 1
      %p170 = scmp.eq.s32.totalorder %s27, 1
      %p171 = scmp.ne.s32.totalorder %s166, %s168
      %p172 = scmp.eq.s32.totalorder %s27, 0
      %p173 = por %p171, %p172
      %p174 = scmp.ne.s32.totalorder %s166, %s168
      %p175 = scmp.eq.s32.totalorder %s32, 1
      %p176 = por %p174, %p175
      %p177 = scmp.ne.s32.totalorder %s168, %s169
      %p178 = scmp.eq.s32.totalorder %s32, 0
      %p179 = por %p177, %p178
      %p180 = scmp.ne.s32.totalorder %s168, %s169
      %p181 = scmp.eq.s32.totalorder %s33, 1
      %p182 = por %p180, %p181
      %p184 = scmp.ne.s32.totalorder %s169, %s183
      %p185 = scmp.eq.s32.totalorder %s33, 0
      %p186 = por %p184, %p185
      %s188 = sadd.s32 %s187, 1
      %p191 = scmp.eq.s32.totalorder %s27, 1
      %p192 = scmp.ne.s32.totalorder %s187, %s189
      %p193 = scmp.eq.s32.totalorder %s27, 0
      %p194 = por %p192, %p193
      %p195 = scmp.ne.s32.totalorder %s187, %s189
      %p196 = scmp.eq.s32.totalorder %s32, 1
      %p197 = por %p195, %p196
      %p198 = scmp.ne.s32.totalorder %s189, %s190
      %p199 = scmp.eq.s32.totalorder %s32, 0
      %p200 = por %p198, %p199
      %p201 = scmp.ne.s32.totalorder %s189, %s190
      %p202 = scmp.eq.s32.totalorder %s33, 1
      %p203 = por %p201, %p202
      %p205 = scmp.ne.s32.totalorder %s190, %s204
      %p206 = scmp.eq.s32.totalorder %s33, 0
      %p207 = por %p205, %p206
      %s209 = sadd.s32 %s208, 1
      %p212 = scmp.eq.s32.totalorder %s27, 1
      %p213 = scmp.ne.s32.totalorder %s208, %s210
      %p214 = scmp.eq.s32.totalorder %s27, 0
      %p215 = por %p213, %p214
      %p216 = scmp.ne.s32.totalorder %s208, %s210
      %p217 = scmp.eq.s32.totalorder %s32, 1
      %p218 = por %p216, %p217
      %p219 = scmp.ne.s32.totalorder %s210, %s211
      %p220 = scmp.eq.s32.totalorder %s32, 0
      %p221 = por %p219, %p220
      %p222 = scmp.ne.s32.totalorder %s210, %s211
      %p223 = scmp.eq.s32.totalorder %s33, 1
      %p224 = por %p222, %p223
      %p226 = scmp.ne.s32.totalorder %s211, %s225
      %p227 = scmp.eq.s32.totalorder %s33, 0
      %p228 = por %p226, %p227
      %s230 = sadd.s32 %s229, 1
      %p233 = scmp.eq.s32.totalorder %s27, 1
      %p234 = scmp.ne.s32.totalorder %s229, %s231
      %p235 = scmp.eq.s32.totalorder %s27, 0
      %p236 = por %p234, %p235
      %p237 = scmp.ne.s32.totalorder %s229, %s231
      %p238 = scmp.eq.s32.totalorder %s32, 1
      %p239 = por %p237, %p238
      %p240 = scmp.ne.s32.totalorder %s231, %s232
      %p241 = scmp.eq.s32.totalorder %s32, 0
      %p242 = por %p240, %p241
      %p243 = scmp.ne.s32.totalorder %s231, %s232
      %p244 = scmp.eq.s32.totalorder %s33, 1
      %p245 = por %p243, %p244
      %p247 = scmp.ne.s32.totalorder %s232, %s246
      %p248 = scmp.eq.s32.totalorder %s33, 0
      %p249 = por %p247, %p248
      %s251 = sadd.s32 %s250, 1
      %p254 = scmp.eq.s32.totalorder %s27, 1
      %p255 = scmp.ne.s32.totalorder %s250, %s252
      %p256 = scmp.eq.s32.totalorder %s27, 0
      %p257 = por %p255, %p256
      %p258 = scmp.ne.s32.totalorder %s250, %s252
      %p259 = scmp.eq.s32.totalorder %s32, 1
      %p260 = por %p258, %p259
      %p261 = scmp.ne.s32.totalorder %s252, %s253
      %p262 = scmp.eq.s32.totalorder %s32, 0
      %p263 = por %p261, %p262
      %p264 = scmp.ne.s32.totalorder %s252, %s253
      %p265 = scmp.eq.s32.totalorder %s33, 1
      %p266 = por %p264, %p265
      %p268 = scmp.ne.s32.totalorder %s253, %s267
      %p269 = scmp.eq.s32.totalorder %s33, 0
      %p270 = por %p268, %p269
      %s271 = ssub.s32 %s27, %s34
      %p272 = scmp.eq.s32.totalorder %s271, 0
      %s274 = sadd.s32 %s273, 1
      %s275 = scalar_select %p272, %s273, %s274
      %p278 = pneg %p272
      %p279 = scmp.eq.s32.totalorder %s27, 1
      %p280 = por %p278, %p279
      %p281 = scmp.ne.s32.totalorder %s273, %s276
      %p282 = scmp.eq.s32.totalorder %s27, 0
      %p283 = por %p281, %p282
      %p284 = scmp.ne.s32.totalorder %s273, %s276
      %p285 = scmp.eq.s32.totalorder %s32, 1
      %p286 = por %p284, %p285
      %p287 = scmp.ne.s32.totalorder %s276, %s277
      %p288 = scmp.eq.s32.totalorder %s32, 0
      %p289 = por %p287, %p288
      %p290 = scmp.ne.s32.totalorder %s276, %s277
      %p291 = scmp.eq.s32.totalorder %s33, 1
      %p292 = por %p290, %p291
      %p294 = scmp.ne.s32.totalorder %s277, %s293
      %p295 = scmp.eq.s32.totalorder %s33, 0
      %p296 = por %p294, %p295
      %p297 = scmp.le.s32.totalorder 1, %s27
      %p298 = scmp.lt.s32.totalorder %s27, 3
      %p299 = pnand %p297, %p298
      %p300 = pneg %p299
      // Predicated region
      $region9: #{tpu_custom_call.1} parent=5 // pred_check
        _
      $region10: #{tpu_custom_call.1} parent=5 // pred_check_branch
        %302 = sbr.rel (%p299) target = $region12
      $region11: #{tpu_custom_call.1} parent=5 // pred_region
        %s303 = ssub.s32 %s27, 1
        // Predicated region
        $region13: #{tpu_custom_call.1} parent=11 // pred_check
          %p304 = pneg %p74
        $region14: #{tpu_custom_call.1} parent=11 // pred_check_branch
          %306 = sbr.rel (%p304) target = $region16
        $region15: #{tpu_custom_call.1} parent=11 // pred_region
          %308 = vsyncadd [#allocation7], 0
          %s310 = sshll.u32 %s1, 4
          %s311 = int_to_ptr.hbm [resolvable:$true] %s310
          %s312 = sshll.u32 [#allocation6], 4
          %s313 = int_to_ptr.vmem [resolvable:$true] %s312
          %315 = dma.hbm_to_vmem [thread:$0]  %s311, 16, %s313, [#allocation7]
        $region16: #{tpu_custom_call.1} parent=11 // pred_fallthru
          _
        // Predicated region
        $region17: #{tpu_custom_call.1} parent=11 // pred_check
          %p316 = pneg %p95
        $region18: #{tpu_custom_call.1} parent=11 // pred_check_branch
          %318 = sbr.rel (%p316) target = $region20
        $region19: #{tpu_custom_call.1} parent=11 // pred_region
          _
        $region20: #{tpu_custom_call.1} parent=11 // pred_fallthru
          _
        // Predicated region
        $region21: #{tpu_custom_call.1} parent=11 // pred_check
          %p319 = pneg %p116
        $region22: #{tpu_custom_call.1} parent=11 // pred_check_branch
          %321 = sbr.rel (%p319) target = $region24
        $region23: #{tpu_custom_call.1} parent=11 // pred_region
          %323 = vsyncadd [#allocation7], 0
          %s324 = sshll.u32 %s3, 4
          %s325 = int_to_ptr.hbm [resolvable:$true] %s324
          %s326 = sshll.u32 [#allocation8], 4
          %s327 = int_to_ptr.vmem [resolvable:$true] %s326
          %332 = dma.hbm_to_vmem [thread:$0]  %s325, 2048, %s327, [#allocation7], 64, 64, 4
        $region24: #{tpu_custom_call.1} parent=11 // pred_fallthru
          _
        // Predicated region
        $region25: #{tpu_custom_call.1} parent=11 // pred_check
          %p333 = pneg %p137
        $region26: #{tpu_custom_call.1} parent=11 // pred_check_branch
          %335 = sbr.rel (%p333) target = $region28
        $region27: #{tpu_custom_call.1} parent=11 // pred_region
          %337 = vsyncadd [#allocation10], 0
          %s338 = sshll.u32 %s4, 4
          %s339 = int_to_ptr.hbm [resolvable:$true] %s338
          %s340 = sshll.u32 [#allocation9], 4
          %s341 = int_to_ptr.vmem [resolvable:$true] %s340
          %346 = dma.hbm_to_vmem [thread:$0]  %s339, 4096, %s341, [#allocation10], 128, 128, 8
        $region28: #{tpu_custom_call.1} parent=11 // pred_fallthru
          _
        // Predicated region
        $region29: #{tpu_custom_call.1} parent=11 // pred_check
          %p347 = pneg %p158
        $region30: #{tpu_custom_call.1} parent=11 // pred_check_branch
          %349 = sbr.rel (%p347) target = $region32
        $region31: #{tpu_custom_call.1} parent=11 // pred_region
          %351 = vsyncadd [#allocation10], 0
          %s352 = sshll.u32 %s5, 4
          %s353 = int_to_ptr.hbm [resolvable:$true] %s352
          %s354 = sshll.u32 [#allocation11], 4
          %s355 = int_to_ptr.vmem [resolvable:$true] %s354
          %360 = dma.hbm_to_vmem [thread:$0]  %s353, 2048, %s355, [#allocation10], 128, 128, 8
        $region32: #{tpu_custom_call.1} parent=11 // pred_fallthru
          _
        // Predicated region
        $region33: #{tpu_custom_call.1} parent=11 // pred_check
          %p361 = pneg %p179
        $region34: #{tpu_custom_call.1} parent=11 // pred_check_branch
          %363 = sbr.rel (%p361) target = $region36
        $region35: #{tpu_custom_call.1} parent=11 // pred_region
          %365 = vsyncadd [#allocation13], 0
          %s366 = sshll.u32 %s6, 4
          %s367 = int_to_ptr.hbm [resolvable:$true] %s366
          %s368 = sshll.u32 [#allocation12], 4
          %s369 = int_to_ptr.vmem [resolvable:$true] %s368
          %374 = dma.hbm_to_vmem [thread:$0]  %s367, 2048, %s369, [#allocation13], 128, 128, 8
        $region36: #{tpu_custom_call.1} parent=11 // pred_fallthru
          _
        // Predicated region
        $region37: #{tpu_custom_call.1} parent=11 // pred_check
          %p375 = pneg %p200
        $region38: #{tpu_custom_call.1} parent=11 // pred_check_branch
          %377 = sbr.rel (%p375) target = $region40
        $region39: #{tpu_custom_call.1} parent=11 // pred_region
          %379 = vsyncadd [#allocation13], 0
          %s380 = sshll.u32 %s7, 4
          %s381 = int_to_ptr.hbm [resolvable:$true] %s380
          %s382 = sshll.u32 [#allocation14], 4
          %s383 = int_to_ptr.vmem [resolvable:$true] %s382
          %388 = dma.hbm_to_vmem [thread:$0]  %s381, 2048, %s383, [#allocation13], 128, 128, 8
        $region40: #{tpu_custom_call.1} parent=11 // pred_fallthru
          _
        // Predicated region
        $region41: #{tpu_custom_call.1} parent=11 // pred_check
          %p389 = pneg %p221
        $region42: #{tpu_custom_call.1} parent=11 // pred_check_branch
          %391 = sbr.rel (%p389) target = $region44
        $region43: #{tpu_custom_call.1} parent=11 // pred_region
          _
        $region44: #{tpu_custom_call.1} parent=11 // pred_fallthru
          _
        // Predicated region
        $region45: #{tpu_custom_call.1} parent=11 // pred_check
          %p392 = pneg %p242
        $region46: #{tpu_custom_call.1} parent=11 // pred_check_branch
          %394 = sbr.rel (%p392) target = $region48
        $region47: #{tpu_custom_call.1} parent=11 // pred_region
          %396 = vsyncadd [#allocation16], 0
          %s397 = sshll.u32 %s9, 4
          %s398 = int_to_ptr.hbm [resolvable:$true] %s397
          %s399 = sshll.u32 [#allocation15], 4
          %s400 = int_to_ptr.vmem [resolvable:$true] %s399
          %405 = dma.hbm_to_vmem [thread:$0]  %s398, 2048, %s400, [#allocation16], 64, 64, 4
        $region48: #{tpu_custom_call.1} parent=11 // pred_fallthru
          _
        // Predicated region
        $region49: #{tpu_custom_call.1} parent=11 // pred_check
          %p406 = pneg %p263
        $region50: #{tpu_custom_call.1} parent=11 // pred_check_branch
          %408 = sbr.rel (%p406) target = $region52
        $region51: #{tpu_custom_call.1} parent=11 // pred_region
          _
        $region52: #{tpu_custom_call.1} parent=11 // pred_fallthru
          _
      $region12: #{tpu_custom_call.1} parent=5 // pred_fallthru
        _
      %p409 = scmp.lt.s32.totalorder %s27, 2
      // Predicated region
      $region53: #{tpu_custom_call.1} parent=5 // pred_check
        %p410 = pneg %p409
      $region54: #{tpu_custom_call.1} parent=5 // pred_check_branch
        %412 = sbr.rel (%p410) target = $region56
      $region55: #{tpu_custom_call.1} parent=5 // pred_region
        // Predicated region
        $region57: #{tpu_custom_call.1} parent=55 // pred_check
          %p413 = pneg %p47
        $region58: #{tpu_custom_call.1} parent=55 // pred_check_branch
          %415 = sbr.rel (%p413) target = $region60
        $region59: #{tpu_custom_call.1} parent=55 // pred_region
          %s416 = sand.u32 %s37, 1
          %s417 = scalar_lea.sflag [#allocation4], %s416
          %s418 = sand.u32 %s37, 1
          %s419 = smul.addr %s418, 256
          %s420 = scalar_lea.vmem [#allocation3], %s419
          %s421 = smul.u32 32, %s27
          %423 = vsyncadd %s417, 0
          %s424 = smul.addr %s421, 8
          %s425 = scalar_lea.hbm %s0, %s424
          %s426 = sshll.u32 %s425, 4
          %s427 = int_to_ptr.hbm [resolvable:$true] %s426
          %s428 = sshll.u32 %s420, 4
          %s429 = int_to_ptr.vmem [resolvable:$true] %s428
          %434 = dma.hbm_to_vmem [thread:$0]  %s427, 4096, %s429, %s417, 128, 128, 8
        $region60: #{tpu_custom_call.1} parent=55 // pred_fallthru
          _
      $region56: #{tpu_custom_call.1} parent=5 // pred_fallthru
        _
      %p435 = scmp.le.s32.totalorder 1, %s27
      %p436 = scmp.lt.s32.totalorder %s27, 3
      %p437 = pnand %p435, %p436
      %p438 = pneg %p437
      // Predicated region
      $region61: #{tpu_custom_call.1} parent=5 // pred_check
        _
      $region62: #{tpu_custom_call.1} parent=5 // pred_check_branch
        %440 = sbr.rel (%p437) target = $region64
      $region63: #{tpu_custom_call.1} parent=5 // pred_region
        %s441 = ssub.s32 %s27, 1
        %s442 = sand.u32 %s40, 1
        %s443 = scalar_lea.sflag [#allocation4], %s442
        %s444 = sand.u32 %s40, 1
        %s445 = smul.addr %s444, 256
        %s446 = scalar_lea.vmem [#allocation3], %s445
        // Predicated region
        $region65: #{tpu_custom_call.1} parent=63 // pred_check
          %p447 = pneg %p53
        $region66: #{tpu_custom_call.1} parent=63 // pred_check_branch
          %449 = sbr.rel (%p447) target = $region68
        $region67: #{tpu_custom_call.1} parent=63 // pred_region
          %451 = dma.done %s443, 4096
        $region68: #{tpu_custom_call.1} parent=63 // pred_fallthru
          _
        // Predicated region
        $region69: #{tpu_custom_call.1} parent=63 // pred_check
          %p452 = pneg %p74
        $region70: #{tpu_custom_call.1} parent=63 // pred_check_branch
          %454 = sbr.rel (%p452) target = $region72
        $region71: #{tpu_custom_call.1} parent=63 // pred_region
          %456 = dma.done [#allocation7], 16
        $region72: #{tpu_custom_call.1} parent=63 // pred_fallthru
          _
        // Predicated region
        $region73: #{tpu_custom_call.1} parent=63 // pred_check
          %p457 = pneg %p116
        $region74: #{tpu_custom_call.1} parent=63 // pred_check_branch
          %459 = sbr.rel (%p457) target = $region76
        $region75: #{tpu_custom_call.1} parent=63 // pred_region
          %461 = dma.done [#allocation7], 2048
        $region76: #{tpu_custom_call.1} parent=63 // pred_fallthru
          _
        // Predicated region
        $region77: #{tpu_custom_call.1} parent=63 // pred_check
          %p462 = pneg %p137
        $region78: #{tpu_custom_call.1} parent=63 // pred_check_branch
          %464 = sbr.rel (%p462) target = $region80
        $region79: #{tpu_custom_call.1} parent=63 // pred_region
          %466 = dma.done [#allocation10], 4096
        $region80: #{tpu_custom_call.1} parent=63 // pred_fallthru
          _
        // Predicated region
        $region81: #{tpu_custom_call.1} parent=63 // pred_check
          %p467 = pneg %p158
        $region82: #{tpu_custom_call.1} parent=63 // pred_check_branch
          %469 = sbr.rel (%p467) target = $region84
        $region83: #{tpu_custom_call.1} parent=63 // pred_region
          %471 = dma.done [#allocation10], 2048
        $region84: #{tpu_custom_call.1} parent=63 // pred_fallthru
          _
        // Predicated region
        $region85: #{tpu_custom_call.1} parent=63 // pred_check
          %p472 = pneg %p179
        $region86: #{tpu_custom_call.1} parent=63 // pred_check_branch
          %474 = sbr.rel (%p472) target = $region88
        $region87: #{tpu_custom_call.1} parent=63 // pred_region
          %476 = dma.done [#allocation13], 2048
        $region88: #{tpu_custom_call.1} parent=63 // pred_fallthru
          _
        // Predicated region
        $region89: #{tpu_custom_call.1} parent=63 // pred_check
          %p477 = pneg %p200
        $region90: #{tpu_custom_call.1} parent=63 // pred_check_branch
          %479 = sbr.rel (%p477) target = $region92
        $region91: #{tpu_custom_call.1} parent=63 // pred_region
          %481 = dma.done [#allocation13], 2048
        $region92: #{tpu_custom_call.1} parent=63 // pred_fallthru
          _
        // Predicated region
        $region93: #{tpu_custom_call.1} parent=63 // pred_check
          %p482 = pneg %p242
        $region94: #{tpu_custom_call.1} parent=63 // pred_check_branch
          %484 = sbr.rel (%p482) target = $region96
        $region95: #{tpu_custom_call.1} parent=63 // pred_region
          %486 = dma.done [#allocation16], 2048
        $region96: #{tpu_custom_call.1} parent=63 // pred_fallthru
          _
        %s487 = sand.u32 %s40, 1
        %s488 = scalar_lea.sflag [#allocation4], %s487
        %s489 = sand.u32 %s40, 1
        %s490 = smul.addr %s489, 256
        %s491 = scalar_lea.vmem [#allocation3], %s490
        %p492 = pneg %p53
        %p493 = pneg %p50
        %p494 = pneg %p74
        %p495 = pneg %p71
        %p496 = pneg %p95
        %p497 = pneg %p92
        %p498 = pneg %p116
        %p499 = pneg %p113
        %p500 = pneg %p137
        %p501 = pneg %p134
        %p502 = pneg %p158
        %p503 = pneg %p155
        %p504 = pneg %p179
        %p505 = pneg %p176
        %p506 = pneg %p200
        %p507 = pneg %p197
        %p508 = pneg %p221
        %p509 = pneg %p218
        %p510 = pneg %p242
        %p511 = pneg %p239
        %p512 = pneg %p263
        %p513 = pneg %p260
        %p514 = pneg %p289
        %p515 = pneg %p286
        %s516 = sand.u32 %s276, 1
        %s517 = scalar_lea.sflag [#allocation5], %s516
        %s518 = sand.u32 %s276, 1
        %s519 = smul.addr %s518, 256
        %s520 = scalar_lea.vmem [#allocation17], %s519
        %s521 = smul.u32 32, %s32
        %s522 = smul.u32 32, %s32
        %v523 = vld [vmem:[#allocation6] sm:$0x1]
        %v524 = vld [vmem:[%s2] sm:$0x1]
        %v525 = vld [vmem:[#allocation8] sm:$0xf]
        %v526 = vld [vmem:[#allocation8 + $0x4] sm:$0xf]
        %v527 = vld [vmem:[#allocation8 + $0x8] sm:$0xf]
        %v528 = vld [vmem:[#allocation8 + $0xc] sm:$0xf]
        %v529 = vld [vmem:[#allocation8 + $0x10] sm:$0xf]
        %v530 = vld [vmem:[#allocation8 + $0x14] sm:$0xf]
        %v531 = vld [vmem:[#allocation8 + $0x18] sm:$0xf]
        %v532 = vld [vmem:[#allocation8 + $0x1c] sm:$0xf]
        %v533 = vld [vmem:[#allocation8 + $0x20] sm:$0xf]
        %v534 = vld [vmem:[#allocation8 + $0x24] sm:$0xf]
        %v535 = vld [vmem:[#allocation8 + $0x28] sm:$0xf]
        %v536 = vld [vmem:[#allocation8 + $0x2c] sm:$0xf]
        %v537 = vld [vmem:[#allocation8 + $0x30] sm:$0xf]
        %v538 = vld [vmem:[#allocation8 + $0x34] sm:$0xf]
        %v539 = vld [vmem:[#allocation8 + $0x38] sm:$0xf]
        %v540 = vld [vmem:[#allocation8 + $0x3c] sm:$0xf]
        %v541 = vld [vmem:[#allocation8 + $0x40] sm:$0xf]
        %v542 = vld [vmem:[#allocation8 + $0x44] sm:$0xf]
        %v543 = vld [vmem:[#allocation8 + $0x48] sm:$0xf]
        %v544 = vld [vmem:[#allocation8 + $0x4c] sm:$0xf]
        %v545 = vld [vmem:[#allocation8 + $0x50] sm:$0xf]
        %v546 = vld [vmem:[#allocation8 + $0x54] sm:$0xf]
        %v547 = vld [vmem:[#allocation8 + $0x58] sm:$0xf]
        %v548 = vld [vmem:[#allocation8 + $0x5c] sm:$0xf]
        %v549 = vld [vmem:[#allocation8 + $0x60] sm:$0xf]
        %v550 = vld [vmem:[#allocation8 + $0x64] sm:$0xf]
        %v551 = vld [vmem:[#allocation8 + $0x68] sm:$0xf]
        %v552 = vld [vmem:[#allocation8 + $0x6c] sm:$0xf]
        %v553 = vld [vmem:[#allocation8 + $0x70] sm:$0xf]
        %v554 = vld [vmem:[#allocation8 + $0x74] sm:$0xf]
        %v555 = vld [vmem:[#allocation8 + $0x78] sm:$0xf]
        %v556 = vld [vmem:[#allocation8 + $0x7c] sm:$0xf]
        %v557 = vld [vmem:[#allocation9] sm:$0xff]
        %v558 = vld [vmem:[#allocation9 + $0x8] sm:$0xff]
        %v559 = vld [vmem:[#allocation9 + $0x10] sm:$0xff]
        %v560 = vld [vmem:[#allocation9 + $0x18] sm:$0xff]
        %v561 = vld [vmem:[#allocation9 + $0x20] sm:$0xff]
        %v562 = vld [vmem:[#allocation9 + $0x28] sm:$0xff]
        %v563 = vld [vmem:[#allocation9 + $0x30] sm:$0xff]
        %v564 = vld [vmem:[#allocation9 + $0x38] sm:$0xff]
        %v565 = vld [vmem:[#allocation9 + $0x40] sm:$0xff]
        %v566 = vld [vmem:[#allocation9 + $0x48] sm:$0xff]
        %v567 = vld [vmem:[#allocation9 + $0x50] sm:$0xff]
        %v568 = vld [vmem:[#allocation9 + $0x58] sm:$0xff]
        %v569 = vld [vmem:[#allocation9 + $0x60] sm:$0xff]
        %v570 = vld [vmem:[#allocation9 + $0x68] sm:$0xff]
        %v571 = vld [vmem:[#allocation9 + $0x70] sm:$0xff]
        %v572 = vld [vmem:[#allocation9 + $0x78] sm:$0xff]
        %v573 = vld [vmem:[#allocation9 + $0x80] sm:$0xff]
        %v574 = vld [vmem:[#allocation9 + $0x88] sm:$0xff]
        %v575 = vld [vmem:[#allocation9 + $0x90] sm:$0xff]
        %v576 = vld [vmem:[#allocation9 + $0x98] sm:$0xff]
        %v577 = vld [vmem:[#allocation9 + $0xa0] sm:$0xff]
        %v578 = vld [vmem:[#allocation9 + $0xa8] sm:$0xff]
        %v579 = vld [vmem:[#allocation9 + $0xb0] sm:$0xff]
        %v580 = vld [vmem:[#allocation9 + $0xb8] sm:$0xff]
        %v581 = vld [vmem:[#allocation9 + $0xc0] sm:$0xff]
        %v582 = vld [vmem:[#allocation9 + $0xc8] sm:$0xff]
        %v583 = vld [vmem:[#allocation9 + $0xd0] sm:$0xff]
        %v584 = vld [vmem:[#allocation9 + $0xd8] sm:$0xff]
        %v585 = vld [vmem:[#allocation9 + $0xe0] sm:$0xff]
        %v586 = vld [vmem:[#allocation9 + $0xe8] sm:$0xff]
        %v587 = vld [vmem:[#allocation9 + $0xf0] sm:$0xff]
        %v588 = vld [vmem:[#allocation9 + $0xf8] sm:$0xff]
        %v589 = vld [vmem:[#allocation11] sm:$0xff]
        %v590 = vld [vmem:[#allocation11 + $0x8] sm:$0xff]
        %v591 = vld [vmem:[#allocation11 + $0x10] sm:$0xff]
        %v592 = vld [vmem:[#allocation11 + $0x18] sm:$0xff]
        %v593 = vld [vmem:[#allocation11 + $0x20] sm:$0xff]
        %v594 = vld [vmem:[#allocation11 + $0x28] sm:$0xff]
        %v595 = vld [vmem:[#allocation11 + $0x30] sm:$0xff]
        %v596 = vld [vmem:[#allocation11 + $0x38] sm:$0xff]
        %v597 = vld [vmem:[#allocation11 + $0x40] sm:$0xff]
        %v598 = vld [vmem:[#allocation11 + $0x48] sm:$0xff]
        %v599 = vld [vmem:[#allocation11 + $0x50] sm:$0xff]
        %v600 = vld [vmem:[#allocation11 + $0x58] sm:$0xff]
        %v601 = vld [vmem:[#allocation11 + $0x60] sm:$0xff]
        %v602 = vld [vmem:[#allocation11 + $0x68] sm:$0xff]
        %v603 = vld [vmem:[#allocation11 + $0x70] sm:$0xff]
        %v604 = vld [vmem:[#allocation11 + $0x78] sm:$0xff]
        %v605 = vld [vmem:[#allocation12] sm:$0xff]
        %v606 = vld [vmem:[#allocation12 + $0x8] sm:$0xff]
        %v607 = vld [vmem:[#allocation12 + $0x10] sm:$0xff]
        %v608 = vld [vmem:[#allocation12 + $0x18] sm:$0xff]
        %v609 = vld [vmem:[#allocation12 + $0x20] sm:$0xff]
        %v610 = vld [vmem:[#allocation12 + $0x28] sm:$0xff]
        %v611 = vld [vmem:[#allocation12 + $0x30] sm:$0xff]
        %v612 = vld [vmem:[#allocation12 + $0x38] sm:$0xff]
        %v613 = vld [vmem:[#allocation12 + $0x40] sm:$0xff]
        %v614 = vld [vmem:[#allocation12 + $0x48] sm:$0xff]
        %v615 = vld [vmem:[#allocation12 + $0x50] sm:$0xff]
        %v616 = vld [vmem:[#allocation12 + $0x58] sm:$0xff]
        %v617 = vld [vmem:[#allocation12 + $0x60] sm:$0xff]
        %v618 = vld [vmem:[#allocation12 + $0x68] sm:$0xff]
        %v619 = vld [vmem:[#allocation12 + $0x70] sm:$0xff]
        %v620 = vld [vmem:[#allocation12 + $0x78] sm:$0xff]
        %v621 = vld [vmem:[%s446] sm:$0xff]
        %v622 = vld [vmem:[%s446 + $0x8] sm:$0xff]
        %v623 = vld [vmem:[%s446 + $0x10] sm:$0xff]
        %v624 = vld [vmem:[%s446 + $0x18] sm:$0xff]
        %v625 = vld [vmem:[%s446 + $0x20] sm:$0xff]
        %v626 = vld [vmem:[%s446 + $0x28] sm:$0xff]
        %v627 = vld [vmem:[%s446 + $0x30] sm:$0xff]
        %v628 = vld [vmem:[%s446 + $0x38] sm:$0xff]
        %v629 = vld [vmem:[%s446 + $0x40] sm:$0xff]
        %v630 = vld [vmem:[%s446 + $0x48] sm:$0xff]
        %v631 = vld [vmem:[%s446 + $0x50] sm:$0xff]
        %v632 = vld [vmem:[%s446 + $0x58] sm:$0xff]
        %v633 = vld [vmem:[%s446 + $0x60] sm:$0xff]
        %v634 = vld [vmem:[%s446 + $0x68] sm:$0xff]
        %v635 = vld [vmem:[%s446 + $0x70] sm:$0xff]
        %v636 = vld [vmem:[%s446 + $0x78] sm:$0xff]
        %637 = vadd.xlane.f32.xlu0 %v621
        %v638 = vpop.xlane.xlu0 %637
        %639 = vadd.xlane.f32.xlu0 %v622
        %v640 = vpop.xlane.xlu0 %639
        %641 = vadd.xlane.f32.xlu0 %v623
        %v642 = vpop.xlane.xlu0 %641
        %643 = vadd.xlane.f32.xlu0 %v624
        %v644 = vpop.xlane.xlu0 %643
        %645 = vadd.xlane.f32.xlu0 %v625
        %v646 = vpop.xlane.xlu0 %645
        %647 = vadd.xlane.f32.xlu0 %v626
        %v648 = vpop.xlane.xlu0 %647
        %649 = vadd.xlane.f32.xlu0 %v627
        %v650 = vpop.xlane.xlu0 %649
        %651 = vadd.xlane.f32.xlu0 %v628
        %v652 = vpop.xlane.xlu0 %651
        %653 = vadd.xlane.f32.xlu0 %v629
        %v654 = vpop.xlane.xlu0 %653
        %655 = vadd.xlane.f32.xlu0 %v630
        %v656 = vpop.xlane.xlu0 %655
        %657 = vadd.xlane.f32.xlu0 %v631
        %v658 = vpop.xlane.xlu0 %657
        %659 = vadd.xlane.f32.xlu0 %v632
        %v660 = vpop.xlane.xlu0 %659
        %661 = vadd.xlane.f32.xlu0 %v633
        %v662 = vpop.xlane.xlu0 %661
        %663 = vadd.xlane.f32.xlu0 %v634
        %v664 = vpop.xlane.xlu0 %663
        %665 = vadd.xlane.f32.xlu0 %v635
        %v666 = vpop.xlane.xlu0 %665
        %667 = vadd.xlane.f32.xlu0 %v636
        %v668 = vpop.xlane.xlu0 %667
        %v669 = vrcp.pop 128.0
        %v670 = vmul.f32 128.0, %v669
        %v671 = vsub.f32 1.0, %v670
        %v672 = vmul.f32 %v669, %v671
        %v673 = vadd.f32 %v669, %v672
        %vm674 = vweird.f32 %v669
        %v675 = vsel %vm674, %v669, %v673
        %v676 = vmul.f32 %v638, %v675
        %v677 = vmul.f32 %v640, %v675
        %v678 = vmul.f32 %v642, %v675
        %v679 = vmul.f32 %v644, %v675
        %v680 = vmul.f32 %v646, %v675
        %v681 = vmul.f32 %v648, %v675
        %v682 = vmul.f32 %v650, %v675
        %v683 = vmul.f32 %v652, %v675
        %v684 = vmul.f32 %v654, %v675
        %v685 = vmul.f32 %v656, %v675
        %v686 = vmul.f32 %v658, %v675
        %v687 = vmul.f32 %v660, %v675
        %v688 = vmul.f32 %v662, %v675
        %v689 = vmul.f32 %v664, %v675
        %v690 = vmul.f32 %v666, %v675
        %v691 = vmul.f32 %v668, %v675
        %v692 = vmul.f32 %v621, %v621
        %v693 = vmul.f32 %v622, %v622
        %v694 = vmul.f32 %v623, %v623
        %v695 = vmul.f32 %v624, %v624
        %v696 = vmul.f32 %v625, %v625
        %v697 = vmul.f32 %v626, %v626
        %v698 = vmul.f32 %v627, %v627
        %v699 = vmul.f32 %v628, %v628
        %v700 = vmul.f32 %v629, %v629
        %v701 = vmul.f32 %v630, %v630
        %v702 = vmul.f32 %v631, %v631
        %v703 = vmul.f32 %v632, %v632
        %v704 = vmul.f32 %v633, %v633
        %v705 = vmul.f32 %v634, %v634
        %v706 = vmul.f32 %v635, %v635
        %v707 = vmul.f32 %v636, %v636
        %708 = vadd.xlane.f32.xlu0 %v692
        %v709 = vpop.xlane.xlu0 %708
        %710 = vadd.xlane.f32.xlu0 %v693
        %v711 = vpop.xlane.xlu0 %710
        %712 = vadd.xlane.f32.xlu0 %v694
        %v713 = vpop.xlane.xlu0 %712
        %714 = vadd.xlane.f32.xlu0 %v695
        %v715 = vpop.xlane.xlu0 %714
        %716 = vadd.xlane.f32.xlu0 %v696
        %v717 = vpop.xlane.xlu0 %716
        %718 = vadd.xlane.f32.xlu0 %v697
        %v719 = vpop.xlane.xlu0 %718
        %720 = vadd.xlane.f32.xlu0 %v698
        %v721 = vpop.xlane.xlu0 %720
        %722 = vadd.xlane.f32.xlu0 %v699
        %v723 = vpop.xlane.xlu0 %722
        %724 = vadd.xlane.f32.xlu0 %v700
        %v725 = vpop.xlane.xlu0 %724
        %726 = vadd.xlane.f32.xlu0 %v701
        %v727 = vpop.xlane.xlu0 %726
        %728 = vadd.xlane.f32.xlu0 %v702
        %v729 = vpop.xlane.xlu0 %728
        %730 = vadd.xlane.f32.xlu0 %v703
        %v731 = vpop.xlane.xlu0 %730
        %732 = vadd.xlane.f32.xlu0 %v704
        %v733 = vpop.xlane.xlu0 %732
        %734 = vadd.xlane.f32.xlu0 %v705
        %v735 = vpop.xlane.xlu0 %734
        %736 = vadd.xlane.f32.xlu0 %v706
        %v737 = vpop.xlane.xlu0 %736
        %738 = vadd.xlane.f32.xlu0 %v707
        %v739 = vpop.xlane.xlu0 %738
        %v740 = vmul.f32 %v709, %v675
        %v741 = vmul.f32 %v711, %v675
        %v742 = vmul.f32 %v713, %v675
        %v743 = vmul.f32 %v715, %v675
        %v744 = vmul.f32 %v717, %v675
        %v745 = vmul.f32 %v719, %v675
        %v746 = vmul.f32 %v721, %v675
        %v747 = vmul.f32 %v723, %v675
        %v748 = vmul.f32 %v725, %v675
        %v749 = vmul.f32 %v727, %v675
        %v750 = vmul.f32 %v729, %v675
        %v751 = vmul.f32 %v731, %v675
        %v752 = vmul.f32 %v733, %v675
        %v753 = vmul.f32 %v735, %v675
        %v754 = vmul.f32 %v737, %v675
        %v755 = vmul.f32 %v739, %v675
        %v756 = vmul.f32 %v676, %v676
        %v757 = vmul.f32 %v677, %v677
        %v758 = vmul.f32 %v678, %v678
        %v759 = vmul.f32 %v679, %v679
        %v760 = vmul.f32 %v680, %v680
        %v761 = vmul.f32 %v681, %v681
        %v762 = vmul.f32 %v682, %v682
        %v763 = vmul.f32 %v683, %v683
        %v764 = vmul.f32 %v684, %v684
        %v765 = vmul.f32 %v685, %v685
        %v766 = vmul.f32 %v686, %v686
        %v767 = vmul.f32 %v687, %v687
        %v768 = vmul.f32 %v688, %v688
        %v769 = vmul.f32 %v689, %v689
        %v770 = vmul.f32 %v690, %v690
        %v771 = vmul.f32 %v691, %v691
        %v772 = vsub.f32 %v740, %v756
        %v773 = vsub.f32 %v741, %v757
        %v774 = vsub.f32 %v742, %v758
        %v775 = vsub.f32 %v743, %v759
        %v776 = vsub.f32 %v744, %v760
        %v777 = vsub.f32 %v745, %v761
        %v778 = vsub.f32 %v746, %v762
        %v779 = vsub.f32 %v747, %v763
        %v780 = vsub.f32 %v748, %v764
        %v781 = vsub.f32 %v749, %v765
        %v782 = vsub.f32 %v750, %v766
        %v783 = vsub.f32 %v751, %v767
        %v784 = vsub.f32 %v752, %v768
        %v785 = vsub.f32 %v753, %v769
        %v786 = vsub.f32 %v754, %v770
        %v787 = vsub.f32 %v755, %v771
        %v788 = vsub.f32 %v621, %v676
        %v789 = vsub.f32 %v622, %v677
        %v790 = vsub.f32 %v623, %v678
        %v791 = vsub.f32 %v624, %v679
        %v792 = vsub.f32 %v625, %v680
        %v793 = vsub.f32 %v626, %v681
        %v794 = vsub.f32 %v627, %v682
        %v795 = vsub.f32 %v628, %v683
        %v796 = vsub.f32 %v629, %v684
        %v797 = vsub.f32 %v630, %v685
        %v798 = vsub.f32 %v631, %v686
        %v799 = vsub.f32 %v632, %v687
        %v800 = vsub.f32 %v633, %v688
        %v801 = vsub.f32 %v634, %v689
        %v802 = vsub.f32 %v635, %v690
        %v803 = vsub.f32 %v636, %v691
        %v804 = vadd.f32 %v772, 1e-05
        %v805 = vadd.f32 %v773, 1e-05
        %v806 = vadd.f32 %v774, 1e-05
        %v807 = vadd.f32 %v775, 1e-05
        %v808 = vadd.f32 %v776, 1e-05
        %v809 = vadd.f32 %v777, 1e-05
        %v810 = vadd.f32 %v778, 1e-05
        %v811 = vadd.f32 %v779, 1e-05
        %v812 = vadd.f32 %v780, 1e-05
        %v813 = vadd.f32 %v781, 1e-05
        %v814 = vadd.f32 %v782, 1e-05
        %v815 = vadd.f32 %v783, 1e-05
        %v816 = vadd.f32 %v784, 1e-05
        %v817 = vadd.f32 %v785, 1e-05
        %v818 = vadd.f32 %v786, 1e-05
        %v819 = vadd.f32 %v787, 1e-05
        %v820 = vrsqrt.pop %v804
        %v821 = vmul.f32 %v820, %v804
        %v822 = vmul.f32 %v821, %v820
        %v823 = vmul.f32 0.5, %v822
        %v824 = vsub.f32 1.5, %v823
        %v825 = vmul.f32 %v820, %v824
        %vm826 = vweird.f32 %v804
        %vm827 = vweird.f32 %v820
        %vm828 = vmor %vm826, %vm827
        %v829 = vsel %vm828, %v820, %v825
        %v830 = vrsqrt.pop %v805
        %v831 = vmul.f32 %v830, %v805
        %v832 = vmul.f32 %v831, %v830
        %v833 = vmul.f32 0.5, %v832
        %v834 = vsub.f32 1.5, %v833
        %v835 = vmul.f32 %v830, %v834
        %vm836 = vweird.f32 %v805
        %vm837 = vweird.f32 %v830
        %vm838 = vmor %vm836, %vm837
        %v839 = vsel %vm838, %v830, %v835
        %v840 = vrsqrt.pop %v806
        %v841 = vmul.f32 %v840, %v806
        %v842 = vmul.f32 %v841, %v840
        %v843 = vmul.f32 0.5, %v842
        %v844 = vsub.f32 1.5, %v843
        %v845 = vmul.f32 %v840, %v844
        %vm846 = vweird.f32 %v806
        %vm847 = vweird.f32 %v840
        %vm848 = vmor %vm846, %vm847
        %v849 = vsel %vm848, %v840, %v845
        %v850 = vrsqrt.pop %v807
        %v851 = vmul.f32 %v850, %v807
        %v852 = vmul.f32 %v851, %v850
        %v853 = vmul.f32 0.5, %v852
        %v854 = vsub.f32 1.5, %v853
        %v855 = vmul.f32 %v850, %v854
        %vm856 = vweird.f32 %v807
        %vm857 = vweird.f32 %v850
        %vm858 = vmor %vm856, %vm857
        %v859 = vsel %vm858, %v850, %v855
        %v860 = vrsqrt.pop %v808
        %v861 = vmul.f32 %v860, %v808
        %v862 = vmul.f32 %v861, %v860
        %v863 = vmul.f32 0.5, %v862
        %v864 = vsub.f32 1.5, %v863
        %v865 = vmul.f32 %v860, %v864
        %vm866 = vweird.f32 %v808
        %vm867 = vweird.f32 %v860
        %vm868 = vmor %vm866, %vm867
        %v869 = vsel %vm868, %v860, %v865
        %v870 = vrsqrt.pop %v809
        %v871 = vmul.f32 %v870, %v809
        %v872 = vmul.f32 %v871, %v870
        %v873 = vmul.f32 0.5, %v872
        %v874 = vsub.f32 1.5, %v873
        %v875 = vmul.f32 %v870, %v874
        %vm876 = vweird.f32 %v809
        %vm877 = vweird.f32 %v870
        %vm878 = vmor %vm876, %vm877
        %v879 = vsel %vm878, %v870, %v875
        %v880 = vrsqrt.pop %v810
        %v881 = vmul.f32 %v880, %v810
        %v882 = vmul.f32 %v881, %v880
        %v883 = vmul.f32 0.5, %v882
        %v884 = vsub.f32 1.5, %v883
        %v885 = vmul.f32 %v880, %v884
        %vm886 = vweird.f32 %v810
        %vm887 = vweird.f32 %v880
        %vm888 = vmor %vm886, %vm887
        %v889 = vsel %vm888, %v880, %v885
        %v890 = vrsqrt.pop %v811
        %v891 = vmul.f32 %v890, %v811
        %v892 = vmul.f32 %v891, %v890
        %v893 = vmul.f32 0.5, %v892
        %v894 = vsub.f32 1.5, %v893
        %v895 = vmul.f32 %v890, %v894
        %vm896 = vweird.f32 %v811
        %vm897 = vweird.f32 %v890
        %vm898 = vmor %vm896, %vm897
        %v899 = vsel %vm898, %v890, %v895
        %v900 = vrsqrt.pop %v812
        %v901 = vmul.f32 %v900, %v812
        %v902 = vmul.f32 %v901, %v900
        %v903 = vmul.f32 0.5, %v902
        %v904 = vsub.f32 1.5, %v903
        %v905 = vmul.f32 %v900, %v904
        %vm906 = vweird.f32 %v812
        %vm907 = vweird.f32 %v900
        %vm908 = vmor %vm906, %vm907
        %v909 = vsel %vm908, %v900, %v905
        %v910 = vrsqrt.pop %v813
        %v911 = vmul.f32 %v910, %v813
        %v912 = vmul.f32 %v911, %v910
        %v913 = vmul.f32 0.5, %v912
        %v914 = vsub.f32 1.5, %v913
        %v915 = vmul.f32 %v910, %v914
        %vm916 = vweird.f32 %v813
        %vm917 = vweird.f32 %v910
        %vm918 = vmor %vm916, %vm917
        %v919 = vsel %vm918, %v910, %v915
        %v920 = vrsqrt.pop %v814
        %v921 = vmul.f32 %v920, %v814
        %v922 = vmul.f32 %v921, %v920
        %v923 = vmul.f32 0.5, %v922
        %v924 = vsub.f32 1.5, %v923
        %v925 = vmul.f32 %v920, %v924
        %vm926 = vweird.f32 %v814
        %vm927 = vweird.f32 %v920
        %vm928 = vmor %vm926, %vm927
        %v929 = vsel %vm928, %v920, %v925
        %v930 = vrsqrt.pop %v815
        %v931 = vmul.f32 %v930, %v815
        %v932 = vmul.f32 %v931, %v930
        %v933 = vmul.f32 0.5, %v932
        %v934 = vsub.f32 1.5, %v933
        %v935 = vmul.f32 %v930, %v934
        %vm936 = vweird.f32 %v815
        %vm937 = vweird.f32 %v930
        %vm938 = vmor %vm936, %vm937
        %v939 = vsel %vm938, %v930, %v935
        %v940 = vrsqrt.pop %v816
        %v941 = vmul.f32 %v940, %v816
        %v942 = vmul.f32 %v941, %v940
        %v943 = vmul.f32 0.5, %v942
        %v944 = vsub.f32 1.5, %v943
        %v945 = vmul.f32 %v940, %v944
        %vm946 = vweird.f32 %v816
        %vm947 = vweird.f32 %v940
        %vm948 = vmor %vm946, %vm947
        %v949 = vsel %vm948, %v940, %v945
        %v950 = vrsqrt.pop %v817
        %v951 = vmul.f32 %v950, %v817
        %v952 = vmul.f32 %v951, %v950
        %v953 = vmul.f32 0.5, %v952
        %v954 = vsub.f32 1.5, %v953
        %v955 = vmul.f32 %v950, %v954
        %vm956 = vweird.f32 %v817
        %vm957 = vweird.f32 %v950
        %vm958 = vmor %vm956, %vm957
        %v959 = vsel %vm958, %v950, %v955
        %v960 = vrsqrt.pop %v818
        %v961 = vmul.f32 %v960, %v818
        %v962 = vmul.f32 %v961, %v960
        %v963 = vmul.f32 0.5, %v962
        %v964 = vsub.f32 1.5, %v963
        %v965 = vmul.f32 %v960, %v964
        %vm966 = vweird.f32 %v818
        %vm967 = vweird.f32 %v960
        %vm968 = vmor %vm966, %vm967
        %v969 = vsel %vm968, %v960, %v965
        %v970 = vrsqrt.pop %v819
        %v971 = vmul.f32 %v970, %v819
        %v972 = vmul.f32 %v971, %v970
        %v973 = vmul.f32 0.5, %v972
        %v974 = vsub.f32 1.5, %v973
        %v975 = vmul.f32 %v970, %v974
        %vm976 = vweird.f32 %v819
        %vm977 = vweird.f32 %v970
        %vm978 = vmor %vm976, %vm977
        %v979 = vsel %vm978, %v970, %v975
        %v980 = vmul.f32 %v788, %v829
        %v981 = vmul.f32 %v789, %v839
        %v982 = vmul.f32 %v790, %v849
        %v983 = vmul.f32 %v791, %v859
        %v984 = vmul.f32 %v792, %v869
        %v985 = vmul.f32 %v793, %v879
        %v986 = vmul.f32 %v794, %v889
        %v987 = vmul.f32 %v795, %v899
        %v988 = vmul.f32 %v796, %v909
        %v989 = vmul.f32 %v797, %v919
        %v990 = vmul.f32 %v798, %v929
        %v991 = vmul.f32 %v799, %v939
        %v992 = vmul.f32 %v800, %v949
        %v993 = vmul.f32 %v801, %v959
        %v994 = vmul.f32 %v802, %v969
        %v995 = vmul.f32 %v803, %v979
        %v997 = vperm.slane %v523, 0
        %v999 = vmul.f32 %v980, %v997
        %v1000 = vmul.f32 %v981, %v997
        %v1001 = vmul.f32 %v982, %v997
        %v1002 = vmul.f32 %v983, %v997
        %v1003 = vmul.f32 %v984, %v997
        %v1004 = vmul.f32 %v985, %v997
        %v1005 = vmul.f32 %v986, %v997
        %v1006 = vmul.f32 %v987, %v997
        %v1007 = vmul.f32 %v988, %v997
        %v1008 = vmul.f32 %v989, %v997
        %v1009 = vmul.f32 %v990, %v997
        %v1010 = vmul.f32 %v991, %v997
        %v1011 = vmul.f32 %v992, %v997
        %v1012 = vmul.f32 %v993, %v997
        %v1013 = vmul.f32 %v994, %v997
        %v1014 = vmul.f32 %v995, %v997
        %v1016 = vperm.slane %v524, 0
        %v1018 = vadd.f32 %v999, %v1016
        %v1019 = vadd.f32 %v1000, %v1016
        %v1020 = vadd.f32 %v1001, %v1016
        %v1021 = vadd.f32 %v1002, %v1016
        %v1022 = vadd.f32 %v1003, %v1016
        %v1023 = vadd.f32 %v1004, %v1016
        %v1024 = vadd.f32 %v1005, %v1016
        %v1025 = vadd.f32 %v1006, %v1016
        %v1026 = vadd.f32 %v1007, %v1016
        %v1027 = vadd.f32 %v1008, %v1016
        %v1028 = vadd.f32 %v1009, %v1016
        %v1029 = vadd.f32 %v1010, %v1016
        %v1030 = vadd.f32 %v1011, %v1016
        %v1031 = vadd.f32 %v1012, %v1016
        %v1032 = vadd.f32 %v1013, %v1016
        %v1033 = vadd.f32 %v1014, %v1016
        %v1034 = vpack.c.bf16 %v1019, %v1018
        %v1035 = vpack.c.bf16 %v1021, %v1020
        %v1036 = vpack.c.bf16 %v1023, %v1022
        %v1037 = vpack.c.bf16 %v1025, %v1024
        %v1038 = vpack.c.bf16 %v1027, %v1026
        %v1039 = vpack.c.bf16 %v1029, %v1028
        %v1040 = vpack.c.bf16 %v1031, %v1030
        %v1041 = vpack.c.bf16 %v1033, %v1032
        %v1074 = vunpack.c.l.b16 %v525
        %v1075 = vunpack.c.l.b16 %v526
        %v1076 = vunpack.c.l.b16 %v527
        %v1077 = vunpack.c.l.b16 %v528
        %v1078 = vunpack.c.l.b16 %v529
        %v1079 = vunpack.c.l.b16 %v530
        %v1080 = vunpack.c.l.b16 %v531
        %v1081 = vunpack.c.l.b16 %v532
        %v1082 = vunpack.c.l.b16 %v533
        %v1083 = vunpack.c.l.b16 %v534
        %v1084 = vunpack.c.l.b16 %v535
        %v1085 = vunpack.c.l.b16 %v536
        %v1086 = vunpack.c.l.b16 %v537
        %v1087 = vunpack.c.l.b16 %v538
        %v1088 = vunpack.c.l.b16 %v539
        %v1089 = vunpack.c.l.b16 %v540
        %v1090 = vunpack.c.l.b16 %v541
        %v1091 = vunpack.c.l.b16 %v542
        %v1092 = vunpack.c.l.b16 %v543
        %v1093 = vunpack.c.l.b16 %v544
        %v1094 = vunpack.c.l.b16 %v545
        %v1095 = vunpack.c.l.b16 %v546
        %v1096 = vunpack.c.l.b16 %v547
        %v1097 = vunpack.c.l.b16 %v548
        %v1098 = vunpack.c.l.b16 %v549
        %v1099 = vunpack.c.l.b16 %v550
        %v1100 = vunpack.c.l.b16 %v551
        %v1101 = vunpack.c.l.b16 %v552
        %v1102 = vunpack.c.l.b16 %v553
        %v1103 = vunpack.c.l.b16 %v554
        %v1104 = vunpack.c.l.b16 %v555
        %v1105 = vunpack.c.l.b16 %v556
        %v1106 = vpack.c.b16 %v1075, %v1074
        %v1107 = vpack.c.b16 %v1077, %v1076
        %v1108 = vpack.c.b16 %v1079, %v1078
        %v1109 = vpack.c.b16 %v1081, %v1080
        %v1110 = vpack.c.b16 %v1083, %v1082
        %v1111 = vpack.c.b16 %v1085, %v1084
        %v1112 = vpack.c.b16 %v1087, %v1086
        %v1113 = vpack.c.b16 %v1089, %v1088
        %v1114 = vpack.c.b16 %v1091, %v1090
        %v1115 = vpack.c.b16 %v1093, %v1092
        %v1116 = vpack.c.b16 %v1095, %v1094
        %v1117 = vpack.c.b16 %v1097, %v1096
        %v1118 = vpack.c.b16 %v1099, %v1098
        %v1119 = vpack.c.b16 %v1101, %v1100
        %v1120 = vpack.c.b16 %v1103, %v1102
        %v1121 = vpack.c.b16 %v1105, %v1104
        %1138 = vmatpush.bf16.msra.mxu0 %v1041
        %1139 = vmatpush.bf16.msra.mxu0 %v1040
        %1140 = vmatpush.bf16.msra.mxu0 %v1039
        %1141 = vmatpush.bf16.msra.mxu0 %v1038
        %1142 = vmatpush.bf16.msra.mxu0 %v1037
        %1143 = vmatpush.bf16.msra.mxu0 %v1036
        %1144 = vmatpush.bf16.msra.mxu0 %v1035
        %1145 = vmatpush.bf16.msra.mxu0 %v1034
        %1146 = vmatmul.bf16.gmra.mxu0 %v1106
        %v1147 = vpop.f32.mrf.mxu0
        %v1148 = vadd.f32 %v557, %v1147
        %v1149 = vpop.f32.mrf.mxu0
        %v1150 = vadd.f32 %v558, %v1149
        %1151 = vmatmul.bf16.gmra.mxu0 %v1107
        %v1152 = vpop.f32.mrf.mxu0
        %v1153 = vadd.f32 %v559, %v1152
        %v1154 = vpop.f32.mrf.mxu0
        %v1155 = vadd.f32 %v560, %v1154
        %1156 = vmatmul.bf16.gmra.mxu0 %v1108
        %v1157 = vpop.f32.mrf.mxu0
        %v1158 = vadd.f32 %v561, %v1157
        %v1159 = vpop.f32.mrf.mxu0
        %v1160 = vadd.f32 %v562, %v1159
        %1161 = vmatmul.bf16.gmra.mxu0 %v1109
        %v1162 = vpop.f32.mrf.mxu0
        %v1163 = vadd.f32 %v563, %v1162
        %v1164 = vpop.f32.mrf.mxu0
        %v1165 = vadd.f32 %v564, %v1164
        %1166 = vmatmul.bf16.gmra.mxu0 %v1110
        %v1167 = vpop.f32.mrf.mxu0
        %v1168 = vadd.f32 %v565, %v1167
        %v1169 = vpop.f32.mrf.mxu0
        %v1170 = vadd.f32 %v566, %v1169
        %1171 = vmatmul.bf16.gmra.mxu0 %v1111
        %v1172 = vpop.f32.mrf.mxu0
        %v1173 = vadd.f32 %v567, %v1172
        %v1174 = vpop.f32.mrf.mxu0
        %v1175 = vadd.f32 %v568, %v1174
        %1176 = vmatmul.bf16.gmra.mxu0 %v1112
        %v1177 = vpop.f32.mrf.mxu0
        %v1178 = vadd.f32 %v569, %v1177
        %v1179 = vpop.f32.mrf.mxu0
        %v1180 = vadd.f32 %v570, %v1179
        %1181 = vmatmul.bf16.gmra.mxu0 %v1113
        %v1182 = vpop.f32.mrf.mxu0
        %v1183 = vadd.f32 %v571, %v1182
        %v1184 = vpop.f32.mrf.mxu0
        %v1185 = vadd.f32 %v572, %v1184
        %1186 = vmatmul.bf16.gmra.mxu0 %v1114
        %v1187 = vpop.f32.mrf.mxu0
        %v1188 = vadd.f32 %v573, %v1187
        %v1189 = vpop.f32.mrf.mxu0
        %v1190 = vadd.f32 %v574, %v1189
        %1191 = vmatmul.bf16.gmra.mxu0 %v1115
        %v1192 = vpop.f32.mrf.mxu0
        %v1193 = vadd.f32 %v575, %v1192
        %v1194 = vpop.f32.mrf.mxu0
        %v1195 = vadd.f32 %v576, %v1194
        %1196 = vmatmul.bf16.gmra.mxu0 %v1116
        %v1197 = vpop.f32.mrf.mxu0
        %v1198 = vadd.f32 %v577, %v1197
        %v1199 = vpop.f32.mrf.mxu0
        %v1200 = vadd.f32 %v578, %v1199
        %1201 = vmatmul.bf16.gmra.mxu0 %v1117
        %v1202 = vpop.f32.mrf.mxu0
        %v1203 = vadd.f32 %v579, %v1202
        %v1204 = vpop.f32.mrf.mxu0
        %v1205 = vadd.f32 %v580, %v1204
        %1206 = vmatmul.bf16.gmra.mxu0 %v1118
        %v1207 = vpop.f32.mrf.mxu0
        %v1208 = vadd.f32 %v581, %v1207
        %v1209 = vpop.f32.mrf.mxu0
        %v1210 = vadd.f32 %v582, %v1209
        %1211 = vmatmul.bf16.gmra.mxu0 %v1119
        %v1212 = vpop.f32.mrf.mxu0
        %v1213 = vadd.f32 %v583, %v1212
        %v1214 = vpop.f32.mrf.mxu0
        %v1215 = vadd.f32 %v584, %v1214
        %1216 = vmatmul.bf16.gmra.mxu0 %v1120
        %v1217 = vpop.f32.mrf.mxu0
        %v1218 = vadd.f32 %v585, %v1217
        %v1219 = vpop.f32.mrf.mxu0
        %v1220 = vadd.f32 %v586, %v1219
        %1221 = vmatmul.bf16.gmra.mxu0 %v1121
        %v1222 = vpop.f32.mrf.mxu0
        %v1223 = vadd.f32 %v587, %v1222
        %v1224 = vpop.f32.mrf.mxu0
        %v1225 = vadd.f32 %v588, %v1224
        %1226 = vdwg.mxu0
        %v1227 = vmul.f32 %v1148, %v1148
        %v1228 = vmul.f32 %v1150, %v1150
        %v1229 = vmul.f32 %v1153, %v1153
        %v1230 = vmul.f32 %v1155, %v1155
        %v1231 = vmul.f32 %v1158, %v1158
        %v1232 = vmul.f32 %v1160, %v1160
        %v1233 = vmul.f32 %v1163, %v1163
        %v1234 = vmul.f32 %v1165, %v1165
        %v1235 = vmul.f32 %v1168, %v1168
        %v1236 = vmul.f32 %v1170, %v1170
        %v1237 = vmul.f32 %v1173, %v1173
        %v1238 = vmul.f32 %v1175, %v1175
        %v1239 = vmul.f32 %v1178, %v1178
        %v1240 = vmul.f32 %v1180, %v1180
        %v1241 = vmul.f32 %v1183, %v1183
        %v1242 = vmul.f32 %v1185, %v1185
        %v1243 = vmul.f32 %v1188, %v1188
        %v1244 = vmul.f32 %v1190, %v1190
        %v1245 = vmul.f32 %v1193, %v1193
        %v1246 = vmul.f32 %v1195, %v1195
        %v1247 = vmul.f32 %v1198, %v1198
        %v1248 = vmul.f32 %v1200, %v1200
        %v1249 = vmul.f32 %v1203, %v1203
        %v1250 = vmul.f32 %v1205, %v1205
        %v1251 = vmul.f32 %v1208, %v1208
        %v1252 = vmul.f32 %v1210, %v1210
        %v1253 = vmul.f32 %v1213, %v1213
        %v1254 = vmul.f32 %v1215, %v1215
        %v1255 = vmul.f32 %v1218, %v1218
        %v1256 = vmul.f32 %v1220, %v1220
        %v1257 = vmul.f32 %v1223, %v1223
        %v1258 = vmul.f32 %v1225, %v1225
        %v1259 = vmul.f32 %v1148, %v1227
        %v1260 = vmul.f32 %v1150, %v1228
        %v1261 = vmul.f32 %v1153, %v1229
        %v1262 = vmul.f32 %v1155, %v1230
        %v1263 = vmul.f32 %v1158, %v1231
        %v1264 = vmul.f32 %v1160, %v1232
        %v1265 = vmul.f32 %v1163, %v1233
        %v1266 = vmul.f32 %v1165, %v1234
        %v1267 = vmul.f32 %v1168, %v1235
        %v1268 = vmul.f32 %v1170, %v1236
        %v1269 = vmul.f32 %v1173, %v1237
        %v1270 = vmul.f32 %v1175, %v1238
        %v1271 = vmul.f32 %v1178, %v1239
        %v1272 = vmul.f32 %v1180, %v1240
        %v1273 = vmul.f32 %v1183, %v1241
        %v1274 = vmul.f32 %v1185, %v1242
        %v1275 = vmul.f32 %v1188, %v1243
        %v1276 = vmul.f32 %v1190, %v1244
        %v1277 = vmul.f32 %v1193, %v1245
        %v1278 = vmul.f32 %v1195, %v1246
        %v1279 = vmul.f32 %v1198, %v1247
        %v1280 = vmul.f32 %v1200, %v1248
        %v1281 = vmul.f32 %v1203, %v1249
        %v1282 = vmul.f32 %v1205, %v1250
        %v1283 = vmul.f32 %v1208, %v1251
        %v1284 = vmul.f32 %v1210, %v1252
        %v1285 = vmul.f32 %v1213, %v1253
        %v1286 = vmul.f32 %v1215, %v1254
        %v1287 = vmul.f32 %v1218, %v1255
        %v1288 = vmul.f32 %v1220, %v1256
        %v1289 = vmul.f32 %v1223, %v1257
        %v1290 = vmul.f32 %v1225, %v1258
        %v1291 = vmul.f32 %v1259, 0.044715
        %v1292 = vmul.f32 %v1260, 0.044715
        %v1293 = vmul.f32 %v1261, 0.044715
        %v1294 = vmul.f32 %v1262, 0.044715
        %v1295 = vmul.f32 %v1263, 0.044715
        %v1296 = vmul.f32 %v1264, 0.044715
        %v1297 = vmul.f32 %v1265, 0.044715
        %v1298 = vmul.f32 %v1266, 0.044715
        %v1299 = vmul.f32 %v1267, 0.044715
        %v1300 = vmul.f32 %v1268, 0.044715
        %v1301 = vmul.f32 %v1269, 0.044715
        %v1302 = vmul.f32 %v1270, 0.044715
        %v1303 = vmul.f32 %v1271, 0.044715
        %v1304 = vmul.f32 %v1272, 0.044715
        %v1305 = vmul.f32 %v1273, 0.044715
        %v1306 = vmul.f32 %v1274, 0.044715
        %v1307 = vmul.f32 %v1275, 0.044715
        %v1308 = vmul.f32 %v1276, 0.044715
        %v1309 = vmul.f32 %v1277, 0.044715
        %v1310 = vmul.f32 %v1278, 0.044715
        %v1311 = vmul.f32 %v1279, 0.044715
        %v1312 = vmul.f32 %v1280, 0.044715
        %v1313 = vmul.f32 %v1281, 0.044715
        %v1314 = vmul.f32 %v1282, 0.044715
        %v1315 = vmul.f32 %v1283, 0.044715
        %v1316 = vmul.f32 %v1284, 0.044715
        %v1317 = vmul.f32 %v1285, 0.044715
        %v1318 = vmul.f32 %v1286, 0.044715
        %v1319 = vmul.f32 %v1287, 0.044715
        %v1320 = vmul.f32 %v1288, 0.044715
        %v1321 = vmul.f32 %v1289, 0.044715
        %v1322 = vmul.f32 %v1290, 0.044715
        %v1323 = vadd.f32 %v1148, %v1291
        %v1324 = vadd.f32 %v1150, %v1292
        %v1325 = vadd.f32 %v1153, %v1293
        %v1326 = vadd.f32 %v1155, %v1294
        %v1327 = vadd.f32 %v1158, %v1295
        %v1328 = vadd.f32 %v1160, %v1296
        %v1329 = vadd.f32 %v1163, %v1297
        %v1330 = vadd.f32 %v1165, %v1298
        %v1331 = vadd.f32 %v1168, %v1299
        %v1332 = vadd.f32 %v1170, %v1300
        %v1333 = vadd.f32 %v1173, %v1301
        %v1334 = vadd.f32 %v1175, %v1302
        %v1335 = vadd.f32 %v1178, %v1303
        %v1336 = vadd.f32 %v1180, %v1304
        %v1337 = vadd.f32 %v1183, %v1305
        %v1338 = vadd.f32 %v1185, %v1306
        %v1339 = vadd.f32 %v1188, %v1307
        %v1340 = vadd.f32 %v1190, %v1308
        %v1341 = vadd.f32 %v1193, %v1309
        %v1342 = vadd.f32 %v1195, %v1310
        %v1343 = vadd.f32 %v1198, %v1311
        %v1344 = vadd.f32 %v1200, %v1312
        %v1345 = vadd.f32 %v1203, %v1313
        %v1346 = vadd.f32 %v1205, %v1314
        %v1347 = vadd.f32 %v1208, %v1315
        %v1348 = vadd.f32 %v1210, %v1316
        %v1349 = vadd.f32 %v1213, %v1317
        %v1350 = vadd.f32 %v1215, %v1318
        %v1351 = vadd.f32 %v1218, %v1319
        %v1352 = vadd.f32 %v1220, %v1320
        %v1353 = vadd.f32 %v1223, %v1321
        %v1354 = vadd.f32 %v1225, %v1322
        %v1355 = vmul.f32 %v1323, 0.7978846
        %v1356 = vmul.f32 %v1324, 0.7978846
        %v1357 = vmul.f32 %v1325, 0.7978846
        %v1358 = vmul.f32 %v1326, 0.7978846
        %v1359 = vmul.f32 %v1327, 0.7978846
        %v1360 = vmul.f32 %v1328, 0.7978846
        %v1361 = vmul.f32 %v1329, 0.7978846
        %v1362 = vmul.f32 %v1330, 0.7978846
        %v1363 = vmul.f32 %v1331, 0.7978846
        %v1364 = vmul.f32 %v1332, 0.7978846
        %v1365 = vmul.f32 %v1333, 0.7978846
        %v1366 = vmul.f32 %v1334, 0.7978846
        %v1367 = vmul.f32 %v1335, 0.7978846
        %v1368 = vmul.f32 %v1336, 0.7978846
        %v1369 = vmul.f32 %v1337, 0.7978846
        %v1370 = vmul.f32 %v1338, 0.7978846
        %v1371 = vmul.f32 %v1339, 0.7978846
        %v1372 = vmul.f32 %v1340, 0.7978846
        %v1373 = vmul.f32 %v1341, 0.7978846
        %v1374 = vmul.f32 %v1342, 0.7978846
        %v1375 = vmul.f32 %v1343, 0.7978846
        %v1376 = vmul.f32 %v1344, 0.7978846
        %v1377 = vmul.f32 %v1345, 0.7978846
        %v1378 = vmul.f32 %v1346, 0.7978846
        %v1379 = vmul.f32 %v1347, 0.7978846
        %v1380 = vmul.f32 %v1348, 0.7978846
        %v1381 = vmul.f32 %v1349, 0.7978846
        %v1382 = vmul.f32 %v1350, 0.7978846
        %v1383 = vmul.f32 %v1351, 0.7978846
        %v1384 = vmul.f32 %v1352, 0.7978846
        %v1385 = vmul.f32 %v1353, 0.7978846
        %v1386 = vmul.f32 %v1354, 0.7978846
        %v1387 = vtanh.pop %v1355
        %v1388 = vtanh.pop %v1356
        %v1389 = vtanh.pop %v1357
        %v1390 = vtanh.pop %v1358
        %v1391 = vtanh.pop %v1359
        %v1392 = vtanh.pop %v1360
        %v1393 = vtanh.pop %v1361
        %v1394 = vtanh.pop %v1362
        %v1395 = vtanh.pop %v1363
        %v1396 = vtanh.pop %v1364
        %v1397 = vtanh.pop %v1365
        %v1398 = vtanh.pop %v1366
        %v1399 = vtanh.pop %v1367
        %v1400 = vtanh.pop %v1368
        %v1401 = vtanh.pop %v1369
        %v1402 = vtanh.pop %v1370
        %v1403 = vtanh.pop %v1371
        %v1404 = vtanh.pop %v1372
        %v1405 = vtanh.pop %v1373
        %v1406 = vtanh.pop %v1374
        %v1407 = vtanh.pop %v1375
        %v1408 = vtanh.pop %v1376
        %v1409 = vtanh.pop %v1377
        %v1410 = vtanh.pop %v1378
        %v1411 = vtanh.pop %v1379
        %v1412 = vtanh.pop %v1380
        %v1413 = vtanh.pop %v1381
        %v1414 = vtanh.pop %v1382
        %v1415 = vtanh.pop %v1383
        %v1416 = vtanh.pop %v1384
        %v1417 = vtanh.pop %v1385
        %v1418 = vtanh.pop %v1386
        %v1419 = vadd.f32 %v1387, 1.0
        %v1420 = vadd.f32 %v1388, 1.0
        %v1421 = vadd.f32 %v1389, 1.0
        %v1422 = vadd.f32 %v1390, 1.0
        %v1423 = vadd.f32 %v1391, 1.0
        %v1424 = vadd.f32 %v1392, 1.0
        %v1425 = vadd.f32 %v1393, 1.0
        %v1426 = vadd.f32 %v1394, 1.0
        %v1427 = vadd.f32 %v1395, 1.0
        %v1428 = vadd.f32 %v1396, 1.0
        %v1429 = vadd.f32 %v1397, 1.0
        %v1430 = vadd.f32 %v1398, 1.0
        %v1431 = vadd.f32 %v1399, 1.0
        %v1432 = vadd.f32 %v1400, 1.0
        %v1433 = vadd.f32 %v1401, 1.0
        %v1434 = vadd.f32 %v1402, 1.0
        %v1435 = vadd.f32 %v1403, 1.0
        %v1436 = vadd.f32 %v1404, 1.0
        %v1437 = vadd.f32 %v1405, 1.0
        %v1438 = vadd.f32 %v1406, 1.0
        %v1439 = vadd.f32 %v1407, 1.0
        %v1440 = vadd.f32 %v1408, 1.0
        %v1441 = vadd.f32 %v1409, 1.0
        %v1442 = vadd.f32 %v1410, 1.0
        %v1443 = vadd.f32 %v1411, 1.0
        %v1444 = vadd.f32 %v1412, 1.0
        %v1445 = vadd.f32 %v1413, 1.0
        %v1446 = vadd.f32 %v1414, 1.0
        %v1447 = vadd.f32 %v1415, 1.0
        %v1448 = vadd.f32 %v1416, 1.0
        %v1449 = vadd.f32 %v1417, 1.0
        %v1450 = vadd.f32 %v1418, 1.0
        %v1451 = vmul.f32 %v1419, 0.5
        %v1452 = vmul.f32 %v1420, 0.5
        %v1453 = vmul.f32 %v1421, 0.5
        %v1454 = vmul.f32 %v1422, 0.5
        %v1455 = vmul.f32 %v1423, 0.5
        %v1456 = vmul.f32 %v1424, 0.5
        %v1457 = vmul.f32 %v1425, 0.5
        %v1458 = vmul.f32 %v1426, 0.5
        %v1459 = vmul.f32 %v1427, 0.5
        %v1460 = vmul.f32 %v1428, 0.5
        %v1461 = vmul.f32 %v1429, 0.5
        %v1462 = vmul.f32 %v1430, 0.5
        %v1463 = vmul.f32 %v1431, 0.5
        %v1464 = vmul.f32 %v1432, 0.5
        %v1465 = vmul.f32 %v1433, 0.5
        %v1466 = vmul.f32 %v1434, 0.5
        %v1467 = vmul.f32 %v1435, 0.5
        %v1468 = vmul.f32 %v1436, 0.5
        %v1469 = vmul.f32 %v1437, 0.5
        %v1470 = vmul.f32 %v1438, 0.5
        %v1471 = vmul.f32 %v1439, 0.5
        %v1472 = vmul.f32 %v1440, 0.5
        %v1473 = vmul.f32 %v1441, 0.5
        %v1474 = vmul.f32 %v1442, 0.5
        %v1475 = vmul.f32 %v1443, 0.5
        %v1476 = vmul.f32 %v1444, 0.5
        %v1477 = vmul.f32 %v1445, 0.5
        %v1478 = vmul.f32 %v1446, 0.5
        %v1479 = vmul.f32 %v1447, 0.5
        %v1480 = vmul.f32 %v1448, 0.5
        %v1481 = vmul.f32 %v1449, 0.5
        %v1482 = vmul.f32 %v1450, 0.5
        %v1483 = vmul.f32 %v1148, %v1451
        %v1484 = vmul.f32 %v1150, %v1452
        %v1485 = vmul.f32 %v1153, %v1453
        %v1486 = vmul.f32 %v1155, %v1454
        %v1487 = vmul.f32 %v1158, %v1455
        %v1488 = vmul.f32 %v1160, %v1456
        %v1489 = vmul.f32 %v1163, %v1457
        %v1490 = vmul.f32 %v1165, %v1458
        %v1491 = vmul.f32 %v1168, %v1459
        %v1492 = vmul.f32 %v1170, %v1460
        %v1493 = vmul.f32 %v1173, %v1461
        %v1494 = vmul.f32 %v1175, %v1462
        %v1495 = vmul.f32 %v1178, %v1463
        %v1496 = vmul.f32 %v1180, %v1464
        %v1497 = vmul.f32 %v1183, %v1465
        %v1498 = vmul.f32 %v1185, %v1466
        %v1499 = vmul.f32 %v1188, %v1467
        %v1500 = vmul.f32 %v1190, %v1468
        %v1501 = vmul.f32 %v1193, %v1469
        %v1502 = vmul.f32 %v1195, %v1470
        %v1503 = vmul.f32 %v1198, %v1471
        %v1504 = vmul.f32 %v1200, %v1472
        %v1505 = vmul.f32 %v1203, %v1473
        %v1506 = vmul.f32 %v1205, %v1474
        %v1507 = vmul.f32 %v1208, %v1475
        %v1508 = vmul.f32 %v1210, %v1476
        %v1509 = vmul.f32 %v1213, %v1477
        %v1510 = vmul.f32 %v1215, %v1478
        %v1511 = vmul.f32 %v1218, %v1479
        %v1512 = vmul.f32 %v1220, %v1480
        %v1513 = vmul.f32 %v1223, %v1481
        %v1514 = vmul.f32 %v1225, %v1482
        %v1515 = vpack.c.bf16 %v1484, %v1483
        %v1516 = vpack.c.bf16 %v1486, %v1485
        %v1517 = vpack.c.bf16 %v1488, %v1487
        %v1518 = vpack.c.bf16 %v1490, %v1489
        %v1519 = vpack.c.bf16 %v1492, %v1491
        %v1520 = vpack.c.bf16 %v1494, %v1493
        %v1521 = vpack.c.bf16 %v1496, %v1495
        %v1522 = vpack.c.bf16 %v1498, %v1497
        %v1523 = vpack.c.bf16 %v1500, %v1499
        %v1524 = vpack.c.bf16 %v1502, %v1501
        %v1525 = vpack.c.bf16 %v1504, %v1503
        %v1526 = vpack.c.bf16 %v1506, %v1505
        %v1527 = vpack.c.bf16 %v1508, %v1507
        %v1528 = vpack.c.bf16 %v1510, %v1509
        %v1529 = vpack.c.bf16 %v1512, %v1511
        %v1530 = vpack.c.bf16 %v1514, %v1513
        %v1547 = vunpack.c.l.b16 %v589
        %v1548 = vunpack.c.h.b16 %v589
        %v1549 = vunpack.c.l.b16 %v590
        %v1550 = vunpack.c.h.b16 %v590
        %v1551 = vunpack.c.l.b16 %v591
        %v1552 = vunpack.c.h.b16 %v591
        %v1553 = vunpack.c.l.b16 %v592
        %v1554 = vunpack.c.h.b16 %v592
        %v1555 = vunpack.c.l.b16 %v593
        %v1556 = vunpack.c.h.b16 %v593
        %v1557 = vunpack.c.l.b16 %v594
        %v1558 = vunpack.c.h.b16 %v594
        %v1559 = vunpack.c.l.b16 %v595
        %v1560 = vunpack.c.h.b16 %v595
        %v1561 = vunpack.c.l.b16 %v596
        %v1562 = vunpack.c.h.b16 %v596
        %v1563 = vunpack.c.l.b16 %v597
        %v1564 = vunpack.c.h.b16 %v597
        %v1565 = vunpack.c.l.b16 %v598
        %v1566 = vunpack.c.h.b16 %v598
        %v1567 = vunpack.c.l.b16 %v599
        %v1568 = vunpack.c.h.b16 %v599
        %v1569 = vunpack.c.l.b16 %v600
        %v1570 = vunpack.c.h.b16 %v600
        %v1571 = vunpack.c.l.b16 %v601
        %v1572 = vunpack.c.h.b16 %v601
        %v1573 = vunpack.c.l.b16 %v602
        %v1574 = vunpack.c.h.b16 %v602
        %v1575 = vunpack.c.l.b16 %v603
        %v1576 = vunpack.c.h.b16 %v603
        %v1577 = vunpack.c.l.b16 %v604
        %v1578 = vunpack.c.h.b16 %v604
        %v1579 = vpack.c.b16 %v1549, %v1547
        %v1580 = vpack.c.b16 %v1550, %v1548
        %v1581 = vpack.c.b16 %v1553, %v1551
        %v1582 = vpack.c.b16 %v1554, %v1552
        %v1583 = vpack.c.b16 %v1557, %v1555
        %v1584 = vpack.c.b16 %v1558, %v1556
        %v1585 = vpack.c.b16 %v1561, %v1559
        %v1586 = vpack.c.b16 %v1562, %v1560
        %v1587 = vpack.c.b16 %v1565, %v1563
        %v1588 = vpack.c.b16 %v1566, %v1564
        %v1589 = vpack.c.b16 %v1569, %v1567
        %v1590 = vpack.c.b16 %v1570, %v1568
        %v1591 = vpack.c.b16 %v1573, %v1571
        %v1592 = vpack.c.b16 %v1574, %v1572
        %v1593 = vpack.c.b16 %v1577, %v1575
        %v1594 = vpack.c.b16 %v1578, %v1576
        %1611 = vmatpush.bf16.msra.mxu0 %v1522
        %1612 = vmatpush.bf16.msra.mxu0 %v1521
        %1613 = vmatpush.bf16.msra.mxu0 %v1520
        %1614 = vmatpush.bf16.msra.mxu0 %v1519
        %1615 = vmatpush.bf16.msra.mxu0 %v1518
        %1616 = vmatpush.bf16.msra.mxu0 %v1517
        %1617 = vmatpush.bf16.msra.mxu0 %v1516
        %1618 = vmatpush.bf16.msra.mxu0 %v1515
        %1619 = vmatmul.bf16.gmra.mxu0 %v1579
        %v1620 = vpop.f32.mrf.mxu0
        %v1621 = vadd.f32 %v605, %v1620
        %v1622 = vpop.f32.mrf.mxu0
        %v1623 = vadd.f32 %v606, %v1622
        %1624 = vmatmul.bf16.gmra.mxu0 %v1581
        %v1625 = vpop.f32.mrf.mxu0
        %v1626 = vadd.f32 %v607, %v1625
        %v1627 = vpop.f32.mrf.mxu0
        %v1628 = vadd.f32 %v608, %v1627
        %1629 = vmatmul.bf16.gmra.mxu0 %v1583
        %v1630 = vpop.f32.mrf.mxu0
        %v1631 = vadd.f32 %v609, %v1630
        %v1632 = vpop.f32.mrf.mxu0
        %v1633 = vadd.f32 %v610, %v1632
        %1634 = vmatmul.bf16.gmra.mxu0 %v1585
        %v1635 = vpop.f32.mrf.mxu0
        %v1636 = vadd.f32 %v611, %v1635
        %v1637 = vpop.f32.mrf.mxu0
        %v1638 = vadd.f32 %v612, %v1637
        %1639 = vmatmul.bf16.gmra.mxu0 %v1587
        %v1640 = vpop.f32.mrf.mxu0
        %v1641 = vadd.f32 %v613, %v1640
        %v1642 = vpop.f32.mrf.mxu0
        %v1643 = vadd.f32 %v614, %v1642
        %1644 = vmatmul.bf16.gmra.mxu0 %v1589
        %v1645 = vpop.f32.mrf.mxu0
        %v1646 = vadd.f32 %v615, %v1645
        %v1647 = vpop.f32.mrf.mxu0
        %v1648 = vadd.f32 %v616, %v1647
        %1649 = vmatmul.bf16.gmra.mxu0 %v1591
        %v1650 = vpop.f32.mrf.mxu0
        %v1651 = vadd.f32 %v617, %v1650
        %v1652 = vpop.f32.mrf.mxu0
        %v1653 = vadd.f32 %v618, %v1652
        %1654 = vmatmul.bf16.gmra.mxu0 %v1593
        %v1655 = vpop.f32.mrf.mxu0
        %v1656 = vadd.f32 %v619, %v1655
        %v1657 = vpop.f32.mrf.mxu0
        %v1658 = vadd.f32 %v620, %v1657
        %1659 = vdwg.mxu0
        %1660 = vmatpush.bf16.msra.mxu0 %v1530
        %1661 = vmatpush.bf16.msra.mxu0 %v1529
        %1662 = vmatpush.bf16.msra.mxu0 %v1528
        %1663 = vmatpush.bf16.msra.mxu0 %v1527
        %1664 = vmatpush.bf16.msra.mxu0 %v1526
        %1665 = vmatpush.bf16.msra.mxu0 %v1525
        %1666 = vmatpush.bf16.msra.mxu0 %v1524
        %1667 = vmatpush.bf16.msra.mxu0 %v1523
        %1668 = vmatmul.bf16.gmra.mxu0 %v1580
        %v1669 = vpop.f32.mrf.mxu0
        %v1670 = vadd.f32 %v1621, %v1669
        %v1671 = vpop.f32.mrf.mxu0
        %v1672 = vadd.f32 %v1623, %v1671
        %1673 = vmatmul.bf16.gmra.mxu0 %v1582
        %v1674 = vpop.f32.mrf.mxu0
        %v1675 = vadd.f32 %v1626, %v1674
        %v1676 = vpop.f32.mrf.mxu0
        %v1677 = vadd.f32 %v1628, %v1676
        %1678 = vmatmul.bf16.gmra.mxu0 %v1584
        %v1679 = vpop.f32.mrf.mxu0
        %v1680 = vadd.f32 %v1631, %v1679
        %v1681 = vpop.f32.mrf.mxu0
        %v1682 = vadd.f32 %v1633, %v1681
        %1683 = vmatmul.bf16.gmra.mxu0 %v1586
        %v1684 = vpop.f32.mrf.mxu0
        %v1685 = vadd.f32 %v1636, %v1684
        %v1686 = vpop.f32.mrf.mxu0
        %v1687 = vadd.f32 %v1638, %v1686
        %1688 = vmatmul.bf16.gmra.mxu0 %v1588
        %v1689 = vpop.f32.mrf.mxu0
        %v1690 = vadd.f32 %v1641, %v1689
        %v1691 = vpop.f32.mrf.mxu0
        %v1692 = vadd.f32 %v1643, %v1691
        %1693 = vmatmul.bf16.gmra.mxu0 %v1590
        %v1694 = vpop.f32.mrf.mxu0
        %v1695 = vadd.f32 %v1646, %v1694
        %v1696 = vpop.f32.mrf.mxu0
        %v1697 = vadd.f32 %v1648, %v1696
        %1698 = vmatmul.bf16.gmra.mxu0 %v1592
        %v1699 = vpop.f32.mrf.mxu0
        %v1700 = vadd.f32 %v1651, %v1699
        %v1701 = vpop.f32.mrf.mxu0
        %v1702 = vadd.f32 %v1653, %v1701
        %1703 = vmatmul.bf16.gmra.mxu0 %v1594
        %v1704 = vpop.f32.mrf.mxu0
        %v1705 = vadd.f32 %v1656, %v1704
        %v1706 = vpop.f32.mrf.mxu0
        %v1707 = vadd.f32 %v1658, %v1706
        %1708 = vdwg.mxu0
        %v1709 = vadd.f32 %v621, %v1670
        %v1710 = vadd.f32 %v622, %v1672
        %v1711 = vadd.f32 %v623, %v1675
        %v1712 = vadd.f32 %v624, %v1677
        %v1713 = vadd.f32 %v625, %v1680
        %v1714 = vadd.f32 %v626, %v1682
        %v1715 = vadd.f32 %v627, %v1685
        %v1716 = vadd.f32 %v628, %v1687
        %v1717 = vadd.f32 %v629, %v1690
        %v1718 = vadd.f32 %v630, %v1692
        %v1719 = vadd.f32 %v631, %v1695
        %v1720 = vadd.f32 %v632, %v1697
        %v1721 = vadd.f32 %v633, %v1700
        %v1722 = vadd.f32 %v634, %v1702
        %v1723 = vadd.f32 %v635, %v1705
        %v1724 = vadd.f32 %v636, %v1707
        %1725 = vst [vmem:[#allocation2] sm:$0xff] %v1709
        %1726 = vst [vmem:[#allocation2 + $0x8] sm:$0xff] %v1710
        %1727 = vst [vmem:[#allocation2 + $0x10] sm:$0xff] %v1711
        %1728 = vst [vmem:[#allocation2 + $0x18] sm:$0xff] %v1712
        %1729 = vst [vmem:[#allocation2 + $0x20] sm:$0xff] %v1713
        %1730 = vst [vmem:[#allocation2 + $0x28] sm:$0xff] %v1714
        %1731 = vst [vmem:[#allocation2 + $0x30] sm:$0xff] %v1715
        %1732 = vst [vmem:[#allocation2 + $0x38] sm:$0xff] %v1716
        %1733 = vst [vmem:[#allocation2 + $0x40] sm:$0xff] %v1717
        %1734 = vst [vmem:[#allocation2 + $0x48] sm:$0xff] %v1718
        %1735 = vst [vmem:[#allocation2 + $0x50] sm:$0xff] %v1719
        %1736 = vst [vmem:[#allocation2 + $0x58] sm:$0xff] %v1720
        %1737 = vst [vmem:[#allocation2 + $0x60] sm:$0xff] %v1721
        %1738 = vst [vmem:[#allocation2 + $0x68] sm:$0xff] %v1722
        %1739 = vst [vmem:[#allocation2 + $0x70] sm:$0xff] %v1723
        %1740 = vst [vmem:[#allocation2 + $0x78] sm:$0xff] %v1724
        %s1741 = scalar_lea.vmem %s446, 128 [#allocation3]
        %v1742 = vld [vmem:[%s1741] sm:$0xff]
        %v1743 = vld [vmem:[%s1741 + $0x8] sm:$0xff]
        %v1744 = vld [vmem:[%s1741 + $0x10] sm:$0xff]
        %v1745 = vld [vmem:[%s1741 + $0x18] sm:$0xff]
        %v1746 = vld [vmem:[%s1741 + $0x20] sm:$0xff]
        %v1747 = vld [vmem:[%s1741 + $0x28] sm:$0xff]
        %v1748 = vld [vmem:[%s1741 + $0x30] sm:$0xff]
        %v1749 = vld [vmem:[%s1741 + $0x38] sm:$0xff]
        %v1750 = vld [vmem:[%s1741 + $0x40] sm:$0xff]
        %v1751 = vld [vmem:[%s1741 + $0x48] sm:$0xff]
        %v1752 = vld [vmem:[%s1741 + $0x50] sm:$0xff]
        %v1753 = vld [vmem:[%s1741 + $0x58] sm:$0xff]
        %v1754 = vld [vmem:[%s1741 + $0x60] sm:$0xff]
        %v1755 = vld [vmem:[%s1741 + $0x68] sm:$0xff]
        %v1756 = vld [vmem:[%s1741 + $0x70] sm:$0xff]
        %v1757 = vld [vmem:[%s1741 + $0x78] sm:$0xff]
        %1758 = vadd.xlane.f32.xlu0 %v1742
        %v1759 = vpop.xlane.xlu0 %1758
        %1760 = vadd.xlane.f32.xlu0 %v1743
        %v1761 = vpop.xlane.xlu0 %1760
        %1762 = vadd.xlane.f32.xlu0 %v1744
        %v1763 = vpop.xlane.xlu0 %1762
        %1764 = vadd.xlane.f32.xlu0 %v1745
        %v1765 = vpop.xlane.xlu0 %1764
        %1766 = vadd.xlane.f32.xlu0 %v1746
        %v1767 = vpop.xlane.xlu0 %1766
        %1768 = vadd.xlane.f32.xlu0 %v1747
        %v1769 = vpop.xlane.xlu0 %1768
        %1770 = vadd.xlane.f32.xlu0 %v1748
        %v1771 = vpop.xlane.xlu0 %1770
        %1772 = vadd.xlane.f32.xlu0 %v1749
        %v1773 = vpop.xlane.xlu0 %1772
        %1774 = vadd.xlane.f32.xlu0 %v1750
        %v1775 = vpop.xlane.xlu0 %1774
        %1776 = vadd.xlane.f32.xlu0 %v1751
        %v1777 = vpop.xlane.xlu0 %1776
        %1778 = vadd.xlane.f32.xlu0 %v1752
        %v1779 = vpop.xlane.xlu0 %1778
        %1780 = vadd.xlane.f32.xlu0 %v1753
        %v1781 = vpop.xlane.xlu0 %1780
        %1782 = vadd.xlane.f32.xlu0 %v1754
        %v1783 = vpop.xlane.xlu0 %1782
        %1784 = vadd.xlane.f32.xlu0 %v1755
        %v1785 = vpop.xlane.xlu0 %1784
        %1786 = vadd.xlane.f32.xlu0 %v1756
        %v1787 = vpop.xlane.xlu0 %1786
        %1788 = vadd.xlane.f32.xlu0 %v1757
        %v1789 = vpop.xlane.xlu0 %1788
        %v1790 = vmul.f32 %v1759, %v675
        %v1791 = vmul.f32 %v1761, %v675
        %v1792 = vmul.f32 %v1763, %v675
        %v1793 = vmul.f32 %v1765, %v675
        %v1794 = vmul.f32 %v1767, %v675
        %v1795 = vmul.f32 %v1769, %v675
        %v1796 = vmul.f32 %v1771, %v675
        %v1797 = vmul.f32 %v1773, %v675
        %v1798 = vmul.f32 %v1775, %v675
        %v1799 = vmul.f32 %v1777, %v675
        %v1800 = vmul.f32 %v1779, %v675
        %v1801 = vmul.f32 %v1781, %v675
        %v1802 = vmul.f32 %v1783, %v675
        %v1803 = vmul.f32 %v1785, %v675
        %v1804 = vmul.f32 %v1787, %v675
        %v1805 = vmul.f32 %v1789, %v675
        %v1806 = vmul.f32 %v1742, %v1742
        %v1807 = vmul.f32 %v1743, %v1743
        %v1808 = vmul.f32 %v1744, %v1744
        %v1809 = vmul.f32 %v1745, %v1745
        %v1810 = vmul.f32 %v1746, %v1746
        %v1811 = vmul.f32 %v1747, %v1747
        %v1812 = vmul.f32 %v1748, %v1748
        %v1813 = vmul.f32 %v1749, %v1749
        %v1814 = vmul.f32 %v1750, %v1750
        %v1815 = vmul.f32 %v1751, %v1751
        %v1816 = vmul.f32 %v1752, %v1752
        %v1817 = vmul.f32 %v1753, %v1753
        %v1818 = vmul.f32 %v1754, %v1754
        %v1819 = vmul.f32 %v1755, %v1755
        %v1820 = vmul.f32 %v1756, %v1756
        %v1821 = vmul.f32 %v1757, %v1757
        %1822 = vadd.xlane.f32.xlu0 %v1806
        %v1823 = vpop.xlane.xlu0 %1822
        %1824 = vadd.xlane.f32.xlu0 %v1807
        %v1825 = vpop.xlane.xlu0 %1824
        %1826 = vadd.xlane.f32.xlu0 %v1808
        %v1827 = vpop.xlane.xlu0 %1826
        %1828 = vadd.xlane.f32.xlu0 %v1809
        %v1829 = vpop.xlane.xlu0 %1828
        %1830 = vadd.xlane.f32.xlu0 %v1810
        %v1831 = vpop.xlane.xlu0 %1830
        %1832 = vadd.xlane.f32.xlu0 %v1811
        %v1833 = vpop.xlane.xlu0 %1832
        %1834 = vadd.xlane.f32.xlu0 %v1812
        %v1835 = vpop.xlane.xlu0 %1834
        %1836 = vadd.xlane.f32.xlu0 %v1813
        %v1837 = vpop.xlane.xlu0 %1836
        %1838 = vadd.xlane.f32.xlu0 %v1814
        %v1839 = vpop.xlane.xlu0 %1838
        %1840 = vadd.xlane.f32.xlu0 %v1815
        %v1841 = vpop.xlane.xlu0 %1840
        %1842 = vadd.xlane.f32.xlu0 %v1816
        %v1843 = vpop.xlane.xlu0 %1842
        %1844 = vadd.xlane.f32.xlu0 %v1817
        %v1845 = vpop.xlane.xlu0 %1844
        %1846 = vadd.xlane.f32.xlu0 %v1818
        %v1847 = vpop.xlane.xlu0 %1846
        %1848 = vadd.xlane.f32.xlu0 %v1819
        %v1849 = vpop.xlane.xlu0 %1848
        %1850 = vadd.xlane.f32.xlu0 %v1820
        %v1851 = vpop.xlane.xlu0 %1850
        %1852 = vadd.xlane.f32.xlu0 %v1821
        %v1853 = vpop.xlane.xlu0 %1852
        %v1854 = vmul.f32 %v1823, %v675
        %v1855 = vmul.f32 %v1825, %v675
        %v1856 = vmul.f32 %v1827, %v675
        %v1857 = vmul.f32 %v1829, %v675
        %v1858 = vmul.f32 %v1831, %v675
        %v1859 = vmul.f32 %v1833, %v675
        %v1860 = vmul.f32 %v1835, %v675
        %v1861 = vmul.f32 %v1837, %v675
        %v1862 = vmul.f32 %v1839, %v675
        %v1863 = vmul.f32 %v1841, %v675
        %v1864 = vmul.f32 %v1843, %v675
        %v1865 = vmul.f32 %v1845, %v675
        %v1866 = vmul.f32 %v1847, %v675
        %v1867 = vmul.f32 %v1849, %v675
        %v1868 = vmul.f32 %v1851, %v675
        %v1869 = vmul.f32 %v1853, %v675
        %v1870 = vmul.f32 %v1790, %v1790
        %v1871 = vmul.f32 %v1791, %v1791
        %v1872 = vmul.f32 %v1792, %v1792
        %v1873 = vmul.f32 %v1793, %v1793
        %v1874 = vmul.f32 %v1794, %v1794
        %v1875 = vmul.f32 %v1795, %v1795
        %v1876 = vmul.f32 %v1796, %v1796
        %v1877 = vmul.f32 %v1797, %v1797
        %v1878 = vmul.f32 %v1798, %v1798
        %v1879 = vmul.f32 %v1799, %v1799
        %v1880 = vmul.f32 %v1800, %v1800
        %v1881 = vmul.f32 %v1801, %v1801
        %v1882 = vmul.f32 %v1802, %v1802
        %v1883 = vmul.f32 %v1803, %v1803
        %v1884 = vmul.f32 %v1804, %v1804
        %v1885 = vmul.f32 %v1805, %v1805
        %v1886 = vsub.f32 %v1854, %v1870
        %v1887 = vsub.f32 %v1855, %v1871
        %v1888 = vsub.f32 %v1856, %v1872
        %v1889 = vsub.f32 %v1857, %v1873
        %v1890 = vsub.f32 %v1858, %v1874
        %v1891 = vsub.f32 %v1859, %v1875
        %v1892 = vsub.f32 %v1860, %v1876
        %v1893 = vsub.f32 %v1861, %v1877
        %v1894 = vsub.f32 %v1862, %v1878
        %v1895 = vsub.f32 %v1863, %v1879
        %v1896 = vsub.f32 %v1864, %v1880
        %v1897 = vsub.f32 %v1865, %v1881
        %v1898 = vsub.f32 %v1866, %v1882
        %v1899 = vsub.f32 %v1867, %v1883
        %v1900 = vsub.f32 %v1868, %v1884
        %v1901 = vsub.f32 %v1869, %v1885
        %v1902 = vsub.f32 %v1742, %v1790
        %v1903 = vsub.f32 %v1743, %v1791
        %v1904 = vsub.f32 %v1744, %v1792
        %v1905 = vsub.f32 %v1745, %v1793
        %v1906 = vsub.f32 %v1746, %v1794
        %v1907 = vsub.f32 %v1747, %v1795
        %v1908 = vsub.f32 %v1748, %v1796
        %v1909 = vsub.f32 %v1749, %v1797
        %v1910 = vsub.f32 %v1750, %v1798
        %v1911 = vsub.f32 %v1751, %v1799
        %v1912 = vsub.f32 %v1752, %v1800
        %v1913 = vsub.f32 %v1753, %v1801
        %v1914 = vsub.f32 %v1754, %v1802
        %v1915 = vsub.f32 %v1755, %v1803
        %v1916 = vsub.f32 %v1756, %v1804
        %v1917 = vsub.f32 %v1757, %v1805
        %v1918 = vadd.f32 %v1886, 1e-05
        %v1919 = vadd.f32 %v1887, 1e-05
        %v1920 = vadd.f32 %v1888, 1e-05
        %v1921 = vadd.f32 %v1889, 1e-05
        %v1922 = vadd.f32 %v1890, 1e-05
        %v1923 = vadd.f32 %v1891, 1e-05
        %v1924 = vadd.f32 %v1892, 1e-05
        %v1925 = vadd.f32 %v1893, 1e-05
        %v1926 = vadd.f32 %v1894, 1e-05
        %v1927 = vadd.f32 %v1895, 1e-05
        %v1928 = vadd.f32 %v1896, 1e-05
        %v1929 = vadd.f32 %v1897, 1e-05
        %v1930 = vadd.f32 %v1898, 1e-05
        %v1931 = vadd.f32 %v1899, 1e-05
        %v1932 = vadd.f32 %v1900, 1e-05
        %v1933 = vadd.f32 %v1901, 1e-05
        %v1934 = vrsqrt.pop %v1918
        %v1935 = vmul.f32 %v1934, %v1918
        %v1936 = vmul.f32 %v1935, %v1934
        %v1937 = vmul.f32 0.5, %v1936
        %v1938 = vsub.f32 1.5, %v1937
        %v1939 = vmul.f32 %v1934, %v1938
        %vm1940 = vweird.f32 %v1918
        %vm1941 = vweird.f32 %v1934
        %vm1942 = vmor %vm1940, %vm1941
        %v1943 = vsel %vm1942, %v1934, %v1939
        %v1944 = vrsqrt.pop %v1919
        %v1945 = vmul.f32 %v1944, %v1919
        %v1946 = vmul.f32 %v1945, %v1944
        %v1947 = vmul.f32 0.5, %v1946
        %v1948 = vsub.f32 1.5, %v1947
        %v1949 = vmul.f32 %v1944, %v1948
        %vm1950 = vweird.f32 %v1919
        %vm1951 = vweird.f32 %v1944
        %vm1952 = vmor %vm1950, %vm1951
        %v1953 = vsel %vm1952, %v1944, %v1949
        %v1954 = vrsqrt.pop %v1920
        %v1955 = vmul.f32 %v1954, %v1920
        %v1956 = vmul.f32 %v1955, %v1954
        %v1957 = vmul.f32 0.5, %v1956
        %v1958 = vsub.f32 1.5, %v1957
        %v1959 = vmul.f32 %v1954, %v1958
        %vm1960 = vweird.f32 %v1920
        %vm1961 = vweird.f32 %v1954
        %vm1962 = vmor %vm1960, %vm1961
        %v1963 = vsel %vm1962, %v1954, %v1959
        %v1964 = vrsqrt.pop %v1921
        %v1965 = vmul.f32 %v1964, %v1921
        %v1966 = vmul.f32 %v1965, %v1964
        %v1967 = vmul.f32 0.5, %v1966
        %v1968 = vsub.f32 1.5, %v1967
        %v1969 = vmul.f32 %v1964, %v1968
        %vm1970 = vweird.f32 %v1921
        %vm1971 = vweird.f32 %v1964
        %vm1972 = vmor %vm1970, %vm1971
        %v1973 = vsel %vm1972, %v1964, %v1969
        %v1974 = vrsqrt.pop %v1922
        %v1975 = vmul.f32 %v1974, %v1922
        %v1976 = vmul.f32 %v1975, %v1974
        %v1977 = vmul.f32 0.5, %v1976
        %v1978 = vsub.f32 1.5, %v1977
        %v1979 = vmul.f32 %v1974, %v1978
        %vm1980 = vweird.f32 %v1922
        %vm1981 = vweird.f32 %v1974
        %vm1982 = vmor %vm1980, %vm1981
        %v1983 = vsel %vm1982, %v1974, %v1979
        %v1984 = vrsqrt.pop %v1923
        %v1985 = vmul.f32 %v1984, %v1923
        %v1986 = vmul.f32 %v1985, %v1984
        %v1987 = vmul.f32 0.5, %v1986
        %v1988 = vsub.f32 1.5, %v1987
        %v1989 = vmul.f32 %v1984, %v1988
        %vm1990 = vweird.f32 %v1923
        %vm1991 = vweird.f32 %v1984
        %vm1992 = vmor %vm1990, %vm1991
        %v1993 = vsel %vm1992, %v1984, %v1989
        %v1994 = vrsqrt.pop %v1924
        %v1995 = vmul.f32 %v1994, %v1924
        %v1996 = vmul.f32 %v1995, %v1994
        %v1997 = vmul.f32 0.5, %v1996
        %v1998 = vsub.f32 1.5, %v1997
        %v1999 = vmul.f32 %v1994, %v1998
        %vm2000 = vweird.f32 %v1924
        %vm2001 = vweird.f32 %v1994
        %vm2002 = vmor %vm2000, %vm2001
        %v2003 = vsel %vm2002, %v1994, %v1999
        %v2004 = vrsqrt.pop %v1925
        %v2005 = vmul.f32 %v2004, %v1925
        %v2006 = vmul.f32 %v2005, %v2004
        %v2007 = vmul.f32 0.5, %v2006
        %v2008 = vsub.f32 1.5, %v2007
        %v2009 = vmul.f32 %v2004, %v2008
        %vm2010 = vweird.f32 %v1925
        %vm2011 = vweird.f32 %v2004
        %vm2012 = vmor %vm2010, %vm2011
        %v2013 = vsel %vm2012, %v2004, %v2009
        %v2014 = vrsqrt.pop %v1926
        %v2015 = vmul.f32 %v2014, %v1926
        %v2016 = vmul.f32 %v2015, %v2014
        %v2017 = vmul.f32 0.5, %v2016
        %v2018 = vsub.f32 1.5, %v2017
        %v2019 = vmul.f32 %v2014, %v2018
        %vm2020 = vweird.f32 %v1926
        %vm2021 = vweird.f32 %v2014
        %vm2022 = vmor %vm2020, %vm2021
        %v2023 = vsel %vm2022, %v2014, %v2019
        %v2024 = vrsqrt.pop %v1927
        %v2025 = vmul.f32 %v2024, %v1927
        %v2026 = vmul.f32 %v2025, %v2024
        %v2027 = vmul.f32 0.5, %v2026
        %v2028 = vsub.f32 1.5, %v2027
        %v2029 = vmul.f32 %v2024, %v2028
        %vm2030 = vweird.f32 %v1927
        %vm2031 = vweird.f32 %v2024
        %vm2032 = vmor %vm2030, %vm2031
        %v2033 = vsel %vm2032, %v2024, %v2029
        %v2034 = vrsqrt.pop %v1928
        %v2035 = vmul.f32 %v2034, %v1928
        %v2036 = vmul.f32 %v2035, %v2034
        %v2037 = vmul.f32 0.5, %v2036
        %v2038 = vsub.f32 1.5, %v2037
        %v2039 = vmul.f32 %v2034, %v2038
        %vm2040 = vweird.f32 %v1928
        %vm2041 = vweird.f32 %v2034
        %vm2042 = vmor %vm2040, %vm2041
        %v2043 = vsel %vm2042, %v2034, %v2039
        %v2044 = vrsqrt.pop %v1929
        %v2045 = vmul.f32 %v2044, %v1929
        %v2046 = vmul.f32 %v2045, %v2044
        %v2047 = vmul.f32 0.5, %v2046
        %v2048 = vsub.f32 1.5, %v2047
        %v2049 = vmul.f32 %v2044, %v2048
        %vm2050 = vweird.f32 %v1929
        %vm2051 = vweird.f32 %v2044
        %vm2052 = vmor %vm2050, %vm2051
        %v2053 = vsel %vm2052, %v2044, %v2049
        %v2054 = vrsqrt.pop %v1930
        %v2055 = vmul.f32 %v2054, %v1930
        %v2056 = vmul.f32 %v2055, %v2054
        %v2057 = vmul.f32 0.5, %v2056
        %v2058 = vsub.f32 1.5, %v2057
        %v2059 = vmul.f32 %v2054, %v2058
        %vm2060 = vweird.f32 %v1930
        %vm2061 = vweird.f32 %v2054
        %vm2062 = vmor %vm2060, %vm2061
        %v2063 = vsel %vm2062, %v2054, %v2059
        %v2064 = vrsqrt.pop %v1931
        %v2065 = vmul.f32 %v2064, %v1931
        %v2066 = vmul.f32 %v2065, %v2064
        %v2067 = vmul.f32 0.5, %v2066
        %v2068 = vsub.f32 1.5, %v2067
        %v2069 = vmul.f32 %v2064, %v2068
        %vm2070 = vweird.f32 %v1931
        %vm2071 = vweird.f32 %v2064
        %vm2072 = vmor %vm2070, %vm2071
        %v2073 = vsel %vm2072, %v2064, %v2069
        %v2074 = vrsqrt.pop %v1932
        %v2075 = vmul.f32 %v2074, %v1932
        %v2076 = vmul.f32 %v2075, %v2074
        %v2077 = vmul.f32 0.5, %v2076
        %v2078 = vsub.f32 1.5, %v2077
        %v2079 = vmul.f32 %v2074, %v2078
        %vm2080 = vweird.f32 %v1932
        %vm2081 = vweird.f32 %v2074
        %vm2082 = vmor %vm2080, %vm2081
        %v2083 = vsel %vm2082, %v2074, %v2079
        %v2084 = vrsqrt.pop %v1933
        %v2085 = vmul.f32 %v2084, %v1933
        %v2086 = vmul.f32 %v2085, %v2084
        %v2087 = vmul.f32 0.5, %v2086
        %v2088 = vsub.f32 1.5, %v2087
        %v2089 = vmul.f32 %v2084, %v2088
        %vm2090 = vweird.f32 %v1933
        %vm2091 = vweird.f32 %v2084
        %vm2092 = vmor %vm2090, %vm2091
        %v2093 = vsel %vm2092, %v2084, %v2089
        %v2094 = vmul.f32 %v1902, %v1943
        %v2095 = vmul.f32 %v1903, %v1953
        %v2096 = vmul.f32 %v1904, %v1963
        %v2097 = vmul.f32 %v1905, %v1973
        %v2098 = vmul.f32 %v1906, %v1983
        %v2099 = vmul.f32 %v1907, %v1993
        %v2100 = vmul.f32 %v1908, %v2003
        %v2101 = vmul.f32 %v1909, %v2013
        %v2102 = vmul.f32 %v1910, %v2023
        %v2103 = vmul.f32 %v1911, %v2033
        %v2104 = vmul.f32 %v1912, %v2043
        %v2105 = vmul.f32 %v1913, %v2053
        %v2106 = vmul.f32 %v1914, %v2063
        %v2107 = vmul.f32 %v1915, %v2073
        %v2108 = vmul.f32 %v1916, %v2083
        %v2109 = vmul.f32 %v1917, %v2093
        %v2110 = vmul.f32 %v2094, %v997
        %v2111 = vmul.f32 %v2095, %v997
        %v2112 = vmul.f32 %v2096, %v997
        %v2113 = vmul.f32 %v2097, %v997
        %v2114 = vmul.f32 %v2098, %v997
        %v2115 = vmul.f32 %v2099, %v997
        %v2116 = vmul.f32 %v2100, %v997
        %v2117 = vmul.f32 %v2101, %v997
        %v2118 = vmul.f32 %v2102, %v997
        %v2119 = vmul.f32 %v2103, %v997
        %v2120 = vmul.f32 %v2104, %v997
        %v2121 = vmul.f32 %v2105, %v997
        %v2122 = vmul.f32 %v2106, %v997
        %v2123 = vmul.f32 %v2107, %v997
        %v2124 = vmul.f32 %v2108, %v997
        %v2125 = vmul.f32 %v2109, %v997
        %v2126 = vadd.f32 %v2110, %v1016
        %v2127 = vadd.f32 %v2111, %v1016
        %v2128 = vadd.f32 %v2112, %v1016
        %v2129 = vadd.f32 %v2113, %v1016
        %v2130 = vadd.f32 %v2114, %v1016
        %v2131 = vadd.f32 %v2115, %v1016
        %v2132 = vadd.f32 %v2116, %v1016
        %v2133 = vadd.f32 %v2117, %v1016
        %v2134 = vadd.f32 %v2118, %v1016
        %v2135 = vadd.f32 %v2119, %v1016
        %v2136 = vadd.f32 %v2120, %v1016
        %v2137 = vadd.f32 %v2121, %v1016
        %v2138 = vadd.f32 %v2122, %v1016
        %v2139 = vadd.f32 %v2123, %v1016
        %v2140 = vadd.f32 %v2124, %v1016
        %v2141 = vadd.f32 %v2125, %v1016
        %v2142 = vpack.c.bf16 %v2127, %v2126
        %v2143 = vpack.c.bf16 %v2129, %v2128
        %v2144 = vpack.c.bf16 %v2131, %v2130
        %v2145 = vpack.c.bf16 %v2133, %v2132
        %v2146 = vpack.c.bf16 %v2135, %v2134
        %v2147 = vpack.c.bf16 %v2137, %v2136
        %v2148 = vpack.c.bf16 %v2139, %v2138
        %v2149 = vpack.c.bf16 %v2141, %v2140
        %2150 = vmatpush.bf16.msra.mxu0 %v2149
        %2151 = vmatpush.bf16.msra.mxu0 %v2148
        %2152 = vmatpush.bf16.msra.mxu0 %v2147
        %2153 = vmatpush.bf16.msra.mxu0 %v2146
        %2154 = vmatpush.bf16.msra.mxu0 %v2145
        %2155 = vmatpush.bf16.msra.mxu0 %v2144
        %2156 = vmatpush.bf16.msra.mxu0 %v2143
        %2157 = vmatpush.bf16.msra.mxu0 %v2142
        %2158 = vmatmul.bf16.gmra.mxu0 %v1106
        %v2159 = vpop.f32.mrf.mxu0
        %v2160 = vadd.f32 %v557, %v2159
        %v2161 = vpop.f32.mrf.mxu0
        %v2162 = vadd.f32 %v558, %v2161
        %2163 = vmatmul.bf16.gmra.mxu0 %v1107
        %v2164 = vpop.f32.mrf.mxu0
        %v2165 = vadd.f32 %v559, %v2164
        %v2166 = vpop.f32.mrf.mxu0
        %v2167 = vadd.f32 %v560, %v2166
        %2168 = vmatmul.bf16.gmra.mxu0 %v1108
        %v2169 = vpop.f32.mrf.mxu0
        %v2170 = vadd.f32 %v561, %v2169
        %v2171 = vpop.f32.mrf.mxu0
        %v2172 = vadd.f32 %v562, %v2171
        %2173 = vmatmul.bf16.gmra.mxu0 %v1109
        %v2174 = vpop.f32.mrf.mxu0
        %v2175 = vadd.f32 %v563, %v2174
        %v2176 = vpop.f32.mrf.mxu0
        %v2177 = vadd.f32 %v564, %v2176
        %2178 = vmatmul.bf16.gmra.mxu0 %v1110
        %v2179 = vpop.f32.mrf.mxu0
        %v2180 = vadd.f32 %v565, %v2179
        %v2181 = vpop.f32.mrf.mxu0
        %v2182 = vadd.f32 %v566, %v2181
        %2183 = vmatmul.bf16.gmra.mxu0 %v1111
        %v2184 = vpop.f32.mrf.mxu0
        %v2185 = vadd.f32 %v567, %v2184
        %v2186 = vpop.f32.mrf.mxu0
        %v2187 = vadd.f32 %v568, %v2186
        %2188 = vmatmul.bf16.gmra.mxu0 %v1112
        %v2189 = vpop.f32.mrf.mxu0
        %v2190 = vadd.f32 %v569, %v2189
        %v2191 = vpop.f32.mrf.mxu0
        %v2192 = vadd.f32 %v570, %v2191
        %2193 = vmatmul.bf16.gmra.mxu0 %v1113
        %v2194 = vpop.f32.mrf.mxu0
        %v2195 = vadd.f32 %v571, %v2194
        %v2196 = vpop.f32.mrf.mxu0
        %v2197 = vadd.f32 %v572, %v2196
        %2198 = vmatmul.bf16.gmra.mxu0 %v1114
        %v2199 = vpop.f32.mrf.mxu0
        %v2200 = vadd.f32 %v573, %v2199
        %v2201 = vpop.f32.mrf.mxu0
        %v2202 = vadd.f32 %v574, %v2201
        %2203 = vmatmul.bf16.gmra.mxu0 %v1115
        %v2204 = vpop.f32.mrf.mxu0
        %v2205 = vadd.f32 %v575, %v2204
        %v2206 = vpop.f32.mrf.mxu0
        %v2207 = vadd.f32 %v576, %v2206
        %2208 = vmatmul.bf16.gmra.mxu0 %v1116
        %v2209 = vpop.f32.mrf.mxu0
        %v2210 = vadd.f32 %v577, %v2209
        %v2211 = vpop.f32.mrf.mxu0
        %v2212 = vadd.f32 %v578, %v2211
        %2213 = vmatmul.bf16.gmra.mxu0 %v1117
        %v2214 = vpop.f32.mrf.mxu0
        %v2215 = vadd.f32 %v579, %v2214
        %v2216 = vpop.f32.mrf.mxu0
        %v2217 = vadd.f32 %v580, %v2216
        %2218 = vmatmul.bf16.gmra.mxu0 %v1118
        %v2219 = vpop.f32.mrf.mxu0
        %v2220 = vadd.f32 %v581, %v2219
        %v2221 = vpop.f32.mrf.mxu0
        %v2222 = vadd.f32 %v582, %v2221
        %2223 = vmatmul.bf16.gmra.mxu0 %v1119
        %v2224 = vpop.f32.mrf.mxu0
        %v2225 = vadd.f32 %v583, %v2224
        %v2226 = vpop.f32.mrf.mxu0
        %v2227 = vadd.f32 %v584, %v2226
        %2228 = vmatmul.bf16.gmra.mxu0 %v1120
        %v2229 = vpop.f32.mrf.mxu0
        %v2230 = vadd.f32 %v585, %v2229
        %v2231 = vpop.f32.mrf.mxu0
        %v2232 = vadd.f32 %v586, %v2231
        %2233 = vmatmul.bf16.gmra.mxu0 %v1121
        %v2234 = vpop.f32.mrf.mxu0
        %v2235 = vadd.f32 %v587, %v2234
        %v2236 = vpop.f32.mrf.mxu0
        %v2237 = vadd.f32 %v588, %v2236
        %2238 = vdwg.mxu0
        %v2239 = vmul.f32 %v2160, %v2160
        %v2240 = vmul.f32 %v2162, %v2162
        %v2241 = vmul.f32 %v2165, %v2165
        %v2242 = vmul.f32 %v2167, %v2167
        %v2243 = vmul.f32 %v2170, %v2170
        %v2244 = vmul.f32 %v2172, %v2172
        %v2245 = vmul.f32 %v2175, %v2175
        %v2246 = vmul.f32 %v2177, %v2177
        %v2247 = vmul.f32 %v2180, %v2180
        %v2248 = vmul.f32 %v2182, %v2182
        %v2249 = vmul.f32 %v2185, %v2185
        %v2250 = vmul.f32 %v2187, %v2187
        %v2251 = vmul.f32 %v2190, %v2190
        %v2252 = vmul.f32 %v2192, %v2192
        %v2253 = vmul.f32 %v2195, %v2195
        %v2254 = vmul.f32 %v2197, %v2197
        %v2255 = vmul.f32 %v2200, %v2200
        %v2256 = vmul.f32 %v2202, %v2202
        %v2257 = vmul.f32 %v2205, %v2205
        %v2258 = vmul.f32 %v2207, %v2207
        %v2259 = vmul.f32 %v2210, %v2210
        %v2260 = vmul.f32 %v2212, %v2212
        %v2261 = vmul.f32 %v2215, %v2215
        %v2262 = vmul.f32 %v2217, %v2217
        %v2263 = vmul.f32 %v2220, %v2220
        %v2264 = vmul.f32 %v2222, %v2222
        %v2265 = vmul.f32 %v2225, %v2225
        %v2266 = vmul.f32 %v2227, %v2227
        %v2267 = vmul.f32 %v2230, %v2230
        %v2268 = vmul.f32 %v2232, %v2232
        %v2269 = vmul.f32 %v2235, %v2235
        %v2270 = vmul.f32 %v2237, %v2237
        %v2271 = vmul.f32 %v2160, %v2239
        %v2272 = vmul.f32 %v2162, %v2240
        %v2273 = vmul.f32 %v2165, %v2241
        %v2274 = vmul.f32 %v2167, %v2242
        %v2275 = vmul.f32 %v2170, %v2243
        %v2276 = vmul.f32 %v2172, %v2244
        %v2277 = vmul.f32 %v2175, %v2245
        %v2278 = vmul.f32 %v2177, %v2246
        %v2279 = vmul.f32 %v2180, %v2247
        %v2280 = vmul.f32 %v2182, %v2248
        %v2281 = vmul.f32 %v2185, %v2249
        %v2282 = vmul.f32 %v2187, %v2250
        %v2283 = vmul.f32 %v2190, %v2251
        %v2284 = vmul.f32 %v2192, %v2252
        %v2285 = vmul.f32 %v2195, %v2253
        %v2286 = vmul.f32 %v2197, %v2254
        %v2287 = vmul.f32 %v2200, %v2255
        %v2288 = vmul.f32 %v2202, %v2256
        %v2289 = vmul.f32 %v2205, %v2257
        %v2290 = vmul.f32 %v2207, %v2258
        %v2291 = vmul.f32 %v2210, %v2259
        %v2292 = vmul.f32 %v2212, %v2260
        %v2293 = vmul.f32 %v2215, %v2261
        %v2294 = vmul.f32 %v2217, %v2262
        %v2295 = vmul.f32 %v2220, %v2263
        %v2296 = vmul.f32 %v2222, %v2264
        %v2297 = vmul.f32 %v2225, %v2265
        %v2298 = vmul.f32 %v2227, %v2266
        %v2299 = vmul.f32 %v2230, %v2267
        %v2300 = vmul.f32 %v2232, %v2268
        %v2301 = vmul.f32 %v2235, %v2269
        %v2302 = vmul.f32 %v2237, %v2270
        %v2303 = vmul.f32 %v2271, 0.044715
        %v2304 = vmul.f32 %v2272, 0.044715
        %v2305 = vmul.f32 %v2273, 0.044715
        %v2306 = vmul.f32 %v2274, 0.044715
        %v2307 = vmul.f32 %v2275, 0.044715
        %v2308 = vmul.f32 %v2276, 0.044715
        %v2309 = vmul.f32 %v2277, 0.044715
        %v2310 = vmul.f32 %v2278, 0.044715
        %v2311 = vmul.f32 %v2279, 0.044715
        %v2312 = vmul.f32 %v2280, 0.044715
        %v2313 = vmul.f32 %v2281, 0.044715
        %v2314 = vmul.f32 %v2282, 0.044715
        %v2315 = vmul.f32 %v2283, 0.044715
        %v2316 = vmul.f32 %v2284, 0.044715
        %v2317 = vmul.f32 %v2285, 0.044715
        %v2318 = vmul.f32 %v2286, 0.044715
        %v2319 = vmul.f32 %v2287, 0.044715
        %v2320 = vmul.f32 %v2288, 0.044715
        %v2321 = vmul.f32 %v2289, 0.044715
        %v2322 = vmul.f32 %v2290, 0.044715
        %v2323 = vmul.f32 %v2291, 0.044715
        %v2324 = vmul.f32 %v2292, 0.044715
        %v2325 = vmul.f32 %v2293, 0.044715
        %v2326 = vmul.f32 %v2294, 0.044715
        %v2327 = vmul.f32 %v2295, 0.044715
        %v2328 = vmul.f32 %v2296, 0.044715
        %v2329 = vmul.f32 %v2297, 0.044715
        %v2330 = vmul.f32 %v2298, 0.044715
        %v2331 = vmul.f32 %v2299, 0.044715
        %v2332 = vmul.f32 %v2300, 0.044715
        %v2333 = vmul.f32 %v2301, 0.044715
        %v2334 = vmul.f32 %v2302, 0.044715
        %v2335 = vadd.f32 %v2160, %v2303
        %v2336 = vadd.f32 %v2162, %v2304
        %v2337 = vadd.f32 %v2165, %v2305
        %v2338 = vadd.f32 %v2167, %v2306
        %v2339 = vadd.f32 %v2170, %v2307
        %v2340 = vadd.f32 %v2172, %v2308
        %v2341 = vadd.f32 %v2175, %v2309
        %v2342 = vadd.f32 %v2177, %v2310
        %v2343 = vadd.f32 %v2180, %v2311
        %v2344 = vadd.f32 %v2182, %v2312
        %v2345 = vadd.f32 %v2185, %v2313
        %v2346 = vadd.f32 %v2187, %v2314
        %v2347 = vadd.f32 %v2190, %v2315
        %v2348 = vadd.f32 %v2192, %v2316
        %v2349 = vadd.f32 %v2195, %v2317
        %v2350 = vadd.f32 %v2197, %v2318
        %v2351 = vadd.f32 %v2200, %v2319
        %v2352 = vadd.f32 %v2202, %v2320
        %v2353 = vadd.f32 %v2205, %v2321
        %v2354 = vadd.f32 %v2207, %v2322
        %v2355 = vadd.f32 %v2210, %v2323
        %v2356 = vadd.f32 %v2212, %v2324
        %v2357 = vadd.f32 %v2215, %v2325
        %v2358 = vadd.f32 %v2217, %v2326
        %v2359 = vadd.f32 %v2220, %v2327
        %v2360 = vadd.f32 %v2222, %v2328
        %v2361 = vadd.f32 %v2225, %v2329
        %v2362 = vadd.f32 %v2227, %v2330
        %v2363 = vadd.f32 %v2230, %v2331
        %v2364 = vadd.f32 %v2232, %v2332
        %v2365 = vadd.f32 %v2235, %v2333
        %v2366 = vadd.f32 %v2237, %v2334
        %v2367 = vmul.f32 %v2335, 0.7978846
        %v2368 = vmul.f32 %v2336, 0.7978846
        %v2369 = vmul.f32 %v2337, 0.7978846
        %v2370 = vmul.f32 %v2338, 0.7978846
        %v2371 = vmul.f32 %v2339, 0.7978846
        %v2372 = vmul.f32 %v2340, 0.7978846
        %v2373 = vmul.f32 %v2341, 0.7978846
        %v2374 = vmul.f32 %v2342, 0.7978846
        %v2375 = vmul.f32 %v2343, 0.7978846
        %v2376 = vmul.f32 %v2344, 0.7978846
        %v2377 = vmul.f32 %v2345, 0.7978846
        %v2378 = vmul.f32 %v2346, 0.7978846
        %v2379 = vmul.f32 %v2347, 0.7978846
        %v2380 = vmul.f32 %v2348, 0.7978846
        %v2381 = vmul.f32 %v2349, 0.7978846
        %v2382 = vmul.f32 %v2350, 0.7978846
        %v2383 = vmul.f32 %v2351, 0.7978846
        %v2384 = vmul.f32 %v2352, 0.7978846
        %v2385 = vmul.f32 %v2353, 0.7978846
        %v2386 = vmul.f32 %v2354, 0.7978846
        %v2387 = vmul.f32 %v2355, 0.7978846
        %v2388 = vmul.f32 %v2356, 0.7978846
        %v2389 = vmul.f32 %v2357, 0.7978846
        %v2390 = vmul.f32 %v2358, 0.7978846
        %v2391 = vmul.f32 %v2359, 0.7978846
        %v2392 = vmul.f32 %v2360, 0.7978846
        %v2393 = vmul.f32 %v2361, 0.7978846
        %v2394 = vmul.f32 %v2362, 0.7978846
        %v2395 = vmul.f32 %v2363, 0.7978846
        %v2396 = vmul.f32 %v2364, 0.7978846
        %v2397 = vmul.f32 %v2365, 0.7978846
        %v2398 = vmul.f32 %v2366, 0.7978846
        %v2399 = vtanh.pop %v2367
        %v2400 = vtanh.pop %v2368
        %v2401 = vtanh.pop %v2369
        %v2402 = vtanh.pop %v2370
        %v2403 = vtanh.pop %v2371
        %v2404 = vtanh.pop %v2372
        %v2405 = vtanh.pop %v2373
        %v2406 = vtanh.pop %v2374
        %v2407 = vtanh.pop %v2375
        %v2408 = vtanh.pop %v2376
        %v2409 = vtanh.pop %v2377
        %v2410 = vtanh.pop %v2378
        %v2411 = vtanh.pop %v2379
        %v2412 = vtanh.pop %v2380
        %v2413 = vtanh.pop %v2381
        %v2414 = vtanh.pop %v2382
        %v2415 = vtanh.pop %v2383
        %v2416 = vtanh.pop %v2384
        %v2417 = vtanh.pop %v2385
        %v2418 = vtanh.pop %v2386
        %v2419 = vtanh.pop %v2387
        %v2420 = vtanh.pop %v2388
        %v2421 = vtanh.pop %v2389
        %v2422 = vtanh.pop %v2390
        %v2423 = vtanh.pop %v2391
        %v2424 = vtanh.pop %v2392
        %v2425 = vtanh.pop %v2393
        %v2426 = vtanh.pop %v2394
        %v2427 = vtanh.pop %v2395
        %v2428 = vtanh.pop %v2396
        %v2429 = vtanh.pop %v2397
        %v2430 = vtanh.pop %v2398
        %v2431 = vadd.f32 %v2399, 1.0
        %v2432 = vadd.f32 %v2400, 1.0
        %v2433 = vadd.f32 %v2401, 1.0
        %v2434 = vadd.f32 %v2402, 1.0
        %v2435 = vadd.f32 %v2403, 1.0
        %v2436 = vadd.f32 %v2404, 1.0
        %v2437 = vadd.f32 %v2405, 1.0
        %v2438 = vadd.f32 %v2406, 1.0
        %v2439 = vadd.f32 %v2407, 1.0
        %v2440 = vadd.f32 %v2408, 1.0
        %v2441 = vadd.f32 %v2409, 1.0
        %v2442 = vadd.f32 %v2410, 1.0
        %v2443 = vadd.f32 %v2411, 1.0
        %v2444 = vadd.f32 %v2412, 1.0
        %v2445 = vadd.f32 %v2413, 1.0
        %v2446 = vadd.f32 %v2414, 1.0
        %v2447 = vadd.f32 %v2415, 1.0
        %v2448 = vadd.f32 %v2416, 1.0
        %v2449 = vadd.f32 %v2417, 1.0
        %v2450 = vadd.f32 %v2418, 1.0
        %v2451 = vadd.f32 %v2419, 1.0
        %v2452 = vadd.f32 %v2420, 1.0
        %v2453 = vadd.f32 %v2421, 1.0
        %v2454 = vadd.f32 %v2422, 1.0
        %v2455 = vadd.f32 %v2423, 1.0
        %v2456 = vadd.f32 %v2424, 1.0
        %v2457 = vadd.f32 %v2425, 1.0
        %v2458 = vadd.f32 %v2426, 1.0
        %v2459 = vadd.f32 %v2427, 1.0
        %v2460 = vadd.f32 %v2428, 1.0
        %v2461 = vadd.f32 %v2429, 1.0
        %v2462 = vadd.f32 %v2430, 1.0
        %v2463 = vmul.f32 %v2431, 0.5
        %v2464 = vmul.f32 %v2432, 0.5
        %v2465 = vmul.f32 %v2433, 0.5
        %v2466 = vmul.f32 %v2434, 0.5
        %v2467 = vmul.f32 %v2435, 0.5
        %v2468 = vmul.f32 %v2436, 0.5
        %v2469 = vmul.f32 %v2437, 0.5
        %v2470 = vmul.f32 %v2438, 0.5
        %v2471 = vmul.f32 %v2439, 0.5
        %v2472 = vmul.f32 %v2440, 0.5
        %v2473 = vmul.f32 %v2441, 0.5
        %v2474 = vmul.f32 %v2442, 0.5
        %v2475 = vmul.f32 %v2443, 0.5
        %v2476 = vmul.f32 %v2444, 0.5
        %v2477 = vmul.f32 %v2445, 0.5
        %v2478 = vmul.f32 %v2446, 0.5
        %v2479 = vmul.f32 %v2447, 0.5
        %v2480 = vmul.f32 %v2448, 0.5
        %v2481 = vmul.f32 %v2449, 0.5
        %v2482 = vmul.f32 %v2450, 0.5
        %v2483 = vmul.f32 %v2451, 0.5
        %v2484 = vmul.f32 %v2452, 0.5
        %v2485 = vmul.f32 %v2453, 0.5
        %v2486 = vmul.f32 %v2454, 0.5
        %v2487 = vmul.f32 %v2455, 0.5
        %v2488 = vmul.f32 %v2456, 0.5
        %v2489 = vmul.f32 %v2457, 0.5
        %v2490 = vmul.f32 %v2458, 0.5
        %v2491 = vmul.f32 %v2459, 0.5
        %v2492 = vmul.f32 %v2460, 0.5
        %v2493 = vmul.f32 %v2461, 0.5
        %v2494 = vmul.f32 %v2462, 0.5
        %v2495 = vmul.f32 %v2160, %v2463
        %v2496 = vmul.f32 %v2162, %v2464
        %v2497 = vmul.f32 %v2165, %v2465
        %v2498 = vmul.f32 %v2167, %v2466
        %v2499 = vmul.f32 %v2170, %v2467
        %v2500 = vmul.f32 %v2172, %v2468
        %v2501 = vmul.f32 %v2175, %v2469
        %v2502 = vmul.f32 %v2177, %v2470
        %v2503 = vmul.f32 %v2180, %v2471
        %v2504 = vmul.f32 %v2182, %v2472
        %v2505 = vmul.f32 %v2185, %v2473
        %v2506 = vmul.f32 %v2187, %v2474
        %v2507 = vmul.f32 %v2190, %v2475
        %v2508 = vmul.f32 %v2192, %v2476
        %v2509 = vmul.f32 %v2195, %v2477
        %v2510 = vmul.f32 %v2197, %v2478
        %v2511 = vmul.f32 %v2200, %v2479
        %v2512 = vmul.f32 %v2202, %v2480
        %v2513 = vmul.f32 %v2205, %v2481
        %v2514 = vmul.f32 %v2207, %v2482
        %v2515 = vmul.f32 %v2210, %v2483
        %v2516 = vmul.f32 %v2212, %v2484
        %v2517 = vmul.f32 %v2215, %v2485
        %v2518 = vmul.f32 %v2217, %v2486
        %v2519 = vmul.f32 %v2220, %v2487
        %v2520 = vmul.f32 %v2222, %v2488
        %v2521 = vmul.f32 %v2225, %v2489
        %v2522 = vmul.f32 %v2227, %v2490
        %v2523 = vmul.f32 %v2230, %v2491
        %v2524 = vmul.f32 %v2232, %v2492
        %v2525 = vmul.f32 %v2235, %v2493
        %v2526 = vmul.f32 %v2237, %v2494
        %v2527 = vpack.c.bf16 %v2496, %v2495
        %v2528 = vpack.c.bf16 %v2498, %v2497
        %v2529 = vpack.c.bf16 %v2500, %v2499
        %v2530 = vpack.c.bf16 %v2502, %v2501
        %v2531 = vpack.c.bf16 %v2504, %v2503
        %v2532 = vpack.c.bf16 %v2506, %v2505
        %v2533 = vpack.c.bf16 %v2508, %v2507
        %v2534 = vpack.c.bf16 %v2510, %v2509
        %v2535 = vpack.c.bf16 %v2512, %v2511
        %v2536 = vpack.c.bf16 %v2514, %v2513
        %v2537 = vpack.c.bf16 %v2516, %v2515
        %v2538 = vpack.c.bf16 %v2518, %v2517
        %v2539 = vpack.c.bf16 %v2520, %v2519
        %v2540 = vpack.c.bf16 %v2522, %v2521
        %v2541 = vpack.c.bf16 %v2524, %v2523
        %v2542 = vpack.c.bf16 %v2526, %v2525
        %2543 = vmatpush.bf16.msra.mxu0 %v2534
        %2544 = vmatpush.bf16.msra.mxu0 %v2533
        %2545 = vmatpush.bf16.msra.mxu0 %v2532
        %2546 = vmatpush.bf16.msra.mxu0 %v2531
        %2547 = vmatpush.bf16.msra.mxu0 %v2530
        %2548 = vmatpush.bf16.msra.mxu0 %v2529
        %2549 = vmatpush.bf16.msra.mxu0 %v2528
        %2550 = vmatpush.bf16.msra.mxu0 %v2527
        %2551 = vmatmul.bf16.gmra.mxu0 %v1579
        %v2552 = vpop.f32.mrf.mxu0
        %v2553 = vadd.f32 %v605, %v2552
        %v2554 = vpop.f32.mrf.mxu0
        %v2555 = vadd.f32 %v606, %v2554
        %2556 = vmatmul.bf16.gmra.mxu0 %v1581
        %v2557 = vpop.f32.mrf.mxu0
        %v2558 = vadd.f32 %v607, %v2557
        %v2559 = vpop.f32.mrf.mxu0
        %v2560 = vadd.f32 %v608, %v2559
        %2561 = vmatmul.bf16.gmra.mxu0 %v1583
        %v2562 = vpop.f32.mrf.mxu0
        %v2563 = vadd.f32 %v609, %v2562
        %v2564 = vpop.f32.mrf.mxu0
        %v2565 = vadd.f32 %v610, %v2564
        %2566 = vmatmul.bf16.gmra.mxu0 %v1585
        %v2567 = vpop.f32.mrf.mxu0
        %v2568 = vadd.f32 %v611, %v2567
        %v2569 = vpop.f32.mrf.mxu0
        %v2570 = vadd.f32 %v612, %v2569
        %2571 = vmatmul.bf16.gmra.mxu0 %v1587
        %v2572 = vpop.f32.mrf.mxu0
        %v2573 = vadd.f32 %v613, %v2572
        %v2574 = vpop.f32.mrf.mxu0
        %v2575 = vadd.f32 %v614, %v2574
        %2576 = vmatmul.bf16.gmra.mxu0 %v1589
        %v2577 = vpop.f32.mrf.mxu0
        %v2578 = vadd.f32 %v615, %v2577
        %v2579 = vpop.f32.mrf.mxu0
        %v2580 = vadd.f32 %v616, %v2579
        %2581 = vmatmul.bf16.gmra.mxu0 %v1591
        %v2582 = vpop.f32.mrf.mxu0
        %v2583 = vadd.f32 %v617, %v2582
        %v2584 = vpop.f32.mrf.mxu0
        %v2585 = vadd.f32 %v618, %v2584
        %2586 = vmatmul.bf16.gmra.mxu0 %v1593
        %v2587 = vpop.f32.mrf.mxu0
        %v2588 = vadd.f32 %v619, %v2587
        %v2589 = vpop.f32.mrf.mxu0
        %v2590 = vadd.f32 %v620, %v2589
        %2591 = vdwg.mxu0
        %2592 = vmatpush.bf16.msra.mxu0 %v2542
        %2593 = vmatpush.bf16.msra.mxu0 %v2541
        %2594 = vmatpush.bf16.msra.mxu0 %v2540
        %2595 = vmatpush.bf16.msra.mxu0 %v2539
        %2596 = vmatpush.bf16.msra.mxu0 %v2538
        %2597 = vmatpush.bf16.msra.mxu0 %v2537
        %2598 = vmatpush.bf16.msra.mxu0 %v2536
        %2599 = vmatpush.bf16.msra.mxu0 %v2535
        %2600 = vmatmul.bf16.gmra.mxu0 %v1580
        %v2601 = vpop.f32.mrf.mxu0
        %v2602 = vadd.f32 %v2553, %v2601
        %v2603 = vpop.f32.mrf.mxu0
        %v2604 = vadd.f32 %v2555, %v2603
        %2605 = vmatmul.bf16.gmra.mxu0 %v1582
        %v2606 = vpop.f32.mrf.mxu0
        %v2607 = vadd.f32 %v2558, %v2606
        %v2608 = vpop.f32.mrf.mxu0
        %v2609 = vadd.f32 %v2560, %v2608
        %2610 = vmatmul.bf16.gmra.mxu0 %v1584
        %v2611 = vpop.f32.mrf.mxu0
        %v2612 = vadd.f32 %v2563, %v2611
        %v2613 = vpop.f32.mrf.mxu0
        %v2614 = vadd.f32 %v2565, %v2613
        %2615 = vmatmul.bf16.gmra.mxu0 %v1586
        %v2616 = vpop.f32.mrf.mxu0
        %v2617 = vadd.f32 %v2568, %v2616
        %v2618 = vpop.f32.mrf.mxu0
        %v2619 = vadd.f32 %v2570, %v2618
        %2620 = vmatmul.bf16.gmra.mxu0 %v1588
        %v2621 = vpop.f32.mrf.mxu0
        %v2622 = vadd.f32 %v2573, %v2621
        %v2623 = vpop.f32.mrf.mxu0
        %v2624 = vadd.f32 %v2575, %v2623
        %2625 = vmatmul.bf16.gmra.mxu0 %v1590
        %v2626 = vpop.f32.mrf.mxu0
        %v2627 = vadd.f32 %v2578, %v2626
        %v2628 = vpop.f32.mrf.mxu0
        %v2629 = vadd.f32 %v2580, %v2628
        %2630 = vmatmul.bf16.gmra.mxu0 %v1592
        %v2631 = vpop.f32.mrf.mxu0
        %v2632 = vadd.f32 %v2583, %v2631
        %v2633 = vpop.f32.mrf.mxu0
        %v2634 = vadd.f32 %v2585, %v2633
        %2635 = vmatmul.bf16.gmra.mxu0 %v1594
        %v2636 = vpop.f32.mrf.mxu0
        %v2637 = vadd.f32 %v2588, %v2636
        %v2638 = vpop.f32.mrf.mxu0
        %v2639 = vadd.f32 %v2590, %v2638
        %2640 = vdwg.mxu0
        %v2641 = vadd.f32 %v1742, %v2602
        %v2642 = vadd.f32 %v1743, %v2604
        %v2643 = vadd.f32 %v1744, %v2607
        %v2644 = vadd.f32 %v1745, %v2609
        %v2645 = vadd.f32 %v1746, %v2612
        %v2646 = vadd.f32 %v1747, %v2614
        %v2647 = vadd.f32 %v1748, %v2617
        %v2648 = vadd.f32 %v1749, %v2619
        %v2649 = vadd.f32 %v1750, %v2622
        %v2650 = vadd.f32 %v1751, %v2624
        %v2651 = vadd.f32 %v1752, %v2627
        %v2652 = vadd.f32 %v1753, %v2629
        %v2653 = vadd.f32 %v1754, %v2632
        %v2654 = vadd.f32 %v1755, %v2634
        %v2655 = vadd.f32 %v1756, %v2637
        %v2656 = vadd.f32 %v1757, %v2639
        %2657 = vst [vmem:[#allocation2 + $0x80] sm:$0xff] %v2641
        %2658 = vst [vmem:[#allocation2 + $0x88] sm:$0xff] %v2642
        %2659 = vst [vmem:[#allocation2 + $0x90] sm:$0xff] %v2643
        %2660 = vst [vmem:[#allocation2 + $0x98] sm:$0xff] %v2644
        %2661 = vst [vmem:[#allocation2 + $0xa0] sm:$0xff] %v2645
        %2662 = vst [vmem:[#allocation2 + $0xa8] sm:$0xff] %v2646
        %2663 = vst [vmem:[#allocation2 + $0xb0] sm:$0xff] %v2647
        %2664 = vst [vmem:[#allocation2 + $0xb8] sm:$0xff] %v2648
        %2665 = vst [vmem:[#allocation2 + $0xc0] sm:$0xff] %v2649
        %2666 = vst [vmem:[#allocation2 + $0xc8] sm:$0xff] %v2650
        %2667 = vst [vmem:[#allocation2 + $0xd0] sm:$0xff] %v2651
        %2668 = vst [vmem:[#allocation2 + $0xd8] sm:$0xff] %v2652
        %2669 = vst [vmem:[#allocation2 + $0xe0] sm:$0xff] %v2653
        %2670 = vst [vmem:[#allocation2 + $0xe8] sm:$0xff] %v2654
        %2671 = vst [vmem:[#allocation2 + $0xf0] sm:$0xff] %v2655
        %2672 = vst [vmem:[#allocation2 + $0xf8] sm:$0xff] %v2656
        %v2673 = vld [vmem:[#allocation2] sm:$0xff]
        %v2674 = vld [vmem:[#allocation2 + $0x8] sm:$0xff]
        %v2675 = vld [vmem:[#allocation2 + $0x10] sm:$0xff]
        %v2676 = vld [vmem:[#allocation2 + $0x18] sm:$0xff]
        %v2677 = vld [vmem:[#allocation2 + $0x20] sm:$0xff]
        %v2678 = vld [vmem:[#allocation2 + $0x28] sm:$0xff]
        %v2679 = vld [vmem:[#allocation2 + $0x30] sm:$0xff]
        %v2680 = vld [vmem:[#allocation2 + $0x38] sm:$0xff]
        %v2681 = vld [vmem:[#allocation2 + $0x40] sm:$0xff]
        %v2682 = vld [vmem:[#allocation2 + $0x48] sm:$0xff]
        %v2683 = vld [vmem:[#allocation2 + $0x50] sm:$0xff]
        %v2684 = vld [vmem:[#allocation2 + $0x58] sm:$0xff]
        %v2685 = vld [vmem:[#allocation2 + $0x60] sm:$0xff]
        %v2686 = vld [vmem:[#allocation2 + $0x68] sm:$0xff]
        %v2687 = vld [vmem:[#allocation2 + $0x70] sm:$0xff]
        %v2688 = vld [vmem:[#allocation2 + $0x78] sm:$0xff]
        %v2689 = vld [vmem:[#allocation2 + $0x80] sm:$0xff]
        %v2690 = vld [vmem:[#allocation2 + $0x88] sm:$0xff]
        %v2691 = vld [vmem:[#allocation2 + $0x90] sm:$0xff]
        %v2692 = vld [vmem:[#allocation2 + $0x98] sm:$0xff]
        %v2693 = vld [vmem:[#allocation2 + $0xa0] sm:$0xff]
        %v2694 = vld [vmem:[#allocation2 + $0xa8] sm:$0xff]
        %v2695 = vld [vmem:[#allocation2 + $0xb0] sm:$0xff]
        %v2696 = vld [vmem:[#allocation2 + $0xb8] sm:$0xff]
        %v2697 = vld [vmem:[#allocation2 + $0xc0] sm:$0xff]
        %v2698 = vld [vmem:[#allocation2 + $0xc8] sm:$0xff]
        %v2699 = vld [vmem:[#allocation2 + $0xd0] sm:$0xff]
        %v2700 = vld [vmem:[#allocation2 + $0xd8] sm:$0xff]
        %v2701 = vld [vmem:[#allocation2 + $0xe0] sm:$0xff]
        %v2702 = vld [vmem:[#allocation2 + $0xe8] sm:$0xff]
        %v2703 = vld [vmem:[#allocation2 + $0xf0] sm:$0xff]
        %v2704 = vld [vmem:[#allocation2 + $0xf8] sm:$0xff]
        %2705 = vadd.xlane.f32.xlu0 %v2673
        %v2706 = vpop.xlane.xlu0 %2705
        %2707 = vadd.xlane.f32.xlu0 %v2674
        %v2708 = vpop.xlane.xlu0 %2707
        %2709 = vadd.xlane.f32.xlu0 %v2675
        %v2710 = vpop.xlane.xlu0 %2709
        %2711 = vadd.xlane.f32.xlu0 %v2676
        %v2712 = vpop.xlane.xlu0 %2711
        %2713 = vadd.xlane.f32.xlu0 %v2677
        %v2714 = vpop.xlane.xlu0 %2713
        %2715 = vadd.xlane.f32.xlu0 %v2678
        %v2716 = vpop.xlane.xlu0 %2715
        %2717 = vadd.xlane.f32.xlu0 %v2679
        %v2718 = vpop.xlane.xlu0 %2717
        %2719 = vadd.xlane.f32.xlu0 %v2680
        %v2720 = vpop.xlane.xlu0 %2719
        %2721 = vadd.xlane.f32.xlu0 %v2681
        %v2722 = vpop.xlane.xlu0 %2721
        %2723 = vadd.xlane.f32.xlu0 %v2682
        %v2724 = vpop.xlane.xlu0 %2723
        %2725 = vadd.xlane.f32.xlu0 %v2683
        %v2726 = vpop.xlane.xlu0 %2725
        %2727 = vadd.xlane.f32.xlu0 %v2684
        %v2728 = vpop.xlane.xlu0 %2727
        %2729 = vadd.xlane.f32.xlu0 %v2685
        %v2730 = vpop.xlane.xlu0 %2729
        %2731 = vadd.xlane.f32.xlu0 %v2686
        %v2732 = vpop.xlane.xlu0 %2731
        %2733 = vadd.xlane.f32.xlu0 %v2687
        %v2734 = vpop.xlane.xlu0 %2733
        %2735 = vadd.xlane.f32.xlu0 %v2688
        %v2736 = vpop.xlane.xlu0 %2735
        %2737 = vadd.xlane.f32.xlu0 %v2689
        %v2738 = vpop.xlane.xlu0 %2737
        %2739 = vadd.xlane.f32.xlu0 %v2690
        %v2740 = vpop.xlane.xlu0 %2739
        %2741 = vadd.xlane.f32.xlu0 %v2691
        %v2742 = vpop.xlane.xlu0 %2741
        %2743 = vadd.xlane.f32.xlu0 %v2692
        %v2744 = vpop.xlane.xlu0 %2743
        %2745 = vadd.xlane.f32.xlu0 %v2693
        %v2746 = vpop.xlane.xlu0 %2745
        %2747 = vadd.xlane.f32.xlu0 %v2694
        %v2748 = vpop.xlane.xlu0 %2747
        %2749 = vadd.xlane.f32.xlu0 %v2695
        %v2750 = vpop.xlane.xlu0 %2749
        %2751 = vadd.xlane.f32.xlu0 %v2696
        %v2752 = vpop.xlane.xlu0 %2751
        %2753 = vadd.xlane.f32.xlu0 %v2697
        %v2754 = vpop.xlane.xlu0 %2753
        %2755 = vadd.xlane.f32.xlu0 %v2698
        %v2756 = vpop.xlane.xlu0 %2755
        %2757 = vadd.xlane.f32.xlu0 %v2699
        %v2758 = vpop.xlane.xlu0 %2757
        %2759 = vadd.xlane.f32.xlu0 %v2700
        %v2760 = vpop.xlane.xlu0 %2759
        %2761 = vadd.xlane.f32.xlu0 %v2701
        %v2762 = vpop.xlane.xlu0 %2761
        %2763 = vadd.xlane.f32.xlu0 %v2702
        %v2764 = vpop.xlane.xlu0 %2763
        %2765 = vadd.xlane.f32.xlu0 %v2703
        %v2766 = vpop.xlane.xlu0 %2765
        %2767 = vadd.xlane.f32.xlu0 %v2704
        %v2768 = vpop.xlane.xlu0 %2767
        %v2769 = vmul.f32 %v2706, %v675
        %v2770 = vmul.f32 %v2708, %v675
        %v2771 = vmul.f32 %v2710, %v675
        %v2772 = vmul.f32 %v2712, %v675
        %v2773 = vmul.f32 %v2714, %v675
        %v2774 = vmul.f32 %v2716, %v675
        %v2775 = vmul.f32 %v2718, %v675
        %v2776 = vmul.f32 %v2720, %v675
        %v2777 = vmul.f32 %v2722, %v675
        %v2778 = vmul.f32 %v2724, %v675
        %v2779 = vmul.f32 %v2726, %v675
        %v2780 = vmul.f32 %v2728, %v675
        %v2781 = vmul.f32 %v2730, %v675
        %v2782 = vmul.f32 %v2732, %v675
        %v2783 = vmul.f32 %v2734, %v675
        %v2784 = vmul.f32 %v2736, %v675
        %v2785 = vmul.f32 %v2738, %v675
        %v2786 = vmul.f32 %v2740, %v675
        %v2787 = vmul.f32 %v2742, %v675
        %v2788 = vmul.f32 %v2744, %v675
        %v2789 = vmul.f32 %v2746, %v675
        %v2790 = vmul.f32 %v2748, %v675
        %v2791 = vmul.f32 %v2750, %v675
        %v2792 = vmul.f32 %v2752, %v675
        %v2793 = vmul.f32 %v2754, %v675
        %v2794 = vmul.f32 %v2756, %v675
        %v2795 = vmul.f32 %v2758, %v675
        %v2796 = vmul.f32 %v2760, %v675
        %v2797 = vmul.f32 %v2762, %v675
        %v2798 = vmul.f32 %v2764, %v675
        %v2799 = vmul.f32 %v2766, %v675
        %v2800 = vmul.f32 %v2768, %v675
        %v2801 = vmul.f32 %v2673, %v2673
        %v2802 = vmul.f32 %v2674, %v2674
        %v2803 = vmul.f32 %v2675, %v2675
        %v2804 = vmul.f32 %v2676, %v2676
        %v2805 = vmul.f32 %v2677, %v2677
        %v2806 = vmul.f32 %v2678, %v2678
        %v2807 = vmul.f32 %v2679, %v2679
        %v2808 = vmul.f32 %v2680, %v2680
        %v2809 = vmul.f32 %v2681, %v2681
        %v2810 = vmul.f32 %v2682, %v2682
        %v2811 = vmul.f32 %v2683, %v2683
        %v2812 = vmul.f32 %v2684, %v2684
        %v2813 = vmul.f32 %v2685, %v2685
        %v2814 = vmul.f32 %v2686, %v2686
        %v2815 = vmul.f32 %v2687, %v2687
        %v2816 = vmul.f32 %v2688, %v2688
        %v2817 = vmul.f32 %v2689, %v2689
        %v2818 = vmul.f32 %v2690, %v2690
        %v2819 = vmul.f32 %v2691, %v2691
        %v2820 = vmul.f32 %v2692, %v2692
        %v2821 = vmul.f32 %v2693, %v2693
        %v2822 = vmul.f32 %v2694, %v2694
        %v2823 = vmul.f32 %v2695, %v2695
        %v2824 = vmul.f32 %v2696, %v2696
        %v2825 = vmul.f32 %v2697, %v2697
        %v2826 = vmul.f32 %v2698, %v2698
        %v2827 = vmul.f32 %v2699, %v2699
        %v2828 = vmul.f32 %v2700, %v2700
        %v2829 = vmul.f32 %v2701, %v2701
        %v2830 = vmul.f32 %v2702, %v2702
        %v2831 = vmul.f32 %v2703, %v2703
        %v2832 = vmul.f32 %v2704, %v2704
        %2833 = vadd.xlane.f32.xlu0 %v2801
        %v2834 = vpop.xlane.xlu0 %2833
        %2835 = vadd.xlane.f32.xlu0 %v2802
        %v2836 = vpop.xlane.xlu0 %2835
        %2837 = vadd.xlane.f32.xlu0 %v2803
        %v2838 = vpop.xlane.xlu0 %2837
        %2839 = vadd.xlane.f32.xlu0 %v2804
        %v2840 = vpop.xlane.xlu0 %2839
        %2841 = vadd.xlane.f32.xlu0 %v2805
        %v2842 = vpop.xlane.xlu0 %2841
        %2843 = vadd.xlane.f32.xlu0 %v2806
        %v2844 = vpop.xlane.xlu0 %2843
        %2845 = vadd.xlane.f32.xlu0 %v2807
        %v2846 = vpop.xlane.xlu0 %2845
        %2847 = vadd.xlane.f32.xlu0 %v2808
        %v2848 = vpop.xlane.xlu0 %2847
        %2849 = vadd.xlane.f32.xlu0 %v2809
        %v2850 = vpop.xlane.xlu0 %2849
        %2851 = vadd.xlane.f32.xlu0 %v2810
        %v2852 = vpop.xlane.xlu0 %2851
        %2853 = vadd.xlane.f32.xlu0 %v2811
        %v2854 = vpop.xlane.xlu0 %2853
        %2855 = vadd.xlane.f32.xlu0 %v2812
        %v2856 = vpop.xlane.xlu0 %2855
        %2857 = vadd.xlane.f32.xlu0 %v2813
        %v2858 = vpop.xlane.xlu0 %2857
        %2859 = vadd.xlane.f32.xlu0 %v2814
        %v2860 = vpop.xlane.xlu0 %2859
        %2861 = vadd.xlane.f32.xlu0 %v2815
        %v2862 = vpop.xlane.xlu0 %2861
        %2863 = vadd.xlane.f32.xlu0 %v2816
        %v2864 = vpop.xlane.xlu0 %2863
        %2865 = vadd.xlane.f32.xlu0 %v2817
        %v2866 = vpop.xlane.xlu0 %2865
        %2867 = vadd.xlane.f32.xlu0 %v2818
        %v2868 = vpop.xlane.xlu0 %2867
        %2869 = vadd.xlane.f32.xlu0 %v2819
        %v2870 = vpop.xlane.xlu0 %2869
        %2871 = vadd.xlane.f32.xlu0 %v2820
        %v2872 = vpop.xlane.xlu0 %2871
        %2873 = vadd.xlane.f32.xlu0 %v2821
        %v2874 = vpop.xlane.xlu0 %2873
        %2875 = vadd.xlane.f32.xlu0 %v2822
        %v2876 = vpop.xlane.xlu0 %2875
        %2877 = vadd.xlane.f32.xlu0 %v2823
        %v2878 = vpop.xlane.xlu0 %2877
        %2879 = vadd.xlane.f32.xlu0 %v2824
        %v2880 = vpop.xlane.xlu0 %2879
        %2881 = vadd.xlane.f32.xlu0 %v2825
        %v2882 = vpop.xlane.xlu0 %2881
        %2883 = vadd.xlane.f32.xlu0 %v2826
        %v2884 = vpop.xlane.xlu0 %2883
        %2885 = vadd.xlane.f32.xlu0 %v2827
        %v2886 = vpop.xlane.xlu0 %2885
        %2887 = vadd.xlane.f32.xlu0 %v2828
        %v2888 = vpop.xlane.xlu0 %2887
        %2889 = vadd.xlane.f32.xlu0 %v2829
        %v2890 = vpop.xlane.xlu0 %2889
        %2891 = vadd.xlane.f32.xlu0 %v2830
        %v2892 = vpop.xlane.xlu0 %2891
        %2893 = vadd.xlane.f32.xlu0 %v2831
        %v2894 = vpop.xlane.xlu0 %2893
        %2895 = vadd.xlane.f32.xlu0 %v2832
        %v2896 = vpop.xlane.xlu0 %2895
        %v2897 = vmul.f32 %v2834, %v675
        %v2898 = vmul.f32 %v2836, %v675
        %v2899 = vmul.f32 %v2838, %v675
        %v2900 = vmul.f32 %v2840, %v675
        %v2901 = vmul.f32 %v2842, %v675
        %v2902 = vmul.f32 %v2844, %v675
        %v2903 = vmul.f32 %v2846, %v675
        %v2904 = vmul.f32 %v2848, %v675
        %v2905 = vmul.f32 %v2850, %v675
        %v2906 = vmul.f32 %v2852, %v675
        %v2907 = vmul.f32 %v2854, %v675
        %v2908 = vmul.f32 %v2856, %v675
        %v2909 = vmul.f32 %v2858, %v675
        %v2910 = vmul.f32 %v2860, %v675
        %v2911 = vmul.f32 %v2862, %v675
        %v2912 = vmul.f32 %v2864, %v675
        %v2913 = vmul.f32 %v2866, %v675
        %v2914 = vmul.f32 %v2868, %v675
        %v2915 = vmul.f32 %v2870, %v675
        %v2916 = vmul.f32 %v2872, %v675
        %v2917 = vmul.f32 %v2874, %v675
        %v2918 = vmul.f32 %v2876, %v675
        %v2919 = vmul.f32 %v2878, %v675
        %v2920 = vmul.f32 %v2880, %v675
        %v2921 = vmul.f32 %v2882, %v675
        %v2922 = vmul.f32 %v2884, %v675
        %v2923 = vmul.f32 %v2886, %v675
        %v2924 = vmul.f32 %v2888, %v675
        %v2925 = vmul.f32 %v2890, %v675
        %v2926 = vmul.f32 %v2892, %v675
        %v2927 = vmul.f32 %v2894, %v675
        %v2928 = vmul.f32 %v2896, %v675
        %v2929 = vmul.f32 %v2769, %v2769
        %v2930 = vmul.f32 %v2770, %v2770
        %v2931 = vmul.f32 %v2771, %v2771
        %v2932 = vmul.f32 %v2772, %v2772
        %v2933 = vmul.f32 %v2773, %v2773
        %v2934 = vmul.f32 %v2774, %v2774
        %v2935 = vmul.f32 %v2775, %v2775
        %v2936 = vmul.f32 %v2776, %v2776
        %v2937 = vmul.f32 %v2777, %v2777
        %v2938 = vmul.f32 %v2778, %v2778
        %v2939 = vmul.f32 %v2779, %v2779
        %v2940 = vmul.f32 %v2780, %v2780
        %v2941 = vmul.f32 %v2781, %v2781
        %v2942 = vmul.f32 %v2782, %v2782
        %v2943 = vmul.f32 %v2783, %v2783
        %v2944 = vmul.f32 %v2784, %v2784
        %v2945 = vmul.f32 %v2785, %v2785
        %v2946 = vmul.f32 %v2786, %v2786
        %v2947 = vmul.f32 %v2787, %v2787
        %v2948 = vmul.f32 %v2788, %v2788
        %v2949 = vmul.f32 %v2789, %v2789
        %v2950 = vmul.f32 %v2790, %v2790
        %v2951 = vmul.f32 %v2791, %v2791
        %v2952 = vmul.f32 %v2792, %v2792
        %v2953 = vmul.f32 %v2793, %v2793
        %v2954 = vmul.f32 %v2794, %v2794
        %v2955 = vmul.f32 %v2795, %v2795
        %v2956 = vmul.f32 %v2796, %v2796
        %v2957 = vmul.f32 %v2797, %v2797
        %v2958 = vmul.f32 %v2798, %v2798
        %v2959 = vmul.f32 %v2799, %v2799
        %v2960 = vmul.f32 %v2800, %v2800
        %v2961 = vsub.f32 %v2897, %v2929
        %v2962 = vsub.f32 %v2898, %v2930
        %v2963 = vsub.f32 %v2899, %v2931
        %v2964 = vsub.f32 %v2900, %v2932
        %v2965 = vsub.f32 %v2901, %v2933
        %v2966 = vsub.f32 %v2902, %v2934
        %v2967 = vsub.f32 %v2903, %v2935
        %v2968 = vsub.f32 %v2904, %v2936
        %v2969 = vsub.f32 %v2905, %v2937
        %v2970 = vsub.f32 %v2906, %v2938
        %v2971 = vsub.f32 %v2907, %v2939
        %v2972 = vsub.f32 %v2908, %v2940
        %v2973 = vsub.f32 %v2909, %v2941
        %v2974 = vsub.f32 %v2910, %v2942
        %v2975 = vsub.f32 %v2911, %v2943
        %v2976 = vsub.f32 %v2912, %v2944
        %v2977 = vsub.f32 %v2913, %v2945
        %v2978 = vsub.f32 %v2914, %v2946
        %v2979 = vsub.f32 %v2915, %v2947
        %v2980 = vsub.f32 %v2916, %v2948
        %v2981 = vsub.f32 %v2917, %v2949
        %v2982 = vsub.f32 %v2918, %v2950
        %v2983 = vsub.f32 %v2919, %v2951
        %v2984 = vsub.f32 %v2920, %v2952
        %v2985 = vsub.f32 %v2921, %v2953
        %v2986 = vsub.f32 %v2922, %v2954
        %v2987 = vsub.f32 %v2923, %v2955
        %v2988 = vsub.f32 %v2924, %v2956
        %v2989 = vsub.f32 %v2925, %v2957
        %v2990 = vsub.f32 %v2926, %v2958
        %v2991 = vsub.f32 %v2927, %v2959
        %v2992 = vsub.f32 %v2928, %v2960
        %v2993 = vsub.f32 %v2673, %v2769
        %v2994 = vsub.f32 %v2674, %v2770
        %v2995 = vsub.f32 %v2675, %v2771
        %v2996 = vsub.f32 %v2676, %v2772
        %v2997 = vsub.f32 %v2677, %v2773
        %v2998 = vsub.f32 %v2678, %v2774
        %v2999 = vsub.f32 %v2679, %v2775
        %v3000 = vsub.f32 %v2680, %v2776
        %v3001 = vsub.f32 %v2681, %v2777
        %v3002 = vsub.f32 %v2682, %v2778
        %v3003 = vsub.f32 %v2683, %v2779
        %v3004 = vsub.f32 %v2684, %v2780
        %v3005 = vsub.f32 %v2685, %v2781
        %v3006 = vsub.f32 %v2686, %v2782
        %v3007 = vsub.f32 %v2687, %v2783
        %v3008 = vsub.f32 %v2688, %v2784
        %v3009 = vsub.f32 %v2689, %v2785
        %v3010 = vsub.f32 %v2690, %v2786
        %v3011 = vsub.f32 %v2691, %v2787
        %v3012 = vsub.f32 %v2692, %v2788
        %v3013 = vsub.f32 %v2693, %v2789
        %v3014 = vsub.f32 %v2694, %v2790
        %v3015 = vsub.f32 %v2695, %v2791
        %v3016 = vsub.f32 %v2696, %v2792
        %v3017 = vsub.f32 %v2697, %v2793
        %v3018 = vsub.f32 %v2698, %v2794
        %v3019 = vsub.f32 %v2699, %v2795
        %v3020 = vsub.f32 %v2700, %v2796
        %v3021 = vsub.f32 %v2701, %v2797
        %v3022 = vsub.f32 %v2702, %v2798
        %v3023 = vsub.f32 %v2703, %v2799
        %v3024 = vsub.f32 %v2704, %v2800
        %v3025 = vadd.f32 %v2961, 1e-05
        %v3026 = vadd.f32 %v2962, 1e-05
        %v3027 = vadd.f32 %v2963, 1e-05
        %v3028 = vadd.f32 %v2964, 1e-05
        %v3029 = vadd.f32 %v2965, 1e-05
        %v3030 = vadd.f32 %v2966, 1e-05
        %v3031 = vadd.f32 %v2967, 1e-05
        %v3032 = vadd.f32 %v2968, 1e-05
        %v3033 = vadd.f32 %v2969, 1e-05
        %v3034 = vadd.f32 %v2970, 1e-05
        %v3035 = vadd.f32 %v2971, 1e-05
        %v3036 = vadd.f32 %v2972, 1e-05
        %v3037 = vadd.f32 %v2973, 1e-05
        %v3038 = vadd.f32 %v2974, 1e-05
        %v3039 = vadd.f32 %v2975, 1e-05
        %v3040 = vadd.f32 %v2976, 1e-05
        %v3041 = vadd.f32 %v2977, 1e-05
        %v3042 = vadd.f32 %v2978, 1e-05
        %v3043 = vadd.f32 %v2979, 1e-05
        %v3044 = vadd.f32 %v2980, 1e-05
        %v3045 = vadd.f32 %v2981, 1e-05
        %v3046 = vadd.f32 %v2982, 1e-05
        %v3047 = vadd.f32 %v2983, 1e-05
        %v3048 = vadd.f32 %v2984, 1e-05
        %v3049 = vadd.f32 %v2985, 1e-05
        %v3050 = vadd.f32 %v2986, 1e-05
        %v3051 = vadd.f32 %v2987, 1e-05
        %v3052 = vadd.f32 %v2988, 1e-05
        %v3053 = vadd.f32 %v2989, 1e-05
        %v3054 = vadd.f32 %v2990, 1e-05
        %v3055 = vadd.f32 %v2991, 1e-05
        %v3056 = vadd.f32 %v2992, 1e-05
        %v3057 = vrsqrt.pop %v3025
        %v3058 = vmul.f32 %v3057, %v3025
        %v3059 = vmul.f32 %v3058, %v3057
        %v3060 = vmul.f32 0.5, %v3059
        %v3061 = vsub.f32 1.5, %v3060
        %v3062 = vmul.f32 %v3057, %v3061
        %vm3063 = vweird.f32 %v3025
        %vm3064 = vweird.f32 %v3057
        %vm3065 = vmor %vm3063, %vm3064
        %v3066 = vsel %vm3065, %v3057, %v3062
        %v3067 = vrsqrt.pop %v3026
        %v3068 = vmul.f32 %v3067, %v3026
        %v3069 = vmul.f32 %v3068, %v3067
        %v3070 = vmul.f32 0.5, %v3069
        %v3071 = vsub.f32 1.5, %v3070
        %v3072 = vmul.f32 %v3067, %v3071
        %vm3073 = vweird.f32 %v3026
        %vm3074 = vweird.f32 %v3067
        %vm3075 = vmor %vm3073, %vm3074
        %v3076 = vsel %vm3075, %v3067, %v3072
        %v3077 = vrsqrt.pop %v3027
        %v3078 = vmul.f32 %v3077, %v3027
        %v3079 = vmul.f32 %v3078, %v3077
        %v3080 = vmul.f32 0.5, %v3079
        %v3081 = vsub.f32 1.5, %v3080
        %v3082 = vmul.f32 %v3077, %v3081
        %vm3083 = vweird.f32 %v3027
        %vm3084 = vweird.f32 %v3077
        %vm3085 = vmor %vm3083, %vm3084
        %v3086 = vsel %vm3085, %v3077, %v3082
        %v3087 = vrsqrt.pop %v3028
        %v3088 = vmul.f32 %v3087, %v3028
        %v3089 = vmul.f32 %v3088, %v3087
        %v3090 = vmul.f32 0.5, %v3089
        %v3091 = vsub.f32 1.5, %v3090
        %v3092 = vmul.f32 %v3087, %v3091
        %vm3093 = vweird.f32 %v3028
        %vm3094 = vweird.f32 %v3087
        %vm3095 = vmor %vm3093, %vm3094
        %v3096 = vsel %vm3095, %v3087, %v3092
        %v3097 = vrsqrt.pop %v3029
        %v3098 = vmul.f32 %v3097, %v3029
        %v3099 = vmul.f32 %v3098, %v3097
        %v3100 = vmul.f32 0.5, %v3099
        %v3101 = vsub.f32 1.5, %v3100
        %v3102 = vmul.f32 %v3097, %v3101
        %vm3103 = vweird.f32 %v3029
        %vm3104 = vweird.f32 %v3097
        %vm3105 = vmor %vm3103, %vm3104
        %v3106 = vsel %vm3105, %v3097, %v3102
        %v3107 = vrsqrt.pop %v3030
        %v3108 = vmul.f32 %v3107, %v3030
        %v3109 = vmul.f32 %v3108, %v3107
        %v3110 = vmul.f32 0.5, %v3109
        %v3111 = vsub.f32 1.5, %v3110
        %v3112 = vmul.f32 %v3107, %v3111
        %vm3113 = vweird.f32 %v3030
        %vm3114 = vweird.f32 %v3107
        %vm3115 = vmor %vm3113, %vm3114
        %v3116 = vsel %vm3115, %v3107, %v3112
        %v3117 = vrsqrt.pop %v3031
        %v3118 = vmul.f32 %v3117, %v3031
        %v3119 = vmul.f32 %v3118, %v3117
        %v3120 = vmul.f32 0.5, %v3119
        %v3121 = vsub.f32 1.5, %v3120
        %v3122 = vmul.f32 %v3117, %v3121
        %vm3123 = vweird.f32 %v3031
        %vm3124 = vweird.f32 %v3117
        %vm3125 = vmor %vm3123, %vm3124
        %v3126 = vsel %vm3125, %v3117, %v3122
        %v3127 = vrsqrt.pop %v3032
        %v3128 = vmul.f32 %v3127, %v3032
        %v3129 = vmul.f32 %v3128, %v3127
        %v3130 = vmul.f32 0.5, %v3129
        %v3131 = vsub.f32 1.5, %v3130
        %v3132 = vmul.f32 %v3127, %v3131
        %vm3133 = vweird.f32 %v3032
        %vm3134 = vweird.f32 %v3127
        %vm3135 = vmor %vm3133, %vm3134
        %v3136 = vsel %vm3135, %v3127, %v3132
        %v3137 = vrsqrt.pop %v3033
        %v3138 = vmul.f32 %v3137, %v3033
        %v3139 = vmul.f32 %v3138, %v3137
        %v3140 = vmul.f32 0.5, %v3139
        %v3141 = vsub.f32 1.5, %v3140
        %v3142 = vmul.f32 %v3137, %v3141
        %vm3143 = vweird.f32 %v3033
        %vm3144 = vweird.f32 %v3137
        %vm3145 = vmor %vm3143, %vm3144
        %v3146 = vsel %vm3145, %v3137, %v3142
        %v3147 = vrsqrt.pop %v3034
        %v3148 = vmul.f32 %v3147, %v3034
        %v3149 = vmul.f32 %v3148, %v3147
        %v3150 = vmul.f32 0.5, %v3149
        %v3151 = vsub.f32 1.5, %v3150
        %v3152 = vmul.f32 %v3147, %v3151
        %vm3153 = vweird.f32 %v3034
        %vm3154 = vweird.f32 %v3147
        %vm3155 = vmor %vm3153, %vm3154
        %v3156 = vsel %vm3155, %v3147, %v3152
        %v3157 = vrsqrt.pop %v3035
        %v3158 = vmul.f32 %v3157, %v3035
        %v3159 = vmul.f32 %v3158, %v3157
        %v3160 = vmul.f32 0.5, %v3159
        %v3161 = vsub.f32 1.5, %v3160
        %v3162 = vmul.f32 %v3157, %v3161
        %vm3163 = vweird.f32 %v3035
        %vm3164 = vweird.f32 %v3157
        %vm3165 = vmor %vm3163, %vm3164
        %v3166 = vsel %vm3165, %v3157, %v3162
        %v3167 = vrsqrt.pop %v3036
        %v3168 = vmul.f32 %v3167, %v3036
        %v3169 = vmul.f32 %v3168, %v3167
        %v3170 = vmul.f32 0.5, %v3169
        %v3171 = vsub.f32 1.5, %v3170
        %v3172 = vmul.f32 %v3167, %v3171
        %vm3173 = vweird.f32 %v3036
        %vm3174 = vweird.f32 %v3167
        %vm3175 = vmor %vm3173, %vm3174
        %v3176 = vsel %vm3175, %v3167, %v3172
        %v3177 = vrsqrt.pop %v3037
        %v3178 = vmul.f32 %v3177, %v3037
        %v3179 = vmul.f32 %v3178, %v3177
        %v3180 = vmul.f32 0.5, %v3179
        %v3181 = vsub.f32 1.5, %v3180
        %v3182 = vmul.f32 %v3177, %v3181
        %vm3183 = vweird.f32 %v3037
        %vm3184 = vweird.f32 %v3177
        %vm3185 = vmor %vm3183, %vm3184
        %v3186 = vsel %vm3185, %v3177, %v3182
        %v3187 = vrsqrt.pop %v3038
        %v3188 = vmul.f32 %v3187, %v3038
        %v3189 = vmul.f32 %v3188, %v3187
        %v3190 = vmul.f32 0.5, %v3189
        %v3191 = vsub.f32 1.5, %v3190
        %v3192 = vmul.f32 %v3187, %v3191
        %vm3193 = vweird.f32 %v3038
        %vm3194 = vweird.f32 %v3187
        %vm3195 = vmor %vm3193, %vm3194
        %v3196 = vsel %vm3195, %v3187, %v3192
        %v3197 = vrsqrt.pop %v3039
        %v3198 = vmul.f32 %v3197, %v3039
        %v3199 = vmul.f32 %v3198, %v3197
        %v3200 = vmul.f32 0.5, %v3199
        %v3201 = vsub.f32 1.5, %v3200
        %v3202 = vmul.f32 %v3197, %v3201
        %vm3203 = vweird.f32 %v3039
        %vm3204 = vweird.f32 %v3197
        %vm3205 = vmor %vm3203, %vm3204
        %v3206 = vsel %vm3205, %v3197, %v3202
        %v3207 = vrsqrt.pop %v3040
        %v3208 = vmul.f32 %v3207, %v3040
        %v3209 = vmul.f32 %v3208, %v3207
        %v3210 = vmul.f32 0.5, %v3209
        %v3211 = vsub.f32 1.5, %v3210
        %v3212 = vmul.f32 %v3207, %v3211
        %vm3213 = vweird.f32 %v3040
        %vm3214 = vweird.f32 %v3207
        %vm3215 = vmor %vm3213, %vm3214
        %v3216 = vsel %vm3215, %v3207, %v3212
        %v3217 = vrsqrt.pop %v3041
        %v3218 = vmul.f32 %v3217, %v3041
        %v3219 = vmul.f32 %v3218, %v3217
        %v3220 = vmul.f32 0.5, %v3219
        %v3221 = vsub.f32 1.5, %v3220
        %v3222 = vmul.f32 %v3217, %v3221
        %vm3223 = vweird.f32 %v3041
        %vm3224 = vweird.f32 %v3217
        %vm3225 = vmor %vm3223, %vm3224
        %v3226 = vsel %vm3225, %v3217, %v3222
        %v3227 = vrsqrt.pop %v3042
        %v3228 = vmul.f32 %v3227, %v3042
        %v3229 = vmul.f32 %v3228, %v3227
        %v3230 = vmul.f32 0.5, %v3229
        %v3231 = vsub.f32 1.5, %v3230
        %v3232 = vmul.f32 %v3227, %v3231
        %vm3233 = vweird.f32 %v3042
        %vm3234 = vweird.f32 %v3227
        %vm3235 = vmor %vm3233, %vm3234
        %v3236 = vsel %vm3235, %v3227, %v3232
        %v3237 = vrsqrt.pop %v3043
        %v3238 = vmul.f32 %v3237, %v3043
        %v3239 = vmul.f32 %v3238, %v3237
        %v3240 = vmul.f32 0.5, %v3239
        %v3241 = vsub.f32 1.5, %v3240
        %v3242 = vmul.f32 %v3237, %v3241
        %vm3243 = vweird.f32 %v3043
        %vm3244 = vweird.f32 %v3237
        %vm3245 = vmor %vm3243, %vm3244
        %v3246 = vsel %vm3245, %v3237, %v3242
        %v3247 = vrsqrt.pop %v3044
        %v3248 = vmul.f32 %v3247, %v3044
        %v3249 = vmul.f32 %v3248, %v3247
        %v3250 = vmul.f32 0.5, %v3249
        %v3251 = vsub.f32 1.5, %v3250
        %v3252 = vmul.f32 %v3247, %v3251
        %vm3253 = vweird.f32 %v3044
        %vm3254 = vweird.f32 %v3247
        %vm3255 = vmor %vm3253, %vm3254
        %v3256 = vsel %vm3255, %v3247, %v3252
        %v3257 = vrsqrt.pop %v3045
        %v3258 = vmul.f32 %v3257, %v3045
        %v3259 = vmul.f32 %v3258, %v3257
        %v3260 = vmul.f32 0.5, %v3259
        %v3261 = vsub.f32 1.5, %v3260
        %v3262 = vmul.f32 %v3257, %v3261
        %vm3263 = vweird.f32 %v3045
        %vm3264 = vweird.f32 %v3257
        %vm3265 = vmor %vm3263, %vm3264
        %v3266 = vsel %vm3265, %v3257, %v3262
        %v3267 = vrsqrt.pop %v3046
        %v3268 = vmul.f32 %v3267, %v3046
        %v3269 = vmul.f32 %v3268, %v3267
        %v3270 = vmul.f32 0.5, %v3269
        %v3271 = vsub.f32 1.5, %v3270
        %v3272 = vmul.f32 %v3267, %v3271
        %vm3273 = vweird.f32 %v3046
        %vm3274 = vweird.f32 %v3267
        %vm3275 = vmor %vm3273, %vm3274
        %v3276 = vsel %vm3275, %v3267, %v3272
        %v3277 = vrsqrt.pop %v3047
        %v3278 = vmul.f32 %v3277, %v3047
        %v3279 = vmul.f32 %v3278, %v3277
        %v3280 = vmul.f32 0.5, %v3279
        %v3281 = vsub.f32 1.5, %v3280
        %v3282 = vmul.f32 %v3277, %v3281
        %vm3283 = vweird.f32 %v3047
        %vm3284 = vweird.f32 %v3277
        %vm3285 = vmor %vm3283, %vm3284
        %v3286 = vsel %vm3285, %v3277, %v3282
        %v3287 = vrsqrt.pop %v3048
        %v3288 = vmul.f32 %v3287, %v3048
        %v3289 = vmul.f32 %v3288, %v3287
        %v3290 = vmul.f32 0.5, %v3289
        %v3291 = vsub.f32 1.5, %v3290
        %v3292 = vmul.f32 %v3287, %v3291
        %vm3293 = vweird.f32 %v3048
        %vm3294 = vweird.f32 %v3287
        %vm3295 = vmor %vm3293, %vm3294
        %v3296 = vsel %vm3295, %v3287, %v3292
        %v3297 = vrsqrt.pop %v3049
        %v3298 = vmul.f32 %v3297, %v3049
        %v3299 = vmul.f32 %v3298, %v3297
        %v3300 = vmul.f32 0.5, %v3299
        %v3301 = vsub.f32 1.5, %v3300
        %v3302 = vmul.f32 %v3297, %v3301
        %vm3303 = vweird.f32 %v3049
        %vm3304 = vweird.f32 %v3297
        %vm3305 = vmor %vm3303, %vm3304
        %v3306 = vsel %vm3305, %v3297, %v3302
        %v3307 = vrsqrt.pop %v3050
        %v3308 = vmul.f32 %v3307, %v3050
        %v3309 = vmul.f32 %v3308, %v3307
        %v3310 = vmul.f32 0.5, %v3309
        %v3311 = vsub.f32 1.5, %v3310
        %v3312 = vmul.f32 %v3307, %v3311
        %vm3313 = vweird.f32 %v3050
        %vm3314 = vweird.f32 %v3307
        %vm3315 = vmor %vm3313, %vm3314
        %v3316 = vsel %vm3315, %v3307, %v3312
        %v3317 = vrsqrt.pop %v3051
        %v3318 = vmul.f32 %v3317, %v3051
        %v3319 = vmul.f32 %v3318, %v3317
        %v3320 = vmul.f32 0.5, %v3319
        %v3321 = vsub.f32 1.5, %v3320
        %v3322 = vmul.f32 %v3317, %v3321
        %vm3323 = vweird.f32 %v3051
        %vm3324 = vweird.f32 %v3317
        %vm3325 = vmor %vm3323, %vm3324
        %v3326 = vsel %vm3325, %v3317, %v3322
        %v3327 = vrsqrt.pop %v3052
        %v3328 = vmul.f32 %v3327, %v3052
        %v3329 = vmul.f32 %v3328, %v3327
        %v3330 = vmul.f32 0.5, %v3329
        %v3331 = vsub.f32 1.5, %v3330
        %v3332 = vmul.f32 %v3327, %v3331
        %vm3333 = vweird.f32 %v3052
        %vm3334 = vweird.f32 %v3327
        %vm3335 = vmor %vm3333, %vm3334
        %v3336 = vsel %vm3335, %v3327, %v3332
        %v3337 = vrsqrt.pop %v3053
        %v3338 = vmul.f32 %v3337, %v3053
        %v3339 = vmul.f32 %v3338, %v3337
        %v3340 = vmul.f32 0.5, %v3339
        %v3341 = vsub.f32 1.5, %v3340
        %v3342 = vmul.f32 %v3337, %v3341
        %vm3343 = vweird.f32 %v3053
        %vm3344 = vweird.f32 %v3337
        %vm3345 = vmor %vm3343, %vm3344
        %v3346 = vsel %vm3345, %v3337, %v3342
        %v3347 = vrsqrt.pop %v3054
        %v3348 = vmul.f32 %v3347, %v3054
        %v3349 = vmul.f32 %v3348, %v3347
        %v3350 = vmul.f32 0.5, %v3349
        %v3351 = vsub.f32 1.5, %v3350
        %v3352 = vmul.f32 %v3347, %v3351
        %vm3353 = vweird.f32 %v3054
        %vm3354 = vweird.f32 %v3347
        %vm3355 = vmor %vm3353, %vm3354
        %v3356 = vsel %vm3355, %v3347, %v3352
        %v3357 = vrsqrt.pop %v3055
        %v3358 = vmul.f32 %v3357, %v3055
        %v3359 = vmul.f32 %v3358, %v3357
        %v3360 = vmul.f32 0.5, %v3359
        %v3361 = vsub.f32 1.5, %v3360
        %v3362 = vmul.f32 %v3357, %v3361
        %vm3363 = vweird.f32 %v3055
        %vm3364 = vweird.f32 %v3357
        %vm3365 = vmor %vm3363, %vm3364
        %v3366 = vsel %vm3365, %v3357, %v3362
        %v3367 = vrsqrt.pop %v3056
        %v3368 = vmul.f32 %v3367, %v3056
        %v3369 = vmul.f32 %v3368, %v3367
        %v3370 = vmul.f32 0.5, %v3369
        %v3371 = vsub.f32 1.5, %v3370
        %v3372 = vmul.f32 %v3367, %v3371
        %vm3373 = vweird.f32 %v3056
        %vm3374 = vweird.f32 %v3367
        %vm3375 = vmor %vm3373, %vm3374
        %v3376 = vsel %vm3375, %v3367, %v3372
        %v3377 = vmul.f32 %v2993, %v3066
        %v3378 = vmul.f32 %v2994, %v3076
        %v3379 = vmul.f32 %v2995, %v3086
        %v3380 = vmul.f32 %v2996, %v3096
        %v3381 = vmul.f32 %v2997, %v3106
        %v3382 = vmul.f32 %v2998, %v3116
        %v3383 = vmul.f32 %v2999, %v3126
        %v3384 = vmul.f32 %v3000, %v3136
        %v3385 = vmul.f32 %v3001, %v3146
        %v3386 = vmul.f32 %v3002, %v3156
        %v3387 = vmul.f32 %v3003, %v3166
        %v3388 = vmul.f32 %v3004, %v3176
        %v3389 = vmul.f32 %v3005, %v3186
        %v3390 = vmul.f32 %v3006, %v3196
        %v3391 = vmul.f32 %v3007, %v3206
        %v3392 = vmul.f32 %v3008, %v3216
        %v3393 = vmul.f32 %v3009, %v3226
        %v3394 = vmul.f32 %v3010, %v3236
        %v3395 = vmul.f32 %v3011, %v3246
        %v3396 = vmul.f32 %v3012, %v3256
        %v3397 = vmul.f32 %v3013, %v3266
        %v3398 = vmul.f32 %v3014, %v3276
        %v3399 = vmul.f32 %v3015, %v3286
        %v3400 = vmul.f32 %v3016, %v3296
        %v3401 = vmul.f32 %v3017, %v3306
        %v3402 = vmul.f32 %v3018, %v3316
        %v3403 = vmul.f32 %v3019, %v3326
        %v3404 = vmul.f32 %v3020, %v3336
        %v3405 = vmul.f32 %v3021, %v3346
        %v3406 = vmul.f32 %v3022, %v3356
        %v3407 = vmul.f32 %v3023, %v3366
        %v3408 = vmul.f32 %v3024, %v3376
        %v3409 = vmul.f32 %v3377, %v997
        %v3410 = vmul.f32 %v3378, %v997
        %v3411 = vmul.f32 %v3379, %v997
        %v3412 = vmul.f32 %v3380, %v997
        %v3413 = vmul.f32 %v3381, %v997
        %v3414 = vmul.f32 %v3382, %v997
        %v3415 = vmul.f32 %v3383, %v997
        %v3416 = vmul.f32 %v3384, %v997
        %v3417 = vmul.f32 %v3385, %v997
        %v3418 = vmul.f32 %v3386, %v997
        %v3419 = vmul.f32 %v3387, %v997
        %v3420 = vmul.f32 %v3388, %v997
        %v3421 = vmul.f32 %v3389, %v997
        %v3422 = vmul.f32 %v3390, %v997
        %v3423 = vmul.f32 %v3391, %v997
        %v3424 = vmul.f32 %v3392, %v997
        %v3425 = vmul.f32 %v3393, %v997
        %v3426 = vmul.f32 %v3394, %v997
        %v3427 = vmul.f32 %v3395, %v997
        %v3428 = vmul.f32 %v3396, %v997
        %v3429 = vmul.f32 %v3397, %v997
        %v3430 = vmul.f32 %v3398, %v997
        %v3431 = vmul.f32 %v3399, %v997
        %v3432 = vmul.f32 %v3400, %v997
        %v3433 = vmul.f32 %v3401, %v997
        %v3434 = vmul.f32 %v3402, %v997
        %v3435 = vmul.f32 %v3403, %v997
        %v3436 = vmul.f32 %v3404, %v997
        %v3437 = vmul.f32 %v3405, %v997
        %v3438 = vmul.f32 %v3406, %v997
        %v3439 = vmul.f32 %v3407, %v997
        %v3440 = vmul.f32 %v3408, %v997
        %v3441 = vadd.f32 %v3409, %v1016
        %v3442 = vadd.f32 %v3410, %v1016
        %v3443 = vadd.f32 %v3411, %v1016
        %v3444 = vadd.f32 %v3412, %v1016
        %v3445 = vadd.f32 %v3413, %v1016
        %v3446 = vadd.f32 %v3414, %v1016
        %v3447 = vadd.f32 %v3415, %v1016
        %v3448 = vadd.f32 %v3416, %v1016
        %v3449 = vadd.f32 %v3417, %v1016
        %v3450 = vadd.f32 %v3418, %v1016
        %v3451 = vadd.f32 %v3419, %v1016
        %v3452 = vadd.f32 %v3420, %v1016
        %v3453 = vadd.f32 %v3421, %v1016
        %v3454 = vadd.f32 %v3422, %v1016
        %v3455 = vadd.f32 %v3423, %v1016
        %v3456 = vadd.f32 %v3424, %v1016
        %v3457 = vadd.f32 %v3425, %v1016
        %v3458 = vadd.f32 %v3426, %v1016
        %v3459 = vadd.f32 %v3427, %v1016
        %v3460 = vadd.f32 %v3428, %v1016
        %v3461 = vadd.f32 %v3429, %v1016
        %v3462 = vadd.f32 %v3430, %v1016
        %v3463 = vadd.f32 %v3431, %v1016
        %v3464 = vadd.f32 %v3432, %v1016
        %v3465 = vadd.f32 %v3433, %v1016
        %v3466 = vadd.f32 %v3434, %v1016
        %v3467 = vadd.f32 %v3435, %v1016
        %v3468 = vadd.f32 %v3436, %v1016
        %v3469 = vadd.f32 %v3437, %v1016
        %v3470 = vadd.f32 %v3438, %v1016
        %v3471 = vadd.f32 %v3439, %v1016
        %v3472 = vadd.f32 %v3440, %v1016
        %v3473 = vpack.c.bf16 %v3442, %v3441
        %v3474 = vpack.c.bf16 %v3444, %v3443
        %v3475 = vpack.c.bf16 %v3446, %v3445
        %v3476 = vpack.c.bf16 %v3448, %v3447
        %v3477 = vpack.c.bf16 %v3450, %v3449
        %v3478 = vpack.c.bf16 %v3452, %v3451
        %v3479 = vpack.c.bf16 %v3454, %v3453
        %v3480 = vpack.c.bf16 %v3456, %v3455
        %v3481 = vpack.c.bf16 %v3458, %v3457
        %v3482 = vpack.c.bf16 %v3460, %v3459
        %v3483 = vpack.c.bf16 %v3462, %v3461
        %v3484 = vpack.c.bf16 %v3464, %v3463
        %v3485 = vpack.c.bf16 %v3466, %v3465
        %v3486 = vpack.c.bf16 %v3468, %v3467
        %v3487 = vpack.c.bf16 %v3470, %v3469
        %v3488 = vpack.c.bf16 %v3472, %v3471
        %v3489 = vld [vmem:[#allocation14] sm:$0xff]
        %v3490 = vld [vmem:[#allocation14 + $0x8] sm:$0xff]
        %v3491 = vld [vmem:[#allocation14 + $0x10] sm:$0xff]
        %v3492 = vld [vmem:[#allocation14 + $0x18] sm:$0xff]
        %v3493 = vld [vmem:[#allocation14 + $0x20] sm:$0xff]
        %v3494 = vld [vmem:[#allocation14 + $0x28] sm:$0xff]
        %v3495 = vld [vmem:[#allocation14 + $0x30] sm:$0xff]
        %v3496 = vld [vmem:[#allocation14 + $0x38] sm:$0xff]
        %v3497 = vld [vmem:[#allocation14 + $0x40] sm:$0xff]
        %v3498 = vld [vmem:[#allocation14 + $0x48] sm:$0xff]
        %v3499 = vld [vmem:[#allocation14 + $0x50] sm:$0xff]
        %v3500 = vld [vmem:[#allocation14 + $0x58] sm:$0xff]
        %v3501 = vld [vmem:[#allocation14 + $0x60] sm:$0xff]
        %v3502 = vld [vmem:[#allocation14 + $0x68] sm:$0xff]
        %v3503 = vld [vmem:[#allocation14 + $0x70] sm:$0xff]
        %v3504 = vld [vmem:[#allocation14 + $0x78] sm:$0xff]
        %v3505 = vld [vmem:[%s8] sm:$0x3]
        %v3507 = vperm.slane %v3505, 0
        %v3508 = vperm.slane %v3505, 1
        %v3527 = vunpack.c.l.b16 %v3489
        %v3528 = vunpack.c.h.b16 %v3489
        %v3529 = vunpack.c.l.b16 %v3490
        %v3530 = vunpack.c.h.b16 %v3490
        %v3531 = vunpack.c.l.b16 %v3491
        %v3532 = vunpack.c.h.b16 %v3491
        %v3533 = vunpack.c.l.b16 %v3492
        %v3534 = vunpack.c.h.b16 %v3492
        %v3535 = vunpack.c.l.b16 %v3493
        %v3536 = vunpack.c.h.b16 %v3493
        %v3537 = vunpack.c.l.b16 %v3494
        %v3538 = vunpack.c.h.b16 %v3494
        %v3539 = vunpack.c.l.b16 %v3495
        %v3540 = vunpack.c.h.b16 %v3495
        %v3541 = vunpack.c.l.b16 %v3496
        %v3542 = vunpack.c.h.b16 %v3496
        %v3543 = vunpack.c.l.b16 %v3497
        %v3544 = vunpack.c.h.b16 %v3497
        %v3545 = vunpack.c.l.b16 %v3498
        %v3546 = vunpack.c.h.b16 %v3498
        %v3547 = vunpack.c.l.b16 %v3499
        %v3548 = vunpack.c.h.b16 %v3499
        %v3549 = vunpack.c.l.b16 %v3500
        %v3550 = vunpack.c.h.b16 %v3500
        %v3551 = vunpack.c.l.b16 %v3501
        %v3552 = vunpack.c.h.b16 %v3501
        %v3553 = vunpack.c.l.b16 %v3502
        %v3554 = vunpack.c.h.b16 %v3502
        %v3555 = vunpack.c.l.b16 %v3503
        %v3556 = vunpack.c.h.b16 %v3503
        %v3557 = vunpack.c.l.b16 %v3504
        %v3558 = vunpack.c.h.b16 %v3504
        %v3559 = vpack.c.b16 %v3529, %v3527
        %v3560 = vpack.c.b16 %v3530, %v3528
        %v3561 = vpack.c.b16 %v3533, %v3531
        %v3562 = vpack.c.b16 %v3534, %v3532
        %v3563 = vpack.c.b16 %v3537, %v3535
        %v3564 = vpack.c.b16 %v3538, %v3536
        %v3565 = vpack.c.b16 %v3541, %v3539
        %v3566 = vpack.c.b16 %v3542, %v3540
        %v3567 = vpack.c.b16 %v3545, %v3543
        %v3568 = vpack.c.b16 %v3546, %v3544
        %v3569 = vpack.c.b16 %v3549, %v3547
        %v3570 = vpack.c.b16 %v3550, %v3548
        %v3571 = vpack.c.b16 %v3553, %v3551
        %v3572 = vpack.c.b16 %v3554, %v3552
        %v3573 = vpack.c.b16 %v3557, %v3555
        %v3574 = vpack.c.b16 %v3558, %v3556
        %3591 = vmatpush.bf16.msra.mxu0 %v3573
        %3592 = vmatpush.bf16.msra.mxu0 %v3571
        %3593 = vmatpush.bf16.msra.mxu0 %v3569
        %3594 = vmatpush.bf16.msra.mxu0 %v3567
        %3595 = vmatpush.bf16.msra.mxu0 %v3565
        %3596 = vmatpush.bf16.msra.mxu0 %v3563
        %3597 = vmatpush.bf16.msra.mxu0 %v3561
        %3598 = vmatpush.bf16.msra.mxu0 %v3559
        %3599 = vmatmul.bf16.gmra.mxu0 %v3473
        %v3600 = vpop.f32.mrf.mxu0
        %v3601 = vadd.f32 %v3507, %v3600
        %v3602 = vpop.f32.mrf.mxu0
        %v3603 = vadd.f32 %v3507, %v3602
        %3604 = vmatmul.bf16.gmra.mxu0 %v3474
        %v3605 = vpop.f32.mrf.mxu0
        %v3606 = vadd.f32 %v3507, %v3605
        %v3607 = vpop.f32.mrf.mxu0
        %v3608 = vadd.f32 %v3507, %v3607
        %3609 = vmatmul.bf16.gmra.mxu0 %v3475
        %v3610 = vpop.f32.mrf.mxu0
        %v3611 = vadd.f32 %v3507, %v3610
        %v3612 = vpop.f32.mrf.mxu0
        %v3613 = vadd.f32 %v3507, %v3612
        %3614 = vmatmul.bf16.gmra.mxu0 %v3476
        %v3615 = vpop.f32.mrf.mxu0
        %v3616 = vadd.f32 %v3507, %v3615
        %v3617 = vpop.f32.mrf.mxu0
        %v3618 = vadd.f32 %v3507, %v3617
        %3619 = vmatmul.bf16.gmra.mxu0 %v3477
        %v3620 = vpop.f32.mrf.mxu0
        %v3621 = vadd.f32 %v3507, %v3620
        %v3622 = vpop.f32.mrf.mxu0
        %v3623 = vadd.f32 %v3507, %v3622
        %3624 = vmatmul.bf16.gmra.mxu0 %v3478
        %v3625 = vpop.f32.mrf.mxu0
        %v3626 = vadd.f32 %v3507, %v3625
        %v3627 = vpop.f32.mrf.mxu0
        %v3628 = vadd.f32 %v3507, %v3627
        %3629 = vmatmul.bf16.gmra.mxu0 %v3479
        %v3630 = vpop.f32.mrf.mxu0
        %v3631 = vadd.f32 %v3507, %v3630
        %v3632 = vpop.f32.mrf.mxu0
        %v3633 = vadd.f32 %v3507, %v3632
        %3634 = vmatmul.bf16.gmra.mxu0 %v3480
        %v3635 = vpop.f32.mrf.mxu0
        %v3636 = vadd.f32 %v3507, %v3635
        %v3637 = vpop.f32.mrf.mxu0
        %v3638 = vadd.f32 %v3507, %v3637
        %3639 = vmatmul.bf16.gmra.mxu0 %v3481
        %v3640 = vpop.f32.mrf.mxu0
        %v3641 = vadd.f32 %v3507, %v3640
        %v3642 = vpop.f32.mrf.mxu0
        %v3643 = vadd.f32 %v3507, %v3642
        %3644 = vmatmul.bf16.gmra.mxu0 %v3482
        %v3645 = vpop.f32.mrf.mxu0
        %v3646 = vadd.f32 %v3507, %v3645
        %v3647 = vpop.f32.mrf.mxu0
        %v3648 = vadd.f32 %v3507, %v3647
        %3649 = vmatmul.bf16.gmra.mxu0 %v3483
        %v3650 = vpop.f32.mrf.mxu0
        %v3651 = vadd.f32 %v3507, %v3650
        %v3652 = vpop.f32.mrf.mxu0
        %v3653 = vadd.f32 %v3507, %v3652
        %3654 = vmatmul.bf16.gmra.mxu0 %v3484
        %v3655 = vpop.f32.mrf.mxu0
        %v3656 = vadd.f32 %v3507, %v3655
        %v3657 = vpop.f32.mrf.mxu0
        %v3658 = vadd.f32 %v3507, %v3657
        %3659 = vmatmul.bf16.gmra.mxu0 %v3485
        %v3660 = vpop.f32.mrf.mxu0
        %v3661 = vadd.f32 %v3507, %v3660
        %v3662 = vpop.f32.mrf.mxu0
        %v3663 = vadd.f32 %v3507, %v3662
        %3664 = vmatmul.bf16.gmra.mxu0 %v3486
        %v3665 = vpop.f32.mrf.mxu0
        %v3666 = vadd.f32 %v3507, %v3665
        %v3667 = vpop.f32.mrf.mxu0
        %v3668 = vadd.f32 %v3507, %v3667
        %3669 = vmatmul.bf16.gmra.mxu0 %v3487
        %v3670 = vpop.f32.mrf.mxu0
        %v3671 = vadd.f32 %v3507, %v3670
        %v3672 = vpop.f32.mrf.mxu0
        %v3673 = vadd.f32 %v3507, %v3672
        %3674 = vmatmul.bf16.gmra.mxu0 %v3488
        %v3675 = vpop.f32.mrf.mxu0
        %v3676 = vadd.f32 %v3507, %v3675
        %v3677 = vpop.f32.mrf.mxu0
        %v3678 = vadd.f32 %v3507, %v3677
        %3679 = vdwg.mxu0
        %3680 = vmatpush.bf16.msra.mxu0 %v3574
        %3681 = vmatpush.bf16.msra.mxu0 %v3572
        %3682 = vmatpush.bf16.msra.mxu0 %v3570
        %3683 = vmatpush.bf16.msra.mxu0 %v3568
        %3684 = vmatpush.bf16.msra.mxu0 %v3566
        %3685 = vmatpush.bf16.msra.mxu0 %v3564
        %3686 = vmatpush.bf16.msra.mxu0 %v3562
        %3687 = vmatpush.bf16.msra.mxu0 %v3560
        %3688 = vmatmul.bf16.gmra.mxu0 %v3473
        %v3689 = vpop.f32.mrf.mxu0
        %v3690 = vadd.f32 %v3508, %v3689
        %v3691 = vpop.f32.mrf.mxu0
        %v3692 = vadd.f32 %v3508, %v3691
        %3693 = vmatmul.bf16.gmra.mxu0 %v3474
        %v3694 = vpop.f32.mrf.mxu0
        %v3695 = vadd.f32 %v3508, %v3694
        %v3696 = vpop.f32.mrf.mxu0
        %v3697 = vadd.f32 %v3508, %v3696
        %3698 = vmatmul.bf16.gmra.mxu0 %v3475
        %v3699 = vpop.f32.mrf.mxu0
        %v3700 = vadd.f32 %v3508, %v3699
        %v3701 = vpop.f32.mrf.mxu0
        %v3702 = vadd.f32 %v3508, %v3701
        %3703 = vmatmul.bf16.gmra.mxu0 %v3476
        %v3704 = vpop.f32.mrf.mxu0
        %v3705 = vadd.f32 %v3508, %v3704
        %v3706 = vpop.f32.mrf.mxu0
        %v3707 = vadd.f32 %v3508, %v3706
        %3708 = vmatmul.bf16.gmra.mxu0 %v3477
        %v3709 = vpop.f32.mrf.mxu0
        %v3710 = vadd.f32 %v3508, %v3709
        %v3711 = vpop.f32.mrf.mxu0
        %v3712 = vadd.f32 %v3508, %v3711
        %3713 = vmatmul.bf16.gmra.mxu0 %v3478
        %v3714 = vpop.f32.mrf.mxu0
        %v3715 = vadd.f32 %v3508, %v3714
        %v3716 = vpop.f32.mrf.mxu0
        %v3717 = vadd.f32 %v3508, %v3716
        %3718 = vmatmul.bf16.gmra.mxu0 %v3479
        %v3719 = vpop.f32.mrf.mxu0
        %v3720 = vadd.f32 %v3508, %v3719
        %v3721 = vpop.f32.mrf.mxu0
        %v3722 = vadd.f32 %v3508, %v3721
        %3723 = vmatmul.bf16.gmra.mxu0 %v3480
        %v3724 = vpop.f32.mrf.mxu0
        %v3725 = vadd.f32 %v3508, %v3724
        %v3726 = vpop.f32.mrf.mxu0
        %v3727 = vadd.f32 %v3508, %v3726
        %3728 = vmatmul.bf16.gmra.mxu0 %v3481
        %v3729 = vpop.f32.mrf.mxu0
        %v3730 = vadd.f32 %v3508, %v3729
        %v3731 = vpop.f32.mrf.mxu0
        %v3732 = vadd.f32 %v3508, %v3731
        %3733 = vmatmul.bf16.gmra.mxu0 %v3482
        %v3734 = vpop.f32.mrf.mxu0
        %v3735 = vadd.f32 %v3508, %v3734
        %v3736 = vpop.f32.mrf.mxu0
        %v3737 = vadd.f32 %v3508, %v3736
        %3738 = vmatmul.bf16.gmra.mxu0 %v3483
        %v3739 = vpop.f32.mrf.mxu0
        %v3740 = vadd.f32 %v3508, %v3739
        %v3741 = vpop.f32.mrf.mxu0
        %v3742 = vadd.f32 %v3508, %v3741
        %3743 = vmatmul.bf16.gmra.mxu0 %v3484
        %v3744 = vpop.f32.mrf.mxu0
        %v3745 = vadd.f32 %v3508, %v3744
        %v3746 = vpop.f32.mrf.mxu0
        %v3747 = vadd.f32 %v3508, %v3746
        %3748 = vmatmul.bf16.gmra.mxu0 %v3485
        %v3749 = vpop.f32.mrf.mxu0
        %v3750 = vadd.f32 %v3508, %v3749
        %v3751 = vpop.f32.mrf.mxu0
        %v3752 = vadd.f32 %v3508, %v3751
        %3753 = vmatmul.bf16.gmra.mxu0 %v3486
        %v3754 = vpop.f32.mrf.mxu0
        %v3755 = vadd.f32 %v3508, %v3754
        %v3756 = vpop.f32.mrf.mxu0
        %v3757 = vadd.f32 %v3508, %v3756
        %3758 = vmatmul.bf16.gmra.mxu0 %v3487
        %v3759 = vpop.f32.mrf.mxu0
        %v3760 = vadd.f32 %v3508, %v3759
        %v3761 = vpop.f32.mrf.mxu0
        %v3762 = vadd.f32 %v3508, %v3761
        %3763 = vmatmul.bf16.gmra.mxu0 %v3488
        %v3764 = vpop.f32.mrf.mxu0
        %v3765 = vadd.f32 %v3508, %v3764
        %v3766 = vpop.f32.mrf.mxu0
        %v3767 = vadd.f32 %v3508, %v3766
        %3768 = vdwg.mxu0
        %v3769 = vmul.f32 %v3601, %v3601
        %v3770 = vmul.f32 %v3690, %v3690
        %v3771 = vmul.f32 %v3603, %v3603
        %v3772 = vmul.f32 %v3692, %v3692
        %v3773 = vmul.f32 %v3606, %v3606
        %v3774 = vmul.f32 %v3695, %v3695
        %v3775 = vmul.f32 %v3608, %v3608
        %v3776 = vmul.f32 %v3697, %v3697
        %v3777 = vmul.f32 %v3611, %v3611
        %v3778 = vmul.f32 %v3700, %v3700
        %v3779 = vmul.f32 %v3613, %v3613
        %v3780 = vmul.f32 %v3702, %v3702
        %v3781 = vmul.f32 %v3616, %v3616
        %v3782 = vmul.f32 %v3705, %v3705
        %v3783 = vmul.f32 %v3618, %v3618
        %v3784 = vmul.f32 %v3707, %v3707
        %v3785 = vmul.f32 %v3621, %v3621
        %v3786 = vmul.f32 %v3710, %v3710
        %v3787 = vmul.f32 %v3623, %v3623
        %v3788 = vmul.f32 %v3712, %v3712
        %v3789 = vmul.f32 %v3626, %v3626
        %v3790 = vmul.f32 %v3715, %v3715
        %v3791 = vmul.f32 %v3628, %v3628
        %v3792 = vmul.f32 %v3717, %v3717
        %v3793 = vmul.f32 %v3631, %v3631
        %v3794 = vmul.f32 %v3720, %v3720
        %v3795 = vmul.f32 %v3633, %v3633
        %v3796 = vmul.f32 %v3722, %v3722
        %v3797 = vmul.f32 %v3636, %v3636
        %v3798 = vmul.f32 %v3725, %v3725
        %v3799 = vmul.f32 %v3638, %v3638
        %v3800 = vmul.f32 %v3727, %v3727
        %v3801 = vmul.f32 %v3641, %v3641
        %v3802 = vmul.f32 %v3730, %v3730
        %v3803 = vmul.f32 %v3643, %v3643
        %v3804 = vmul.f32 %v3732, %v3732
        %v3805 = vmul.f32 %v3646, %v3646
        %v3806 = vmul.f32 %v3735, %v3735
        %v3807 = vmul.f32 %v3648, %v3648
        %v3808 = vmul.f32 %v3737, %v3737
        %v3809 = vmul.f32 %v3651, %v3651
        %v3810 = vmul.f32 %v3740, %v3740
        %v3811 = vmul.f32 %v3653, %v3653
        %v3812 = vmul.f32 %v3742, %v3742
        %v3813 = vmul.f32 %v3656, %v3656
        %v3814 = vmul.f32 %v3745, %v3745
        %v3815 = vmul.f32 %v3658, %v3658
        %v3816 = vmul.f32 %v3747, %v3747
        %v3817 = vmul.f32 %v3661, %v3661
        %v3818 = vmul.f32 %v3750, %v3750
        %v3819 = vmul.f32 %v3663, %v3663
        %v3820 = vmul.f32 %v3752, %v3752
        %v3821 = vmul.f32 %v3666, %v3666
        %v3822 = vmul.f32 %v3755, %v3755
        %v3823 = vmul.f32 %v3668, %v3668
        %v3824 = vmul.f32 %v3757, %v3757
        %v3825 = vmul.f32 %v3671, %v3671
        %v3826 = vmul.f32 %v3760, %v3760
        %v3827 = vmul.f32 %v3673, %v3673
        %v3828 = vmul.f32 %v3762, %v3762
        %v3829 = vmul.f32 %v3676, %v3676
        %v3830 = vmul.f32 %v3765, %v3765
        %v3831 = vmul.f32 %v3678, %v3678
        %v3832 = vmul.f32 %v3767, %v3767
        %v3833 = vmul.f32 %v3601, %v3769
        %v3834 = vmul.f32 %v3690, %v3770
        %v3835 = vmul.f32 %v3603, %v3771
        %v3836 = vmul.f32 %v3692, %v3772
        %v3837 = vmul.f32 %v3606, %v3773
        %v3838 = vmul.f32 %v3695, %v3774
        %v3839 = vmul.f32 %v3608, %v3775
        %v3840 = vmul.f32 %v3697, %v3776
        %v3841 = vmul.f32 %v3611, %v3777
        %v3842 = vmul.f32 %v3700, %v3778
        %v3843 = vmul.f32 %v3613, %v3779
        %v3844 = vmul.f32 %v3702, %v3780
        %v3845 = vmul.f32 %v3616, %v3781
        %v3846 = vmul.f32 %v3705, %v3782
        %v3847 = vmul.f32 %v3618, %v3783
        %v3848 = vmul.f32 %v3707, %v3784
        %v3849 = vmul.f32 %v3621, %v3785
        %v3850 = vmul.f32 %v3710, %v3786
        %v3851 = vmul.f32 %v3623, %v3787
        %v3852 = vmul.f32 %v3712, %v3788
        %v3853 = vmul.f32 %v3626, %v3789
        %v3854 = vmul.f32 %v3715, %v3790
        %v3855 = vmul.f32 %v3628, %v3791
        %v3856 = vmul.f32 %v3717, %v3792
        %v3857 = vmul.f32 %v3631, %v3793
        %v3858 = vmul.f32 %v3720, %v3794
        %v3859 = vmul.f32 %v3633, %v3795
        %v3860 = vmul.f32 %v3722, %v3796
        %v3861 = vmul.f32 %v3636, %v3797
        %v3862 = vmul.f32 %v3725, %v3798
        %v3863 = vmul.f32 %v3638, %v3799
        %v3864 = vmul.f32 %v3727, %v3800
        %v3865 = vmul.f32 %v3641, %v3801
        %v3866 = vmul.f32 %v3730, %v3802
        %v3867 = vmul.f32 %v3643, %v3803
        %v3868 = vmul.f32 %v3732, %v3804
        %v3869 = vmul.f32 %v3646, %v3805
        %v3870 = vmul.f32 %v3735, %v3806
        %v3871 = vmul.f32 %v3648, %v3807
        %v3872 = vmul.f32 %v3737, %v3808
        %v3873 = vmul.f32 %v3651, %v3809
        %v3874 = vmul.f32 %v3740, %v3810
        %v3875 = vmul.f32 %v3653, %v3811
        %v3876 = vmul.f32 %v3742, %v3812
        %v3877 = vmul.f32 %v3656, %v3813
        %v3878 = vmul.f32 %v3745, %v3814
        %v3879 = vmul.f32 %v3658, %v3815
        %v3880 = vmul.f32 %v3747, %v3816
        %v3881 = vmul.f32 %v3661, %v3817
        %v3882 = vmul.f32 %v3750, %v3818
        %v3883 = vmul.f32 %v3663, %v3819
        %v3884 = vmul.f32 %v3752, %v3820
        %v3885 = vmul.f32 %v3666, %v3821
        %v3886 = vmul.f32 %v3755, %v3822
        %v3887 = vmul.f32 %v3668, %v3823
        %v3888 = vmul.f32 %v3757, %v3824
        %v3889 = vmul.f32 %v3671, %v3825
        %v3890 = vmul.f32 %v3760, %v3826
        %v3891 = vmul.f32 %v3673, %v3827
        %v3892 = vmul.f32 %v3762, %v3828
        %v3893 = vmul.f32 %v3676, %v3829
        %v3894 = vmul.f32 %v3765, %v3830
        %v3895 = vmul.f32 %v3678, %v3831
        %v3896 = vmul.f32 %v3767, %v3832
        %v3897 = vmul.f32 %v3833, 0.044715
        %v3898 = vmul.f32 %v3834, 0.044715
        %v3899 = vmul.f32 %v3835, 0.044715
        %v3900 = vmul.f32 %v3836, 0.044715
        %v3901 = vmul.f32 %v3837, 0.044715
        %v3902 = vmul.f32 %v3838, 0.044715
        %v3903 = vmul.f32 %v3839, 0.044715
        %v3904 = vmul.f32 %v3840, 0.044715
        %v3905 = vmul.f32 %v3841, 0.044715
        %v3906 = vmul.f32 %v3842, 0.044715
        %v3907 = vmul.f32 %v3843, 0.044715
        %v3908 = vmul.f32 %v3844, 0.044715
        %v3909 = vmul.f32 %v3845, 0.044715
        %v3910 = vmul.f32 %v3846, 0.044715
        %v3911 = vmul.f32 %v3847, 0.044715
        %v3912 = vmul.f32 %v3848, 0.044715
        %v3913 = vmul.f32 %v3849, 0.044715
        %v3914 = vmul.f32 %v3850, 0.044715
        %v3915 = vmul.f32 %v3851, 0.044715
        %v3916 = vmul.f32 %v3852, 0.044715
        %v3917 = vmul.f32 %v3853, 0.044715
        %v3918 = vmul.f32 %v3854, 0.044715
        %v3919 = vmul.f32 %v3855, 0.044715
        %v3920 = vmul.f32 %v3856, 0.044715
        %v3921 = vmul.f32 %v3857, 0.044715
        %v3922 = vmul.f32 %v3858, 0.044715
        %v3923 = vmul.f32 %v3859, 0.044715
        %v3924 = vmul.f32 %v3860, 0.044715
        %v3925 = vmul.f32 %v3861, 0.044715
        %v3926 = vmul.f32 %v3862, 0.044715
        %v3927 = vmul.f32 %v3863, 0.044715
        %v3928 = vmul.f32 %v3864, 0.044715
        %v3929 = vmul.f32 %v3865, 0.044715
        %v3930 = vmul.f32 %v3866, 0.044715
        %v3931 = vmul.f32 %v3867, 0.044715
        %v3932 = vmul.f32 %v3868, 0.044715
        %v3933 = vmul.f32 %v3869, 0.044715
        %v3934 = vmul.f32 %v3870, 0.044715
        %v3935 = vmul.f32 %v3871, 0.044715
        %v3936 = vmul.f32 %v3872, 0.044715
        %v3937 = vmul.f32 %v3873, 0.044715
        %v3938 = vmul.f32 %v3874, 0.044715
        %v3939 = vmul.f32 %v3875, 0.044715
        %v3940 = vmul.f32 %v3876, 0.044715
        %v3941 = vmul.f32 %v3877, 0.044715
        %v3942 = vmul.f32 %v3878, 0.044715
        %v3943 = vmul.f32 %v3879, 0.044715
        %v3944 = vmul.f32 %v3880, 0.044715
        %v3945 = vmul.f32 %v3881, 0.044715
        %v3946 = vmul.f32 %v3882, 0.044715
        %v3947 = vmul.f32 %v3883, 0.044715
        %v3948 = vmul.f32 %v3884, 0.044715
        %v3949 = vmul.f32 %v3885, 0.044715
        %v3950 = vmul.f32 %v3886, 0.044715
        %v3951 = vmul.f32 %v3887, 0.044715
        %v3952 = vmul.f32 %v3888, 0.044715
        %v3953 = vmul.f32 %v3889, 0.044715
        %v3954 = vmul.f32 %v3890, 0.044715
        %v3955 = vmul.f32 %v3891, 0.044715
        %v3956 = vmul.f32 %v3892, 0.044715
        %v3957 = vmul.f32 %v3893, 0.044715
        %v3958 = vmul.f32 %v3894, 0.044715
        %v3959 = vmul.f32 %v3895, 0.044715
        %v3960 = vmul.f32 %v3896, 0.044715
        %v3961 = vadd.f32 %v3601, %v3897
        %v3962 = vadd.f32 %v3690, %v3898
        %v3963 = vadd.f32 %v3603, %v3899
        %v3964 = vadd.f32 %v3692, %v3900
        %v3965 = vadd.f32 %v3606, %v3901
        %v3966 = vadd.f32 %v3695, %v3902
        %v3967 = vadd.f32 %v3608, %v3903
        %v3968 = vadd.f32 %v3697, %v3904
        %v3969 = vadd.f32 %v3611, %v3905
        %v3970 = vadd.f32 %v3700, %v3906
        %v3971 = vadd.f32 %v3613, %v3907
        %v3972 = vadd.f32 %v3702, %v3908
        %v3973 = vadd.f32 %v3616, %v3909
        %v3974 = vadd.f32 %v3705, %v3910
        %v3975 = vadd.f32 %v3618, %v3911
        %v3976 = vadd.f32 %v3707, %v3912
        %v3977 = vadd.f32 %v3621, %v3913
        %v3978 = vadd.f32 %v3710, %v3914
        %v3979 = vadd.f32 %v3623, %v3915
        %v3980 = vadd.f32 %v3712, %v3916
        %v3981 = vadd.f32 %v3626, %v3917
        %v3982 = vadd.f32 %v3715, %v3918
        %v3983 = vadd.f32 %v3628, %v3919
        %v3984 = vadd.f32 %v3717, %v3920
        %v3985 = vadd.f32 %v3631, %v3921
        %v3986 = vadd.f32 %v3720, %v3922
        %v3987 = vadd.f32 %v3633, %v3923
        %v3988 = vadd.f32 %v3722, %v3924
        %v3989 = vadd.f32 %v3636, %v3925
        %v3990 = vadd.f32 %v3725, %v3926
        %v3991 = vadd.f32 %v3638, %v3927
        %v3992 = vadd.f32 %v3727, %v3928
        %v3993 = vadd.f32 %v3641, %v3929
        %v3994 = vadd.f32 %v3730, %v3930
        %v3995 = vadd.f32 %v3643, %v3931
        %v3996 = vadd.f32 %v3732, %v3932
        %v3997 = vadd.f32 %v3646, %v3933
        %v3998 = vadd.f32 %v3735, %v3934
        %v3999 = vadd.f32 %v3648, %v3935
        %v4000 = vadd.f32 %v3737, %v3936
        %v4001 = vadd.f32 %v3651, %v3937
        %v4002 = vadd.f32 %v3740, %v3938
        %v4003 = vadd.f32 %v3653, %v3939
        %v4004 = vadd.f32 %v3742, %v3940
        %v4005 = vadd.f32 %v3656, %v3941
        %v4006 = vadd.f32 %v3745, %v3942
        %v4007 = vadd.f32 %v3658, %v3943
        %v4008 = vadd.f32 %v3747, %v3944
        %v4009 = vadd.f32 %v3661, %v3945
        %v4010 = vadd.f32 %v3750, %v3946
        %v4011 = vadd.f32 %v3663, %v3947
        %v4012 = vadd.f32 %v3752, %v3948
        %v4013 = vadd.f32 %v3666, %v3949
        %v4014 = vadd.f32 %v3755, %v3950
        %v4015 = vadd.f32 %v3668, %v3951
        %v4016 = vadd.f32 %v3757, %v3952
        %v4017 = vadd.f32 %v3671, %v3953
        %v4018 = vadd.f32 %v3760, %v3954
        %v4019 = vadd.f32 %v3673, %v3955
        %v4020 = vadd.f32 %v3762, %v3956
        %v4021 = vadd.f32 %v3676, %v3957
        %v4022 = vadd.f32 %v3765, %v3958
        %v4023 = vadd.f32 %v3678, %v3959
        %v4024 = vadd.f32 %v3767, %v3960
        %v4025 = vmul.f32 %v3961, 0.7978846
        %v4026 = vmul.f32 %v3962, 0.7978846
        %v4027 = vmul.f32 %v3963, 0.7978846
        %v4028 = vmul.f32 %v3964, 0.7978846
        %v4029 = vmul.f32 %v3965, 0.7978846
        %v4030 = vmul.f32 %v3966, 0.7978846
        %v4031 = vmul.f32 %v3967, 0.7978846
        %v4032 = vmul.f32 %v3968, 0.7978846
        %v4033 = vmul.f32 %v3969, 0.7978846
        %v4034 = vmul.f32 %v3970, 0.7978846
        %v4035 = vmul.f32 %v3971, 0.7978846
        %v4036 = vmul.f32 %v3972, 0.7978846
        %v4037 = vmul.f32 %v3973, 0.7978846
        %v4038 = vmul.f32 %v3974, 0.7978846
        %v4039 = vmul.f32 %v3975, 0.7978846
        %v4040 = vmul.f32 %v3976, 0.7978846
        %v4041 = vmul.f32 %v3977, 0.7978846
        %v4042 = vmul.f32 %v3978, 0.7978846
        %v4043 = vmul.f32 %v3979, 0.7978846
        %v4044 = vmul.f32 %v3980, 0.7978846
        %v4045 = vmul.f32 %v3981, 0.7978846
        %v4046 = vmul.f32 %v3982, 0.7978846
        %v4047 = vmul.f32 %v3983, 0.7978846
        %v4048 = vmul.f32 %v3984, 0.7978846
        %v4049 = vmul.f32 %v3985, 0.7978846
        %v4050 = vmul.f32 %v3986, 0.7978846
        %v4051 = vmul.f32 %v3987, 0.7978846
        %v4052 = vmul.f32 %v3988, 0.7978846
        %v4053 = vmul.f32 %v3989, 0.7978846
        %v4054 = vmul.f32 %v3990, 0.7978846
        %v4055 = vmul.f32 %v3991, 0.7978846
        %v4056 = vmul.f32 %v3992, 0.7978846
        %v4057 = vmul.f32 %v3993, 0.7978846
        %v4058 = vmul.f32 %v3994, 0.7978846
        %v4059 = vmul.f32 %v3995, 0.7978846
        %v4060 = vmul.f32 %v3996, 0.7978846
        %v4061 = vmul.f32 %v3997, 0.7978846
        %v4062 = vmul.f32 %v3998, 0.7978846
        %v4063 = vmul.f32 %v3999, 0.7978846
        %v4064 = vmul.f32 %v4000, 0.7978846
        %v4065 = vmul.f32 %v4001, 0.7978846
        %v4066 = vmul.f32 %v4002, 0.7978846
        %v4067 = vmul.f32 %v4003, 0.7978846
        %v4068 = vmul.f32 %v4004, 0.7978846
        %v4069 = vmul.f32 %v4005, 0.7978846
        %v4070 = vmul.f32 %v4006, 0.7978846
        %v4071 = vmul.f32 %v4007, 0.7978846
        %v4072 = vmul.f32 %v4008, 0.7978846
        %v4073 = vmul.f32 %v4009, 0.7978846
        %v4074 = vmul.f32 %v4010, 0.7978846
        %v4075 = vmul.f32 %v4011, 0.7978846
        %v4076 = vmul.f32 %v4012, 0.7978846
        %v4077 = vmul.f32 %v4013, 0.7978846
        %v4078 = vmul.f32 %v4014, 0.7978846
        %v4079 = vmul.f32 %v4015, 0.7978846
        %v4080 = vmul.f32 %v4016, 0.7978846
        %v4081 = vmul.f32 %v4017, 0.7978846
        %v4082 = vmul.f32 %v4018, 0.7978846
        %v4083 = vmul.f32 %v4019, 0.7978846
        %v4084 = vmul.f32 %v4020, 0.7978846
        %v4085 = vmul.f32 %v4021, 0.7978846
        %v4086 = vmul.f32 %v4022, 0.7978846
        %v4087 = vmul.f32 %v4023, 0.7978846
        %v4088 = vmul.f32 %v4024, 0.7978846
        %v4089 = vtanh.pop %v4025
        %v4090 = vtanh.pop %v4026
        %v4091 = vtanh.pop %v4027
        %v4092 = vtanh.pop %v4028
        %v4093 = vtanh.pop %v4029
        %v4094 = vtanh.pop %v4030
        %v4095 = vtanh.pop %v4031
        %v4096 = vtanh.pop %v4032
        %v4097 = vtanh.pop %v4033
        %v4098 = vtanh.pop %v4034
        %v4099 = vtanh.pop %v4035
        %v4100 = vtanh.pop %v4036
        %v4101 = vtanh.pop %v4037
        %v4102 = vtanh.pop %v4038
        %v4103 = vtanh.pop %v4039
        %v4104 = vtanh.pop %v4040
        %v4105 = vtanh.pop %v4041
        %v4106 = vtanh.pop %v4042
        %v4107 = vtanh.pop %v4043
        %v4108 = vtanh.pop %v4044
        %v4109 = vtanh.pop %v4045
        %v4110 = vtanh.pop %v4046
        %v4111 = vtanh.pop %v4047
        %v4112 = vtanh.pop %v4048
        %v4113 = vtanh.pop %v4049
        %v4114 = vtanh.pop %v4050
        %v4115 = vtanh.pop %v4051
        %v4116 = vtanh.pop %v4052
        %v4117 = vtanh.pop %v4053
        %v4118 = vtanh.pop %v4054
        %v4119 = vtanh.pop %v4055
        %v4120 = vtanh.pop %v4056
        %v4121 = vtanh.pop %v4057
        %v4122 = vtanh.pop %v4058
        %v4123 = vtanh.pop %v4059
        %v4124 = vtanh.pop %v4060
        %v4125 = vtanh.pop %v4061
        %v4126 = vtanh.pop %v4062
        %v4127 = vtanh.pop %v4063
        %v4128 = vtanh.pop %v4064
        %v4129 = vtanh.pop %v4065
        %v4130 = vtanh.pop %v4066
        %v4131 = vtanh.pop %v4067
        %v4132 = vtanh.pop %v4068
        %v4133 = vtanh.pop %v4069
        %v4134 = vtanh.pop %v4070
        %v4135 = vtanh.pop %v4071
        %v4136 = vtanh.pop %v4072
        %v4137 = vtanh.pop %v4073
        %v4138 = vtanh.pop %v4074
        %v4139 = vtanh.pop %v4075
        %v4140 = vtanh.pop %v4076
        %v4141 = vtanh.pop %v4077
        %v4142 = vtanh.pop %v4078
        %v4143 = vtanh.pop %v4079
        %v4144 = vtanh.pop %v4080
        %v4145 = vtanh.pop %v4081
        %v4146 = vtanh.pop %v4082
        %v4147 = vtanh.pop %v4083
        %v4148 = vtanh.pop %v4084
        %v4149 = vtanh.pop %v4085
        %v4150 = vtanh.pop %v4086
        %v4151 = vtanh.pop %v4087
        %v4152 = vtanh.pop %v4088
        %v4153 = vadd.f32 %v4089, 1.0
        %v4154 = vadd.f32 %v4090, 1.0
        %v4155 = vadd.f32 %v4091, 1.0
        %v4156 = vadd.f32 %v4092, 1.0
        %v4157 = vadd.f32 %v4093, 1.0
        %v4158 = vadd.f32 %v4094, 1.0
        %v4159 = vadd.f32 %v4095, 1.0
        %v4160 = vadd.f32 %v4096, 1.0
        %v4161 = vadd.f32 %v4097, 1.0
        %v4162 = vadd.f32 %v4098, 1.0
        %v4163 = vadd.f32 %v4099, 1.0
        %v4164 = vadd.f32 %v4100, 1.0
        %v4165 = vadd.f32 %v4101, 1.0
        %v4166 = vadd.f32 %v4102, 1.0
        %v4167 = vadd.f32 %v4103, 1.0
        %v4168 = vadd.f32 %v4104, 1.0
        %v4169 = vadd.f32 %v4105, 1.0
        %v4170 = vadd.f32 %v4106, 1.0
        %v4171 = vadd.f32 %v4107, 1.0
        %v4172 = vadd.f32 %v4108, 1.0
        %v4173 = vadd.f32 %v4109, 1.0
        %v4174 = vadd.f32 %v4110, 1.0
        %v4175 = vadd.f32 %v4111, 1.0
        %v4176 = vadd.f32 %v4112, 1.0
        %v4177 = vadd.f32 %v4113, 1.0
        %v4178 = vadd.f32 %v4114, 1.0
        %v4179 = vadd.f32 %v4115, 1.0
        %v4180 = vadd.f32 %v4116, 1.0
        %v4181 = vadd.f32 %v4117, 1.0
        %v4182 = vadd.f32 %v4118, 1.0
        %v4183 = vadd.f32 %v4119, 1.0
        %v4184 = vadd.f32 %v4120, 1.0
        %v4185 = vadd.f32 %v4121, 1.0
        %v4186 = vadd.f32 %v4122, 1.0
        %v4187 = vadd.f32 %v4123, 1.0
        %v4188 = vadd.f32 %v4124, 1.0
        %v4189 = vadd.f32 %v4125, 1.0
        %v4190 = vadd.f32 %v4126, 1.0
        %v4191 = vadd.f32 %v4127, 1.0
        %v4192 = vadd.f32 %v4128, 1.0
        %v4193 = vadd.f32 %v4129, 1.0
        %v4194 = vadd.f32 %v4130, 1.0
        %v4195 = vadd.f32 %v4131, 1.0
        %v4196 = vadd.f32 %v4132, 1.0
        %v4197 = vadd.f32 %v4133, 1.0
        %v4198 = vadd.f32 %v4134, 1.0
        %v4199 = vadd.f32 %v4135, 1.0
        %v4200 = vadd.f32 %v4136, 1.0
        %v4201 = vadd.f32 %v4137, 1.0
        %v4202 = vadd.f32 %v4138, 1.0
        %v4203 = vadd.f32 %v4139, 1.0
        %v4204 = vadd.f32 %v4140, 1.0
        %v4205 = vadd.f32 %v4141, 1.0
        %v4206 = vadd.f32 %v4142, 1.0
        %v4207 = vadd.f32 %v4143, 1.0
        %v4208 = vadd.f32 %v4144, 1.0
        %v4209 = vadd.f32 %v4145, 1.0
        %v4210 = vadd.f32 %v4146, 1.0
        %v4211 = vadd.f32 %v4147, 1.0
        %v4212 = vadd.f32 %v4148, 1.0
        %v4213 = vadd.f32 %v4149, 1.0
        %v4214 = vadd.f32 %v4150, 1.0
        %v4215 = vadd.f32 %v4151, 1.0
        %v4216 = vadd.f32 %v4152, 1.0
        %v4217 = vmul.f32 %v4153, 0.5
        %v4218 = vmul.f32 %v4154, 0.5
        %v4219 = vmul.f32 %v4155, 0.5
        %v4220 = vmul.f32 %v4156, 0.5
        %v4221 = vmul.f32 %v4157, 0.5
        %v4222 = vmul.f32 %v4158, 0.5
        %v4223 = vmul.f32 %v4159, 0.5
        %v4224 = vmul.f32 %v4160, 0.5
        %v4225 = vmul.f32 %v4161, 0.5
        %v4226 = vmul.f32 %v4162, 0.5
        %v4227 = vmul.f32 %v4163, 0.5
        %v4228 = vmul.f32 %v4164, 0.5
        %v4229 = vmul.f32 %v4165, 0.5
        %v4230 = vmul.f32 %v4166, 0.5
        %v4231 = vmul.f32 %v4167, 0.5
        %v4232 = vmul.f32 %v4168, 0.5
        %v4233 = vmul.f32 %v4169, 0.5
        %v4234 = vmul.f32 %v4170, 0.5
        %v4235 = vmul.f32 %v4171, 0.5
        %v4236 = vmul.f32 %v4172, 0.5
        %v4237 = vmul.f32 %v4173, 0.5
        %v4238 = vmul.f32 %v4174, 0.5
        %v4239 = vmul.f32 %v4175, 0.5
        %v4240 = vmul.f32 %v4176, 0.5
        %v4241 = vmul.f32 %v4177, 0.5
        %v4242 = vmul.f32 %v4178, 0.5
        %v4243 = vmul.f32 %v4179, 0.5
        %v4244 = vmul.f32 %v4180, 0.5
        %v4245 = vmul.f32 %v4181, 0.5
        %v4246 = vmul.f32 %v4182, 0.5
        %v4247 = vmul.f32 %v4183, 0.5
        %v4248 = vmul.f32 %v4184, 0.5
        %v4249 = vmul.f32 %v4185, 0.5
        %v4250 = vmul.f32 %v4186, 0.5
        %v4251 = vmul.f32 %v4187, 0.5
        %v4252 = vmul.f32 %v4188, 0.5
        %v4253 = vmul.f32 %v4189, 0.5
        %v4254 = vmul.f32 %v4190, 0.5
        %v4255 = vmul.f32 %v4191, 0.5
        %v4256 = vmul.f32 %v4192, 0.5
        %v4257 = vmul.f32 %v4193, 0.5
        %v4258 = vmul.f32 %v4194, 0.5
        %v4259 = vmul.f32 %v4195, 0.5
        %v4260 = vmul.f32 %v4196, 0.5
        %v4261 = vmul.f32 %v4197, 0.5
        %v4262 = vmul.f32 %v4198, 0.5
        %v4263 = vmul.f32 %v4199, 0.5
        %v4264 = vmul.f32 %v4200, 0.5
        %v4265 = vmul.f32 %v4201, 0.5
        %v4266 = vmul.f32 %v4202, 0.5
        %v4267 = vmul.f32 %v4203, 0.5
        %v4268 = vmul.f32 %v4204, 0.5
        %v4269 = vmul.f32 %v4205, 0.5
        %v4270 = vmul.f32 %v4206, 0.5
        %v4271 = vmul.f32 %v4207, 0.5
        %v4272 = vmul.f32 %v4208, 0.5
        %v4273 = vmul.f32 %v4209, 0.5
        %v4274 = vmul.f32 %v4210, 0.5
        %v4275 = vmul.f32 %v4211, 0.5
        %v4276 = vmul.f32 %v4212, 0.5
        %v4277 = vmul.f32 %v4213, 0.5
        %v4278 = vmul.f32 %v4214, 0.5
        %v4279 = vmul.f32 %v4215, 0.5
        %v4280 = vmul.f32 %v4216, 0.5
        %v4281 = vmul.f32 %v3601, %v4217
        %v4282 = vmul.f32 %v3690, %v4218
        %v4283 = vmul.f32 %v3603, %v4219
        %v4284 = vmul.f32 %v3692, %v4220
        %v4285 = vmul.f32 %v3606, %v4221
        %v4286 = vmul.f32 %v3695, %v4222
        %v4287 = vmul.f32 %v3608, %v4223
        %v4288 = vmul.f32 %v3697, %v4224
        %v4289 = vmul.f32 %v3611, %v4225
        %v4290 = vmul.f32 %v3700, %v4226
        %v4291 = vmul.f32 %v3613, %v4227
        %v4292 = vmul.f32 %v3702, %v4228
        %v4293 = vmul.f32 %v3616, %v4229
        %v4294 = vmul.f32 %v3705, %v4230
        %v4295 = vmul.f32 %v3618, %v4231
        %v4296 = vmul.f32 %v3707, %v4232
        %v4297 = vmul.f32 %v3621, %v4233
        %v4298 = vmul.f32 %v3710, %v4234
        %v4299 = vmul.f32 %v3623, %v4235
        %v4300 = vmul.f32 %v3712, %v4236
        %v4301 = vmul.f32 %v3626, %v4237
        %v4302 = vmul.f32 %v3715, %v4238
        %v4303 = vmul.f32 %v3628, %v4239
        %v4304 = vmul.f32 %v3717, %v4240
        %v4305 = vmul.f32 %v3631, %v4241
        %v4306 = vmul.f32 %v3720, %v4242
        %v4307 = vmul.f32 %v3633, %v4243
        %v4308 = vmul.f32 %v3722, %v4244
        %v4309 = vmul.f32 %v3636, %v4245
        %v4310 = vmul.f32 %v3725, %v4246
        %v4311 = vmul.f32 %v3638, %v4247
        %v4312 = vmul.f32 %v3727, %v4248
        %v4313 = vmul.f32 %v3641, %v4249
        %v4314 = vmul.f32 %v3730, %v4250
        %v4315 = vmul.f32 %v3643, %v4251
        %v4316 = vmul.f32 %v3732, %v4252
        %v4317 = vmul.f32 %v3646, %v4253
        %v4318 = vmul.f32 %v3735, %v4254
        %v4319 = vmul.f32 %v3648, %v4255
        %v4320 = vmul.f32 %v3737, %v4256
        %v4321 = vmul.f32 %v3651, %v4257
        %v4322 = vmul.f32 %v3740, %v4258
        %v4323 = vmul.f32 %v3653, %v4259
        %v4324 = vmul.f32 %v3742, %v4260
        %v4325 = vmul.f32 %v3656, %v4261
        %v4326 = vmul.f32 %v3745, %v4262
        %v4327 = vmul.f32 %v3658, %v4263
        %v4328 = vmul.f32 %v3747, %v4264
        %v4329 = vmul.f32 %v3661, %v4265
        %v4330 = vmul.f32 %v3750, %v4266
        %v4331 = vmul.f32 %v3663, %v4267
        %v4332 = vmul.f32 %v3752, %v4268
        %v4333 = vmul.f32 %v3666, %v4269
        %v4334 = vmul.f32 %v3755, %v4270
        %v4335 = vmul.f32 %v3668, %v4271
        %v4336 = vmul.f32 %v3757, %v4272
        %v4337 = vmul.f32 %v3671, %v4273
        %v4338 = vmul.f32 %v3760, %v4274
        %v4339 = vmul.f32 %v3673, %v4275
        %v4340 = vmul.f32 %v3762, %v4276
        %v4341 = vmul.f32 %v3676, %v4277
        %v4342 = vmul.f32 %v3765, %v4278
        %v4343 = vmul.f32 %v3678, %v4279
        %v4344 = vmul.f32 %v3767, %v4280
        %v4345 = vpack.c.bf16 %v4283, %v4281
        %v4346 = vpack.c.bf16 %v4284, %v4282
        %v4347 = vpack.c.bf16 %v4287, %v4285
        %v4348 = vpack.c.bf16 %v4288, %v4286
        %v4349 = vpack.c.bf16 %v4291, %v4289
        %v4350 = vpack.c.bf16 %v4292, %v4290
        %v4351 = vpack.c.bf16 %v4295, %v4293
        %v4352 = vpack.c.bf16 %v4296, %v4294
        %v4353 = vpack.c.bf16 %v4299, %v4297
        %v4354 = vpack.c.bf16 %v4300, %v4298
        %v4355 = vpack.c.bf16 %v4303, %v4301
        %v4356 = vpack.c.bf16 %v4304, %v4302
        %v4357 = vpack.c.bf16 %v4307, %v4305
        %v4358 = vpack.c.bf16 %v4308, %v4306
        %v4359 = vpack.c.bf16 %v4311, %v4309
        %v4360 = vpack.c.bf16 %v4312, %v4310
        %v4361 = vpack.c.bf16 %v4315, %v4313
        %v4362 = vpack.c.bf16 %v4316, %v4314
        %v4363 = vpack.c.bf16 %v4319, %v4317
        %v4364 = vpack.c.bf16 %v4320, %v4318
        %v4365 = vpack.c.bf16 %v4323, %v4321
        %v4366 = vpack.c.bf16 %v4324, %v4322
        %v4367 = vpack.c.bf16 %v4327, %v4325
        %v4368 = vpack.c.bf16 %v4328, %v4326
        %v4369 = vpack.c.bf16 %v4331, %v4329
        %v4370 = vpack.c.bf16 %v4332, %v4330
        %v4371 = vpack.c.bf16 %v4335, %v4333
        %v4372 = vpack.c.bf16 %v4336, %v4334
        %v4373 = vpack.c.bf16 %v4339, %v4337
        %v4374 = vpack.c.bf16 %v4340, %v4338
        %v4375 = vpack.c.bf16 %v4343, %v4341
        %v4376 = vpack.c.bf16 %v4344, %v4342
        %v4377 = vld [vmem:[#allocation15] sm:$0xf]
        %v4378 = vld [vmem:[#allocation15 + $0x4] sm:$0xf]
        %v4379 = vld [vmem:[#allocation15 + $0x8] sm:$0xf]
        %v4380 = vld [vmem:[#allocation15 + $0xc] sm:$0xf]
        %v4381 = vld [vmem:[#allocation15 + $0x10] sm:$0xf]
        %v4382 = vld [vmem:[#allocation15 + $0x14] sm:$0xf]
        %v4383 = vld [vmem:[#allocation15 + $0x18] sm:$0xf]
        %v4384 = vld [vmem:[#allocation15 + $0x1c] sm:$0xf]
        %v4385 = vld [vmem:[#allocation15 + $0x20] sm:$0xf]
        %v4386 = vld [vmem:[#allocation15 + $0x24] sm:$0xf]
        %v4387 = vld [vmem:[#allocation15 + $0x28] sm:$0xf]
        %v4388 = vld [vmem:[#allocation15 + $0x2c] sm:$0xf]
        %v4389 = vld [vmem:[#allocation15 + $0x30] sm:$0xf]
        %v4390 = vld [vmem:[#allocation15 + $0x34] sm:$0xf]
        %v4391 = vld [vmem:[#allocation15 + $0x38] sm:$0xf]
        %v4392 = vld [vmem:[#allocation15 + $0x3c] sm:$0xf]
        %v4393 = vld [vmem:[#allocation15 + $0x40] sm:$0xf]
        %v4394 = vld [vmem:[#allocation15 + $0x44] sm:$0xf]
        %v4395 = vld [vmem:[#allocation15 + $0x48] sm:$0xf]
        %v4396 = vld [vmem:[#allocation15 + $0x4c] sm:$0xf]
        %v4397 = vld [vmem:[#allocation15 + $0x50] sm:$0xf]
        %v4398 = vld [vmem:[#allocation15 + $0x54] sm:$0xf]
        %v4399 = vld [vmem:[#allocation15 + $0x58] sm:$0xf]
        %v4400 = vld [vmem:[#allocation15 + $0x5c] sm:$0xf]
        %v4401 = vld [vmem:[#allocation15 + $0x60] sm:$0xf]
        %v4402 = vld [vmem:[#allocation15 + $0x64] sm:$0xf]
        %v4403 = vld [vmem:[#allocation15 + $0x68] sm:$0xf]
        %v4404 = vld [vmem:[#allocation15 + $0x6c] sm:$0xf]
        %v4405 = vld [vmem:[#allocation15 + $0x70] sm:$0xf]
        %v4406 = vld [vmem:[#allocation15 + $0x74] sm:$0xf]
        %v4407 = vld [vmem:[#allocation15 + $0x78] sm:$0xf]
        %v4408 = vld [vmem:[#allocation15 + $0x7c] sm:$0xf]
        %v4409 = vld [vmem:[%s10] sm:$0x1]
        %v4411 = vperm.slane %v4409, 0
        %v4445 = vunpack.c.l.b16 %v4377
        %v4446 = vunpack.c.l.b16 %v4378
        %v4447 = vunpack.c.l.b16 %v4379
        %v4448 = vunpack.c.l.b16 %v4380
        %v4449 = vunpack.c.l.b16 %v4381
        %v4450 = vunpack.c.l.b16 %v4382
        %v4451 = vunpack.c.l.b16 %v4383
        %v4452 = vunpack.c.l.b16 %v4384
        %v4453 = vunpack.c.l.b16 %v4385
        %v4454 = vunpack.c.l.b16 %v4386
        %v4455 = vunpack.c.l.b16 %v4387
        %v4456 = vunpack.c.l.b16 %v4388
        %v4457 = vunpack.c.l.b16 %v4389
        %v4458 = vunpack.c.l.b16 %v4390
        %v4459 = vunpack.c.l.b16 %v4391
        %v4460 = vunpack.c.l.b16 %v4392
        %v4461 = vunpack.c.l.b16 %v4393
        %v4462 = vunpack.c.l.b16 %v4394
        %v4463 = vunpack.c.l.b16 %v4395
        %v4464 = vunpack.c.l.b16 %v4396
        %v4465 = vunpack.c.l.b16 %v4397
        %v4466 = vunpack.c.l.b16 %v4398
        %v4467 = vunpack.c.l.b16 %v4399
        %v4468 = vunpack.c.l.b16 %v4400
        %v4469 = vunpack.c.l.b16 %v4401
        %v4470 = vunpack.c.l.b16 %v4402
        %v4471 = vunpack.c.l.b16 %v4403
        %v4472 = vunpack.c.l.b16 %v4404
        %v4473 = vunpack.c.l.b16 %v4405
        %v4474 = vunpack.c.l.b16 %v4406
        %v4475 = vunpack.c.l.b16 %v4407
        %v4476 = vunpack.c.l.b16 %v4408
        %v4477 = vpack.c.b16 %v4446, %v4445
        %v4478 = vpack.c.b16 %v4448, %v4447
        %v4479 = vpack.c.b16 %v4450, %v4449
        %v4480 = vpack.c.b16 %v4452, %v4451
        %v4481 = vpack.c.b16 %v4454, %v4453
        %v4482 = vpack.c.b16 %v4456, %v4455
        %v4483 = vpack.c.b16 %v4458, %v4457
        %v4484 = vpack.c.b16 %v4460, %v4459
        %v4485 = vpack.c.b16 %v4462, %v4461
        %v4486 = vpack.c.b16 %v4464, %v4463
        %v4487 = vpack.c.b16 %v4466, %v4465
        %v4488 = vpack.c.b16 %v4468, %v4467
        %v4489 = vpack.c.b16 %v4470, %v4469
        %v4490 = vpack.c.b16 %v4472, %v4471
        %v4491 = vpack.c.b16 %v4474, %v4473
        %v4492 = vpack.c.b16 %v4476, %v4475
        %4509 = vmatpush.bf16.msra.mxu0 %v4484
        %4510 = vmatpush.bf16.msra.mxu0 %v4483
        %4511 = vmatpush.bf16.msra.mxu0 %v4482
        %4512 = vmatpush.bf16.msra.mxu0 %v4481
        %4513 = vmatpush.bf16.msra.mxu0 %v4480
        %4514 = vmatpush.bf16.msra.mxu0 %v4479
        %4515 = vmatpush.bf16.msra.mxu0 %v4478
        %4516 = vmatpush.bf16.msra.mxu0 %v4477
        %4517 = vmatmul.bf16.gmra.mxu0 %v4345
        %v4518 = vpop.f32.mrf.mxu0
        %v4519 = vadd.f32 %v4411, %v4518
        %v4520 = vpop.f32.mrf.mxu0
        %v4521 = vadd.f32 %v4411, %v4520
        %4522 = vmatmul.bf16.gmra.mxu0 %v4347
        %v4523 = vpop.f32.mrf.mxu0
        %v4524 = vadd.f32 %v4411, %v4523
        %v4525 = vpop.f32.mrf.mxu0
        %v4526 = vadd.f32 %v4411, %v4525
        %4527 = vmatmul.bf16.gmra.mxu0 %v4349
        %v4528 = vpop.f32.mrf.mxu0
        %v4529 = vadd.f32 %v4411, %v4528
        %v4530 = vpop.f32.mrf.mxu0
        %v4531 = vadd.f32 %v4411, %v4530
        %4532 = vmatmul.bf16.gmra.mxu0 %v4351
        %v4533 = vpop.f32.mrf.mxu0
        %v4534 = vadd.f32 %v4411, %v4533
        %v4535 = vpop.f32.mrf.mxu0
        %v4536 = vadd.f32 %v4411, %v4535
        %4537 = vmatmul.bf16.gmra.mxu0 %v4353
        %v4538 = vpop.f32.mrf.mxu0
        %v4539 = vadd.f32 %v4411, %v4538
        %v4540 = vpop.f32.mrf.mxu0
        %v4541 = vadd.f32 %v4411, %v4540
        %4542 = vmatmul.bf16.gmra.mxu0 %v4355
        %v4543 = vpop.f32.mrf.mxu0
        %v4544 = vadd.f32 %v4411, %v4543
        %v4545 = vpop.f32.mrf.mxu0
        %v4546 = vadd.f32 %v4411, %v4545
        %4547 = vmatmul.bf16.gmra.mxu0 %v4357
        %v4548 = vpop.f32.mrf.mxu0
        %v4549 = vadd.f32 %v4411, %v4548
        %v4550 = vpop.f32.mrf.mxu0
        %v4551 = vadd.f32 %v4411, %v4550
        %4552 = vmatmul.bf16.gmra.mxu0 %v4359
        %v4553 = vpop.f32.mrf.mxu0
        %v4554 = vadd.f32 %v4411, %v4553
        %v4555 = vpop.f32.mrf.mxu0
        %v4556 = vadd.f32 %v4411, %v4555
        %4557 = vmatmul.bf16.gmra.mxu0 %v4361
        %v4558 = vpop.f32.mrf.mxu0
        %v4559 = vadd.f32 %v4411, %v4558
        %v4560 = vpop.f32.mrf.mxu0
        %v4561 = vadd.f32 %v4411, %v4560
        %4562 = vmatmul.bf16.gmra.mxu0 %v4363
        %v4563 = vpop.f32.mrf.mxu0
        %v4564 = vadd.f32 %v4411, %v4563
        %v4565 = vpop.f32.mrf.mxu0
        %v4566 = vadd.f32 %v4411, %v4565
        %4567 = vmatmul.bf16.gmra.mxu0 %v4365
        %v4568 = vpop.f32.mrf.mxu0
        %v4569 = vadd.f32 %v4411, %v4568
        %v4570 = vpop.f32.mrf.mxu0
        %v4571 = vadd.f32 %v4411, %v4570
        %4572 = vmatmul.bf16.gmra.mxu0 %v4367
        %v4573 = vpop.f32.mrf.mxu0
        %v4574 = vadd.f32 %v4411, %v4573
        %v4575 = vpop.f32.mrf.mxu0
        %v4576 = vadd.f32 %v4411, %v4575
        %4577 = vmatmul.bf16.gmra.mxu0 %v4369
        %v4578 = vpop.f32.mrf.mxu0
        %v4579 = vadd.f32 %v4411, %v4578
        %v4580 = vpop.f32.mrf.mxu0
        %v4581 = vadd.f32 %v4411, %v4580
        %4582 = vmatmul.bf16.gmra.mxu0 %v4371
        %v4583 = vpop.f32.mrf.mxu0
        %v4584 = vadd.f32 %v4411, %v4583
        %v4585 = vpop.f32.mrf.mxu0
        %v4586 = vadd.f32 %v4411, %v4585
        %4587 = vmatmul.bf16.gmra.mxu0 %v4373
        %v4588 = vpop.f32.mrf.mxu0
        %v4589 = vadd.f32 %v4411, %v4588
        %v4590 = vpop.f32.mrf.mxu0
        %v4591 = vadd.f32 %v4411, %v4590
        %4592 = vmatmul.bf16.gmra.mxu0 %v4375
        %v4593 = vpop.f32.mrf.mxu0
        %v4594 = vadd.f32 %v4411, %v4593
        %v4595 = vpop.f32.mrf.mxu0
        %v4596 = vadd.f32 %v4411, %v4595
        %4597 = vdwg.mxu0
        %4598 = vmatpush.bf16.msra.mxu0 %v4492
        %4599 = vmatpush.bf16.msra.mxu0 %v4491
        %4600 = vmatpush.bf16.msra.mxu0 %v4490
        %4601 = vmatpush.bf16.msra.mxu0 %v4489
        %4602 = vmatpush.bf16.msra.mxu0 %v4488
        %4603 = vmatpush.bf16.msra.mxu0 %v4487
        %4604 = vmatpush.bf16.msra.mxu0 %v4486
        %4605 = vmatpush.bf16.msra.mxu0 %v4485
        %4606 = vmatmul.bf16.gmra.mxu0 %v4346
        %v4607 = vpop.f32.mrf.mxu0
        %v4608 = vadd.f32 %v4519, %v4607
        %v4609 = vpop.f32.mrf.mxu0
        %v4610 = vadd.f32 %v4521, %v4609
        %4611 = vmatmul.bf16.gmra.mxu0 %v4348
        %v4612 = vpop.f32.mrf.mxu0
        %v4613 = vadd.f32 %v4524, %v4612
        %v4614 = vpop.f32.mrf.mxu0
        %v4615 = vadd.f32 %v4526, %v4614
        %4616 = vmatmul.bf16.gmra.mxu0 %v4350
        %v4617 = vpop.f32.mrf.mxu0
        %v4618 = vadd.f32 %v4529, %v4617
        %v4619 = vpop.f32.mrf.mxu0
        %v4620 = vadd.f32 %v4531, %v4619
        %4621 = vmatmul.bf16.gmra.mxu0 %v4352
        %v4622 = vpop.f32.mrf.mxu0
        %v4623 = vadd.f32 %v4534, %v4622
        %v4624 = vpop.f32.mrf.mxu0
        %v4625 = vadd.f32 %v4536, %v4624
        %4626 = vmatmul.bf16.gmra.mxu0 %v4354
        %v4627 = vpop.f32.mrf.mxu0
        %v4628 = vadd.f32 %v4539, %v4627
        %v4629 = vpop.f32.mrf.mxu0
        %v4630 = vadd.f32 %v4541, %v4629
        %4631 = vmatmul.bf16.gmra.mxu0 %v4356
        %v4632 = vpop.f32.mrf.mxu0
        %v4633 = vadd.f32 %v4544, %v4632
        %v4634 = vpop.f32.mrf.mxu0
        %v4635 = vadd.f32 %v4546, %v4634
        %4636 = vmatmul.bf16.gmra.mxu0 %v4358
        %v4637 = vpop.f32.mrf.mxu0
        %v4638 = vadd.f32 %v4549, %v4637
        %v4639 = vpop.f32.mrf.mxu0
        %v4640 = vadd.f32 %v4551, %v4639
        %4641 = vmatmul.bf16.gmra.mxu0 %v4360
        %v4642 = vpop.f32.mrf.mxu0
        %v4643 = vadd.f32 %v4554, %v4642
        %v4644 = vpop.f32.mrf.mxu0
        %v4645 = vadd.f32 %v4556, %v4644
        %4646 = vmatmul.bf16.gmra.mxu0 %v4362
        %v4647 = vpop.f32.mrf.mxu0
        %v4648 = vadd.f32 %v4559, %v4647
        %v4649 = vpop.f32.mrf.mxu0
        %v4650 = vadd.f32 %v4561, %v4649
        %4651 = vmatmul.bf16.gmra.mxu0 %v4364
        %v4652 = vpop.f32.mrf.mxu0
        %v4653 = vadd.f32 %v4564, %v4652
        %v4654 = vpop.f32.mrf.mxu0
        %v4655 = vadd.f32 %v4566, %v4654
        %4656 = vmatmul.bf16.gmra.mxu0 %v4366
        %v4657 = vpop.f32.mrf.mxu0
        %v4658 = vadd.f32 %v4569, %v4657
        %v4659 = vpop.f32.mrf.mxu0
        %v4660 = vadd.f32 %v4571, %v4659
        %4661 = vmatmul.bf16.gmra.mxu0 %v4368
        %v4662 = vpop.f32.mrf.mxu0
        %v4663 = vadd.f32 %v4574, %v4662
        %v4664 = vpop.f32.mrf.mxu0
        %v4665 = vadd.f32 %v4576, %v4664
        %4666 = vmatmul.bf16.gmra.mxu0 %v4370
        %v4667 = vpop.f32.mrf.mxu0
        %v4668 = vadd.f32 %v4579, %v4667
        %v4669 = vpop.f32.mrf.mxu0
        %v4670 = vadd.f32 %v4581, %v4669
        %4671 = vmatmul.bf16.gmra.mxu0 %v4372
        %v4672 = vpop.f32.mrf.mxu0
        %v4673 = vadd.f32 %v4584, %v4672
        %v4674 = vpop.f32.mrf.mxu0
        %v4675 = vadd.f32 %v4586, %v4674
        %4676 = vmatmul.bf16.gmra.mxu0 %v4374
        %v4677 = vpop.f32.mrf.mxu0
        %v4678 = vadd.f32 %v4589, %v4677
        %v4679 = vpop.f32.mrf.mxu0
        %v4680 = vadd.f32 %v4591, %v4679
        %4681 = vmatmul.bf16.gmra.mxu0 %v4376
        %v4682 = vpop.f32.mrf.mxu0
        %v4683 = vadd.f32 %v4594, %v4682
        %v4684 = vpop.f32.mrf.mxu0
        %v4685 = vadd.f32 %v4596, %v4684
        %4686 = vdwg.mxu0
        %v4687 = vadd.f32 %v2673, %v4608
        %v4688 = vadd.f32 %v2674, %v4610
        %v4689 = vadd.f32 %v2675, %v4613
        %v4690 = vadd.f32 %v2676, %v4615
        %v4691 = vadd.f32 %v2677, %v4618
        %v4692 = vadd.f32 %v2678, %v4620
        %v4693 = vadd.f32 %v2679, %v4623
        %v4694 = vadd.f32 %v2680, %v4625
        %v4695 = vadd.f32 %v2681, %v4628
        %v4696 = vadd.f32 %v2682, %v4630
        %v4697 = vadd.f32 %v2683, %v4633
        %v4698 = vadd.f32 %v2684, %v4635
        %v4699 = vadd.f32 %v2685, %v4638
        %v4700 = vadd.f32 %v2686, %v4640
        %v4701 = vadd.f32 %v2687, %v4643
        %v4702 = vadd.f32 %v2688, %v4645
        %v4703 = vadd.f32 %v2689, %v4648
        %v4704 = vadd.f32 %v2690, %v4650
        %v4705 = vadd.f32 %v2691, %v4653
        %v4706 = vadd.f32 %v2692, %v4655
        %v4707 = vadd.f32 %v2693, %v4658
        %v4708 = vadd.f32 %v2694, %v4660
        %v4709 = vadd.f32 %v2695, %v4663
        %v4710 = vadd.f32 %v2696, %v4665
        %v4711 = vadd.f32 %v2697, %v4668
        %v4712 = vadd.f32 %v2698, %v4670
        %v4713 = vadd.f32 %v2699, %v4673
        %v4714 = vadd.f32 %v2700, %v4675
        %v4715 = vadd.f32 %v2701, %v4678
        %v4716 = vadd.f32 %v2702, %v4680
        %v4717 = vadd.f32 %v2703, %v4683
        %v4718 = vadd.f32 %v2704, %v4685
        %4719 = vst [vmem:[%s520] sm:$0xff] %v4687
        %4720 = vst [vmem:[%s520 + $0x8] sm:$0xff] %v4688
        %4721 = vst [vmem:[%s520 + $0x10] sm:$0xff] %v4689
        %4722 = vst [vmem:[%s520 + $0x18] sm:$0xff] %v4690
        %4723 = vst [vmem:[%s520 + $0x20] sm:$0xff] %v4691
        %4724 = vst [vmem:[%s520 + $0x28] sm:$0xff] %v4692
        %4725 = vst [vmem:[%s520 + $0x30] sm:$0xff] %v4693
        %4726 = vst [vmem:[%s520 + $0x38] sm:$0xff] %v4694
        %4727 = vst [vmem:[%s520 + $0x40] sm:$0xff] %v4695
        %4728 = vst [vmem:[%s520 + $0x48] sm:$0xff] %v4696
        %4729 = vst [vmem:[%s520 + $0x50] sm:$0xff] %v4697
        %4730 = vst [vmem:[%s520 + $0x58] sm:$0xff] %v4698
        %4731 = vst [vmem:[%s520 + $0x60] sm:$0xff] %v4699
        %4732 = vst [vmem:[%s520 + $0x68] sm:$0xff] %v4700
        %4733 = vst [vmem:[%s520 + $0x70] sm:$0xff] %v4701
        %4734 = vst [vmem:[%s520 + $0x78] sm:$0xff] %v4702
        %4735 = vst [vmem:[%s520 + $0x80] sm:$0xff] %v4703
        %4736 = vst [vmem:[%s520 + $0x88] sm:$0xff] %v4704
        %4737 = vst [vmem:[%s520 + $0x90] sm:$0xff] %v4705
        %4738 = vst [vmem:[%s520 + $0x98] sm:$0xff] %v4706
        %4739 = vst [vmem:[%s520 + $0xa0] sm:$0xff] %v4707
        %4740 = vst [vmem:[%s520 + $0xa8] sm:$0xff] %v4708
        %4741 = vst [vmem:[%s520 + $0xb0] sm:$0xff] %v4709
        %4742 = vst [vmem:[%s520 + $0xb8] sm:$0xff] %v4710
        %4743 = vst [vmem:[%s520 + $0xc0] sm:$0xff] %v4711
        %4744 = vst [vmem:[%s520 + $0xc8] sm:$0xff] %v4712
        %4745 = vst [vmem:[%s520 + $0xd0] sm:$0xff] %v4713
        %4746 = vst [vmem:[%s520 + $0xd8] sm:$0xff] %v4714
        %4747 = vst [vmem:[%s520 + $0xe0] sm:$0xff] %v4715
        %4748 = vst [vmem:[%s520 + $0xe8] sm:$0xff] %v4716
        %4749 = vst [vmem:[%s520 + $0xf0] sm:$0xff] %v4717
        %4750 = vst [vmem:[%s520 + $0xf8] sm:$0xff] %v4718
        %s4751 = sand.u32 %s276, 1
        %s4752 = scalar_lea.sflag [#allocation5], %s4751
        %s4753 = sand.u32 %s276, 1
        %s4754 = smul.addr %s4753, 256
        %s4755 = scalar_lea.vmem [#allocation17], %s4754
        // Predicated region
        $region97: #{tpu_custom_call.1} parent=63 // pred_check
          %p4756 = pneg %p286
        $region98: #{tpu_custom_call.1} parent=63 // pred_check_branch
          %4758 = sbr.rel (%p4756) target = $region100
        $region99: #{tpu_custom_call.1} parent=63 // pred_region
          %s4759 = smul.u32 32, %s32
          %4761 = vsyncadd %s4752, 0
          %s4762 = smul.addr %s4759, 8
          %s4763 = scalar_lea.hbm %s11, %s4762
          %s4764 = sshll.u32 %s4755, 4
          %s4765 = int_to_ptr.vmem [resolvable:$true] %s4764
          %s4766 = sshll.u32 %s4763, 4
          %s4767 = int_to_ptr.hbm [resolvable:$true] %s4766
          %4772 = dma.vmem_to_hbm [thread:$0]  %s4765, 4096, %s4767, %s4752, 128, 128, 8
        $region100: #{tpu_custom_call.1} parent=63 // pred_fallthru
          _
      $region64: #{tpu_custom_call.1} parent=5 // pred_fallthru
        _
      %p4773 = scmp.le.s32.totalorder 2, %s27
      // Predicated region
      $region101: #{tpu_custom_call.1} parent=5 // pred_check
        %p4774 = pneg %p4773
      $region102: #{tpu_custom_call.1} parent=5 // pred_check_branch
        %4776 = sbr.rel (%p4774) target = $region104
      $region103: #{tpu_custom_call.1} parent=5 // pred_region
        %s4777 = ssub.s32 %s27, 2
        // Predicated region
        $region105: #{tpu_custom_call.1} parent=103 // pred_check
          %p4778 = pneg %p292
        $region106: #{tpu_custom_call.1} parent=103 // pred_check_branch
          %4780 = sbr.rel (%p4778) target = $region108
        $region107: #{tpu_custom_call.1} parent=103 // pred_region
          %s4781 = sand.u32 %s277, 1
          %s4782 = scalar_lea.sflag [#allocation5], %s4781
          %s4783 = sand.u32 %s277, 1
          %s4784 = smul.addr %s4783, 256
          %s4785 = scalar_lea.vmem [#allocation17], %s4784
          %4787 = dma.done %s4782, 4096
        $region108: #{tpu_custom_call.1} parent=103 // pred_fallthru
          _
      $region104: #{tpu_custom_call.1} parent=5 // pred_fallthru
        _
    $region6: #{tpu_custom_call.1} parent=1 // loop_footer
      %s31 = sadd.s32 1, %s27
    $region7: #{tpu_custom_call.1} parent=1 // loop_footer_branch
      %26 = sbr.rel target = $region3
    $region8: #{tpu_custom_call.1} parent=1 // loop_exit
      _
    %4788 = vsyncpa [#allocation4], 1
    %s4789 = scalar_lea.sflag [#allocation4], 1
    %4790 = vsyncpa %s4789, 1
    %4791 = vsyncpa [#allocation7], 1
    %4792 = vsyncpa [#allocation10], 1
    %4793 = vsyncpa [#allocation13], 1
    %4794 = vsyncpa [#allocation16], 1
    %4795 = vsyncpa [#allocation5], 1
    %s4796 = scalar_lea.sflag [#allocation5], 1
    %4797 = vsyncpa %s4796, 1

</llo_original>
